<compile_context>
chip_gen: v7x
topology: tpu7x:2x2x1
jax: 0.10.0
libtpu: 0.0.40
codegen_flags: <defaults>
</compile_context>

<pallas_src>
import math

import jax
import jax.numpy as jnp
from jax.experimental import pallas as pl
from jax.experimental.pallas import tpu as pltpu


# ---------------------------------------------------------------------------
# Exact-GELU erf: Abramowitz & Stegun 7.1.26 (max abs err ~1.5e-7), VPU/EUP only.
# ---------------------------------------------------------------------------
def _erf(z):
    a1, a2, a3, a4, a5 = (0.254829592, -0.284496736, 1.421413741,
                          -1.453152027, 1.061405429)
    p = 0.3275911
    az = jnp.abs(z)
    t = 1.0 / (1.0 + p * az)
    poly = ((((a5 * t + a4) * t + a3) * t + a2) * t + a1) * t
    y = 1.0 - poly * jnp.exp(-az * az)
    return jnp.where(z >= 0, y, -y)


# ---------------------------------------------------------------------------
# Fused kernel factory: one grid step = Bb batch elements = M = Bb*S rows.
# ---------------------------------------------------------------------------
def _make_kernel(Bb, S, C, nh):
    dh = C // nh
    eps = 1e-5

    def kernel(x_ref,                      # (M, C)  input rows (residual source)
               ln1g_ref, ln1b_ref,         # (1, C)  LayerNorm before attention
               wqkv_ref, bqkv_ref,         # (C, 3C) bf16, (1, 3C) f32  fused in-proj
               wo_ref, bo_ref,             # (C, C) bf16, (1, C) f32    out-projection
               ln2g_ref, ln2b_ref,         # (1, C)  LayerNorm inside ff_self
               w1_ref, b1_ref,             # (C, C) bf16, (1, C) f32    ff linear 1
               w2_ref, b2_ref,             # (C, C) bf16, (1, C) f32    ff linear 2
               out_ref,                    # (M, C)
               o_scratch):                 # (M, C) bf16 VMEM: concatenated head outs
        x = x_ref[...]                                            # (M, C) f32

        def layer_norm(h, g, b):
            mu = jnp.mean(h, axis=-1, keepdims=True)
            var = jnp.mean((h - mu) ** 2, axis=-1, keepdims=True)
            return (h - mu) * jax.lax.rsqrt(var + eps) * g + b

        # --- pre-LN + fused QKV projection (bf16 MXU operands, f32 accumulate) ---
        x_ln = layer_norm(x, ln1g_ref[...], ln1b_ref[...])
        qkv = (jnp.dot(x_ln.astype(jnp.bfloat16), wqkv_ref[...],
                       preferred_element_type=jnp.float32) + bqkv_ref[...])
        # 1/sqrt(dh) scale is already folded into the Q columns of wqkv/bqkv.
        q = qkv[:, 0:C].astype(jnp.bfloat16)
        k = qkv[:, C:2 * C].astype(jnp.bfloat16)
        v = qkv[:, 2 * C:3 * C].astype(jnp.bfloat16)

        # --- per-(batch, head) attention; head outputs written at their lane
        #     offset into a bf16 scratch so the out-projection is one K=C matmul.
        for b in range(Bb):
            rs = slice(b * S, (b + 1) * S)
            for h in range(nh):
                cs = slice(h * dh, (h + 1) * dh)
                s = jax.lax.dot_general(q[rs, cs], k[rs, cs],
                                        (((1,), (1,)), ((), ())),
                                        preferred_element_type=jnp.float32)  # (S,S)
                s = s - jnp.max(s, axis=-1, keepdims=True)
                p = jnp.exp(s)
                inv = pl.reciprocal(jnp.sum(p, axis=-1, keepdims=True), approx=True)
                p = (p * inv).astype(jnp.bfloat16)
                o_h = jnp.dot(p, v[rs, cs],
                              preferred_element_type=jnp.float32)            # (S,dh)
                o_scratch[rs, cs] = o_h.astype(jnp.bfloat16)

        proj = jnp.dot(o_scratch[...], wo_ref[...],
                       preferred_element_type=jnp.float32)        # (M, C)
        h1 = proj + bo_ref[...] + x                               # residual 1

        # --- ff_self: LN -> Linear -> exact GELU -> Linear, then residual ---------
        h_ln = layer_norm(h1, ln2g_ref[...], ln2b_ref[...])
        f = (jnp.dot(h_ln.astype(jnp.bfloat16), w1_ref[...],
                     preferred_element_type=jnp.float32) + b1_ref[...])
        f = 0.5 * f * (1.0 + _erf(f * (1.0 / math.sqrt(2.0))))    # exact GELU
        f = (jnp.dot(f.astype(jnp.bfloat16), w2_ref[...],
                     preferred_element_type=jnp.float32) + b2_ref[...])
        out_ref[...] = (f + h1).astype(out_ref.dtype)

    return kernel


def _choose_block_batch(B, S, target_rows=256, min_grid=2):
    """Largest divisor Bb of B s.t. (a) grid keeps >= min_grid steps (both v7x
    TensorCores get work) and (b) rows per matmul don't grossly exceed the
    256-row MXU once we already have >= 128 rows."""
    bb = 1
    for cand in range(1, B + 1):
        if B % cand:
            continue
        if B >= min_grid and B // cand < min_grid:
            break
        if cand * S > target_rows and bb * S >= 128:
            break
        bb = cand
    return bb


# ---------------------------------------------------------------------------
# Wrapper: NCHW <-> (B*S, C) layout glue + one-time weight repack (torch layouts).
# ---------------------------------------------------------------------------
def self_attention_pallas(x_nchw, p, *, num_heads=4):
    B, C, H, W = x_nchw.shape
    S = H * W
    Bb = _choose_block_batch(B, S)
    M = Bb * S
    grid = B // Bb

    # (B, C, H, W) -> (B*S, C): channels lane-dense, batch rows stacked.
    x_seq = jnp.transpose(x_nchw.reshape(B, C, S), (0, 2, 1)).reshape(B * S, C)

    # torch layouts -> kernel layouts (x @ W form), q-scale folded, bf16 MXU weights.
    scale = 1.0 / math.sqrt(C // num_heads)
    qscale = jnp.concatenate([jnp.full((C,), scale, jnp.float32),
                              jnp.ones((2 * C,), jnp.float32)])
    wqkv = (p["in_proj_w"] * qscale[:, None]).T.astype(jnp.bfloat16)   # (C, 3C)
    bqkv = (p["in_proj_b"] * qscale).reshape(1, 3 * C).astype(jnp.float32)
    wo = p["out_proj_w"].T.astype(jnp.bfloat16)                        # (C, C)
    bo = p["out_proj_b"].reshape(1, C).astype(jnp.float32)
    w1 = p["ff1_w"].T.astype(jnp.bfloat16)
    b1 = p["ff1_b"].reshape(1, C).astype(jnp.float32)
    w2 = p["ff2_w"].T.astype(jnp.bfloat16)
    b2 = p["ff2_b"].reshape(1, C).astype(jnp.float32)
    ln1g = p["ln1_w"].reshape(1, C).astype(jnp.float32)
    ln1b = p["ln1_b"].reshape(1, C).astype(jnp.float32)
    ln2g = p["ln2_w"].reshape(1, C).astype(jnp.float32)
    ln2b = p["ln2_b"].reshape(1, C).astype(jnp.float32)

    rep = lambda i: (0, 0)      # weight blocks: same block every grid step

    out2d = pl.pallas_call(
        _make_kernel(Bb, S, C, num_heads),
        out_shape=jax.ShapeDtypeStruct((B * S, C), jnp.float32),
        grid_spec=pltpu.PrefetchScalarGridSpec(
            num_scalar_prefetch=0,
            grid=(grid,),
            in_specs=[
                pl.BlockSpec((M, C), lambda i: (i, 0)),                 # x rows
                pl.BlockSpec((1, C), rep), pl.BlockSpec((1, C), rep),   # ln1 g,b
                pl.BlockSpec((C, 3 * C), rep),                          # Wqkv
                pl.BlockSpec((1, 3 * C), rep),                          # bqkv
                pl.BlockSpec((C, C), rep), pl.BlockSpec((1, C), rep),   # Wo, bo
                pl.BlockSpec((1, C), rep), pl.BlockSpec((1, C), rep),   # ln2 g,b
                pl.BlockSpec((C, C), rep), pl.BlockSpec((1, C), rep),   # W1, b1
                pl.BlockSpec((C, C), rep), pl.BlockSpec((1, C), rep),   # W2, b2
            ],
            out_specs=pl.BlockSpec((M, C), lambda i: (i, 0)),
            scratch_shapes=[pltpu.VMEM((M, C), jnp.bfloat16)],
        ),
        compiler_params=pltpu.CompilerParams(
            dimension_semantics=("parallel",)),
    )(x_seq, ln1g, ln1b, wqkv, bqkv, wo, bo, ln2g, ln2b, w1, b1, w2, b2)

    return jnp.transpose(out2d.reshape(B, S, C), (0, 2, 1)).reshape(B, C, H, W)


# ---------------------------------------------------------------------------
# Pure-JAX f32 reference (PyTorch semantics) for validation.
# ---------------------------------------------------------------------------
def self_attention_reference(x_nchw, p):
    B, C, H, W = x_nchw.shape
    S = H * W
    nh, dh = 4, C // 4
    x = jnp.transpose(x_nchw.reshape(B, C, S), (0, 2, 1))         # (B, S, C)

    def ln(h, g, b):
        mu = jnp.mean(h, axis=-1, keepdims=True)
        var = jnp.mean((h - mu) ** 2, axis=-1, keepdims=True)
        return (h - mu) * jax.lax.rsqrt(var + 1e-5) * g + b

    x_ln = ln(x, p["ln1_w"], p["ln1_b"])
    qkv = x_ln @ p["in_proj_w"].T + p["in_proj_b"]                # (B, S, 3C)
    q, k, v = jnp.split(qkv, 3, axis=-1)
    q = q.reshape(B, S, nh, dh).transpose(0, 2, 1, 3) / math.sqrt(dh)
    k = k.reshape(B, S, nh, dh).transpose(0, 2, 1, 3)
    v = v.reshape(B, S, nh, dh).transpose(0, 2, 1, 3)
    attn = jax.nn.softmax(q @ jnp.swapaxes(k, -1, -2), axis=-1)
    o = (attn @ v).transpose(0, 2, 1, 3).reshape(B, S, C)
    o = o @ p["out_proj_w"].T + p["out_proj_b"]
    h1 = o + x
    h_ln = ln(h1, p["ln2_w"], p["ln2_b"])
    f = h_ln @ p["ff1_w"].T + p["ff1_b"]
    f = 0.5 * f * (1.0 + jax.lax.erf(f / math.sqrt(2.0)))         # exact GELU
    f = f @ p["ff2_w"].T + p["ff2_b"]
    out = f + h1
    return jnp.transpose(out, (0, 2, 1)).reshape(B, C, H, W)


# ---------------------------------------------------------------------------
def make_params(key, c):
    ks = jax.random.split(key, 8)

    def w(k, shape, fan_in):
        return jax.random.normal(k, shape, jnp.float32) / jnp.sqrt(fan_in)

    return {
        # LayerNorms (fresh module init: gamma=1, beta=0)
        "ln1_w": jnp.ones((c,), jnp.float32),
        "ln1_b": jnp.zeros((c,), jnp.float32),
        "ln2_w": jnp.ones((c,), jnp.float32),
        "ln2_b": jnp.zeros((c,), jnp.float32),
        # MultiheadAttention: in_proj (3C, C), out_proj (C, C)  -- torch layout
        "in_proj_w": w(ks[0], (3 * c, c), c),
        "in_proj_b": w(ks[1], (3 * c,), c),
        "out_proj_w": w(ks[2], (c, c), c),
        "out_proj_b": w(ks[3], (c,), c),
        # ff_self Linears (out, in) -- torch layout
        "ff1_w": w(ks[4], (c, c), c),
        "ff1_b": w(ks[5], (c,), c),
        "ff2_w": w(ks[6], (c, c), c),
        "ff2_b": w(ks[7], (c,), c),
    }


if __name__ == "__main__":
    # C = 128 keeps channels lane-dense and divisible by 4 heads; B = 4, S = 64
    # so the wrapper stacks 2 batch elements per grid step (M = 128 matmul rows)
    # while keeping 2 grid steps for the two v7x TensorCores.
    B, C, H, W = 4, 128, 8, 8

    key = jax.random.PRNGKey(0)
    k_x, k_p = jax.random.split(key)
    x = jax.random.normal(k_x, (B, C, H, W), jnp.float32)
    params = make_params(k_p, C)

    out = jax.block_until_ready(self_attention_pallas(x, params))
    ref = jax.block_until_ready(self_attention_reference(x, params))

    assert out.shape == (B, C, H, W), out.shape
    max_err = float(jnp.max(jnp.abs(out - ref)))
    # bf16 MXU operands + approx reciprocal: expect ~1e-2 worst-case vs f32 reference.
    assert max_err < 5e-2, f"max abs error {max_err}"
    print("KERNEL_OK")
</pallas_src>

<mosaic_0001>
module attributes {stable_mosaic.version = 11 : i64} {
  func.func @kernel(%arg0: i32, %arg1: memref<128x128xf32, #tpu.memory_space<vmem>>, %arg2: memref<1x128xf32, #tpu.memory_space<vmem>>, %arg3: memref<1x128xf32, #tpu.memory_space<vmem>>, %arg4: memref<128x384xbf16, #tpu.memory_space<vmem>>, %arg5: memref<1x384xf32, #tpu.memory_space<vmem>>, %arg6: memref<128x128xbf16, #tpu.memory_space<vmem>>, %arg7: memref<1x128xf32, #tpu.memory_space<vmem>>, %arg8: memref<1x128xf32, #tpu.memory_space<vmem>>, %arg9: memref<1x128xf32, #tpu.memory_space<vmem>>, %arg10: memref<128x128xbf16, #tpu.memory_space<vmem>>, %arg11: memref<1x128xf32, #tpu.memory_space<vmem>>, %arg12: memref<128x128xbf16, #tpu.memory_space<vmem>>, %arg13: memref<1x128xf32, #tpu.memory_space<vmem>>, %arg14: memref<128x128xf32, #tpu.memory_space<vmem>>, %arg15: memref<128x128xbf16, #tpu.memory_space<vmem>>) attributes {dimension_semantics = [#tpu.dimension_semantics<parallel>], iteration_bounds = array<i64: 2>, scalar_prefetch = 0 : i64, scratch_operands = 1 : i64, tpu.core_type = #tpu.core_type<tc>, window_params = [{transform_indices = @transform_0, window_bounds = array<i64: 128, 128>}, {pipeline_mode = #tpu.pipeline_mode<synchronous>, transform_indices = @transform_1, window_bounds = array<i64: 1, 128>}, {pipeline_mode = #tpu.pipeline_mode<synchronous>, transform_indices = @transform_2, window_bounds = array<i64: 1, 128>}, {pipeline_mode = #tpu.pipeline_mode<synchronous>, transform_indices = @transform_3, window_bounds = array<i64: 128, 384>}, {pipeline_mode = #tpu.pipeline_mode<synchronous>, transform_indices = @transform_4, window_bounds = array<i64: 1, 384>}, {pipeline_mode = #tpu.pipeline_mode<synchronous>, transform_indices = @transform_5, window_bounds = array<i64: 128, 128>}, {pipeline_mode = #tpu.pipeline_mode<synchronous>, transform_indices = @transform_6, window_bounds = array<i64: 1, 128>}, {pipeline_mode = #tpu.pipeline_mode<synchronous>, transform_indices = @transform_7, window_bounds = array<i64: 1, 128>}, {pipeline_mode = #tpu.pipeline_mode<synchronous>, transform_indices = @transform_8, window_bounds = array<i64: 1, 128>}, {pipeline_mode = #tpu.pipeline_mode<synchronous>, transform_indices = @transform_9, window_bounds = array<i64: 128, 128>}, {pipeline_mode = #tpu.pipeline_mode<synchronous>, transform_indices = @transform_10, window_bounds = array<i64: 1, 128>}, {pipeline_mode = #tpu.pipeline_mode<synchronous>, transform_indices = @transform_11, window_bounds = array<i64: 128, 128>}, {pipeline_mode = #tpu.pipeline_mode<synchronous>, transform_indices = @transform_12, window_bounds = array<i64: 1, 128>}, {transform_indices = @transform_13, window_bounds = array<i64: 128, 128>}]} {
    %c0 = arith.constant 0 : index
    %c0_0 = arith.constant 0 : index
    %0 = vector.load %arg1[%c0, %c0_0] : memref<128x128xf32, #tpu.memory_space<vmem>>, vector<128x128xf32>
    %c0_1 = arith.constant 0 : index
    %c0_2 = arith.constant 0 : index
    %1 = vector.load %arg2[%c0_1, %c0_2] : memref<1x128xf32, #tpu.memory_space<vmem>>, vector<1x128xf32>
    %c0_3 = arith.constant 0 : index
    %c0_4 = arith.constant 0 : index
    %2 = vector.load %arg3[%c0_3, %c0_4] : memref<1x128xf32, #tpu.memory_space<vmem>>, vector<1x128xf32>
    %cst = arith.constant dense<0.000000e+00> : vector<128xf32>
    %3 = vector.multi_reduction <add>, %0, %cst [1] : vector<128x128xf32> to vector<128xf32>
    %4 = vector.shape_cast %3 : vector<128xf32> to vector<128x1xf32>
    %cst_5 = arith.constant 1.280000e+02 : f32
    %5 = vector.broadcast %cst_5 : f32 to vector<128x1xf32>
    %6 = arith.divf %4, %5 : vector<128x1xf32>
    %7 = vector.broadcast %6 : vector<128x1xf32> to vector<128x128xf32>
    %8 = arith.subf %0, %7 : vector<128x128xf32>
    %9 = arith.mulf %8, %8 : vector<128x128xf32>
    %cst_6 = arith.constant dense<0.000000e+00> : vector<128xf32>
    %10 = vector.multi_reduction <add>, %9, %cst_6 [1] : vector<128x128xf32> to vector<128xf32>
    %11 = vector.shape_cast %10 : vector<128xf32> to vector<128x1xf32>
    %cst_7 = arith.constant 1.280000e+02 : f32
    %12 = vector.broadcast %cst_7 : f32 to vector<128x1xf32>
    %13 = arith.divf %11, %12 : vector<128x1xf32>
    %14 = vector.broadcast %6 : vector<128x1xf32> to vector<128x128xf32>
    %15 = arith.subf %0, %14 : vector<128x128xf32>
    %cst_8 = arith.constant 9.99999974E-6 : f32
    %16 = vector.broadcast %cst_8 : f32 to vector<128x1xf32>
    %17 = arith.addf %13, %16 : vector<128x1xf32>
    %18 = math.rsqrt %17 : vector<128x1xf32>
    %19 = vector.broadcast %18 : vector<128x1xf32> to vector<128x128xf32>
    %20 = arith.mulf %15, %19 : vector<128x128xf32>
    %21 = vector.broadcast %1 : vector<1x128xf32> to vector<128x128xf32>
    %22 = arith.mulf %20, %21 : vector<128x128xf32>
    %23 = vector.broadcast %2 : vector<1x128xf32> to vector<128x128xf32>
    %24 = arith.addf %22, %23 : vector<128x128xf32>
    %25 = arith.truncf %24 : vector<128x128xf32> to vector<128x128xbf16>
    %c0_9 = arith.constant 0 : index
    %c0_10 = arith.constant 0 : index
    %26 = vector.load %arg4[%c0_9, %c0_10] : memref<128x384xbf16, #tpu.memory_space<vmem>>, vector<128x384xbf16>
    %cst_11 = arith.constant dense<0.000000e+00> : vector<128x384xf32>
    %27 = tpu.matmul %25, %26, %cst_11 {dimension_numbers = #tpu.dot_dimension_numbers<[1], [0], [0], [1], [0, 0, 1, 1], [], []>} : vector<128x128xbf16>, vector<128x384xbf16>, vector<128x384xf32> -> vector<128x384xf32>
    %c0_12 = arith.constant 0 : index
    %c0_13 = arith.constant 0 : index
    %28 = vector.load %arg5[%c0_12, %c0_13] : memref<1x384xf32, #tpu.memory_space<vmem>>, vector<1x384xf32>
    %29 = vector.broadcast %28 : vector<1x384xf32> to vector<128x384xf32>
    %30 = arith.addf %27, %29 : vector<128x384xf32>
    %31 = vector.extract_strided_slice %30 {offsets = [0, 0], sizes = [128, 128], strides = [1, 1]} : vector<128x384xf32> to vector<128x128xf32>
    %32 = arith.truncf %31 : vector<128x128xf32> to vector<128x128xbf16>
    %33 = vector.extract_strided_slice %30 {offsets = [0, 128], sizes = [128, 128], strides = [1, 1]} : vector<128x384xf32> to vector<128x128xf32>
    %34 = arith.truncf %33 : vector<128x128xf32> to vector<128x128xbf16>
    %35 = vector.extract_strided_slice %30 {offsets = [0, 256], sizes = [128, 128], strides = [1, 1]} : vector<128x384xf32> to vector<128x128xf32>
    %36 = arith.truncf %35 : vector<128x128xf32> to vector<128x128xbf16>
    %37 = vector.extract_strided_slice %32 {offsets = [0, 0], sizes = [64, 32], strides = [1, 1]} : vector<128x128xbf16> to vector<64x32xbf16>
    %38 = vector.extract_strided_slice %34 {offsets = [0, 0], sizes = [64, 32], strides = [1, 1]} : vector<128x128xbf16> to vector<64x32xbf16>
    %cst_14 = arith.constant dense<0.000000e+00> : vector<64x64xf32>
    %39 = tpu.matmul %37, %38, %cst_14 {dimension_numbers = #tpu.dot_dimension_numbers<[1], [1], [0], [0], [0, 0, 1, 0], [], []>} : vector<64x32xbf16>, vector<64x32xbf16>, vector<64x64xf32> -> vector<64x64xf32>
    %cst_15 = arith.constant dense<0xFF800000> : vector<64xf32>
    %40 = vector.multi_reduction <maximumf>, %39, %cst_15 [1] : vector<64x64xf32> to vector<64xf32>
    %41 = vector.shape_cast %40 : vector<64xf32> to vector<64x1xf32>
    %42 = vector.broadcast %41 : vector<64x1xf32> to vector<64x64xf32>
    %43 = arith.subf %39, %42 : vector<64x64xf32>
    %44 = math.exp %43 : vector<64x64xf32>
    %cst_16 = arith.constant dense<0.000000e+00> : vector<64xf32>
    %45 = vector.multi_reduction <add>, %44, %cst_16 [1] : vector<64x64xf32> to vector<64xf32>
    %46 = vector.shape_cast %45 : vector<64xf32> to vector<64x1xf32>
    %47 = tpu.reciprocal %46 {approx = true} : vector<64x1xf32> -> vector<64x1xf32>
    %48 = vector.broadcast %47 : vector<64x1xf32> to vector<64x64xf32>
    %49 = arith.mulf %44, %48 : vector<64x64xf32>
    %50 = arith.truncf %49 : vector<64x64xf32> to vector<64x64xbf16>
    %51 = vector.extract_strided_slice %36 {offsets = [0, 0], sizes = [64, 32], strides = [1, 1]} : vector<128x128xbf16> to vector<64x32xbf16>
    %cst_17 = arith.constant dense<0.000000e+00> : vector<64x32xf32>
    %52 = tpu.matmul %50, %51, %cst_17 {dimension_numbers = #tpu.dot_dimension_numbers<[1], [0], [0], [1], [0, 0, 1, 1], [], []>} : vector<64x64xbf16>, vector<64x32xbf16>, vector<64x32xf32> -> vector<64x32xf32>
    %53 = arith.truncf %52 : vector<64x32xf32> to vector<64x32xbf16>
    %c0_18 = arith.constant 0 : index
    %c0_19 = arith.constant 0 : index
    %54 = vector.load %arg15[%c0_18, %c0_19] : memref<128x128xbf16, #tpu.memory_space<vmem>>, vector<64x32xbf16>
    tpu.vector_store %arg15[%c0_18, %c0_19], %53 {strides = array<i32>} : memref<128x128xbf16, #tpu.memory_space<vmem>>, vector<64x32xbf16>,
    %55 = vector.extract_strided_slice %32 {offsets = [0, 32], sizes = [64, 32], strides = [1, 1]} : vector<128x128xbf16> to vector<64x32xbf16>
    %56 = vector.extract_strided_slice %34 {offsets = [0, 32], sizes = [64, 32], strides = [1, 1]} : vector<128x128xbf16> to vector<64x32xbf16>
    %cst_20 = arith.constant dense<0.000000e+00> : vector<64x64xf32>
    %57 = tpu.matmul %55, %56, %cst_20 {dimension_numbers = #tpu.dot_dimension_numbers<[1], [1], [0], [0], [0, 0, 1, 0], [], []>} : vector<64x32xbf16>, vector<64x32xbf16>, vector<64x64xf32> -> vector<64x64xf32>
    %cst_21 = arith.constant dense<0xFF800000> : vector<64xf32>
    %58 = vector.multi_reduction <maximumf>, %57, %cst_21 [1] : vector<64x64xf32> to vector<64xf32>
    %59 = vector.shape_cast %58 : vector<64xf32> to vector<64x1xf32>
    %60 = vector.broadcast %59 : vector<64x1xf32> to vector<64x64xf32>
    %61 = arith.subf %57, %60 : vector<64x64xf32>
    %62 = math.exp %61 : vector<64x64xf32>
    %cst_22 = arith.constant dense<0.000000e+00> : vector<64xf32>
    %63 = vector.multi_reduction <add>, %62, %cst_22 [1] : vector<64x64xf32> to vector<64xf32>
    %64 = vector.shape_cast %63 : vector<64xf32> to vector<64x1xf32>
    %65 = tpu.reciprocal %64 {approx = true} : vector<64x1xf32> -> vector<64x1xf32>
    %66 = vector.broadcast %65 : vector<64x1xf32> to vector<64x64xf32>
    %67 = arith.mulf %62, %66 : vector<64x64xf32>
    %68 = arith.truncf %67 : vector<64x64xf32> to vector<64x64xbf16>
    %69 = vector.extract_strided_slice %36 {offsets = [0, 32], sizes = [64, 32], strides = [1, 1]} : vector<128x128xbf16> to vector<64x32xbf16>
    %cst_23 = arith.constant dense<0.000000e+00> : vector<64x32xf32>
    %70 = tpu.matmul %68, %69, %cst_23 {dimension_numbers = #tpu.dot_dimension_numbers<[1], [0], [0], [1], [0, 0, 1, 1], [], []>} : vector<64x64xbf16>, vector<64x32xbf16>, vector<64x32xf32> -> vector<64x32xf32>
    %71 = arith.truncf %70 : vector<64x32xf32> to vector<64x32xbf16>
    %c0_24 = arith.constant 0 : index
    %c32 = arith.constant 32 : index
    %72 = vector.load %arg15[%c0_24, %c32] : memref<128x128xbf16, #tpu.memory_space<vmem>>, vector<64x32xbf16>
    tpu.vector_store %arg15[%c0_24, %c32], %71 {strides = array<i32>} : memref<128x128xbf16, #tpu.memory_space<vmem>>, vector<64x32xbf16>,
    %73 = vector.extract_strided_slice %32 {offsets = [0, 64], sizes = [64, 32], strides = [1, 1]} : vector<128x128xbf16> to vector<64x32xbf16>
    %74 = vector.extract_strided_slice %34 {offsets = [0, 64], sizes = [64, 32], strides = [1, 1]} : vector<128x128xbf16> to vector<64x32xbf16>
    %cst_25 = arith.constant dense<0.000000e+00> : vector<64x64xf32>
    %75 = tpu.matmul %73, %74, %cst_25 {dimension_numbers = #tpu.dot_dimension_numbers<[1], [1], [0], [0], [0, 0, 1, 0], [], []>} : vector<64x32xbf16>, vector<64x32xbf16>, vector<64x64xf32> -> vector<64x64xf32>
    %cst_26 = arith.constant dense<0xFF800000> : vector<64xf32>
    %76 = vector.multi_reduction <maximumf>, %75, %cst_26 [1] : vector<64x64xf32> to vector<64xf32>
    %77 = vector.shape_cast %76 : vector<64xf32> to vector<64x1xf32>
    %78 = vector.broadcast %77 : vector<64x1xf32> to vector<64x64xf32>
    %79 = arith.subf %75, %78 : vector<64x64xf32>
    %80 = math.exp %79 : vector<64x64xf32>
    %cst_27 = arith.constant dense<0.000000e+00> : vector<64xf32>
    %81 = vector.multi_reduction <add>, %80, %cst_27 [1] : vector<64x64xf32> to vector<64xf32>
    %82 = vector.shape_cast %81 : vector<64xf32> to vector<64x1xf32>
    %83 = tpu.reciprocal %82 {approx = true} : vector<64x1xf32> -> vector<64x1xf32>
    %84 = vector.broadcast %83 : vector<64x1xf32> to vector<64x64xf32>
    %85 = arith.mulf %80, %84 : vector<64x64xf32>
    %86 = arith.truncf %85 : vector<64x64xf32> to vector<64x64xbf16>
    %87 = vector.extract_strided_slice %36 {offsets = [0, 64], sizes = [64, 32], strides = [1, 1]} : vector<128x128xbf16> to vector<64x32xbf16>
    %cst_28 = arith.constant dense<0.000000e+00> : vector<64x32xf32>
    %88 = tpu.matmul %86, %87, %cst_28 {dimension_numbers = #tpu.dot_dimension_numbers<[1], [0], [0], [1], [0, 0, 1, 1], [], []>} : vector<64x64xbf16>, vector<64x32xbf16>, vector<64x32xf32> -> vector<64x32xf32>
    %89 = arith.truncf %88 : vector<64x32xf32> to vector<64x32xbf16>
    %c0_29 = arith.constant 0 : index
    %c64 = arith.constant 64 : index
    %90 = vector.load %arg15[%c0_29, %c64] : memref<128x128xbf16, #tpu.memory_space<vmem>>, vector<64x32xbf16>
    tpu.vector_store %arg15[%c0_29, %c64], %89 {strides = array<i32>} : memref<128x128xbf16, #tpu.memory_space<vmem>>, vector<64x32xbf16>,
    %91 = vector.extract_strided_slice %32 {offsets = [0, 96], sizes = [64, 32], strides = [1, 1]} : vector<128x128xbf16> to vector<64x32xbf16>
    %92 = vector.extract_strided_slice %34 {offsets = [0, 96], sizes = [64, 32], strides = [1, 1]} : vector<128x128xbf16> to vector<64x32xbf16>
    %cst_30 = arith.constant dense<0.000000e+00> : vector<64x64xf32>
    %93 = tpu.matmul %91, %92, %cst_30 {dimension_numbers = #tpu.dot_dimension_numbers<[1], [1], [0], [0], [0, 0, 1, 0], [], []>} : vector<64x32xbf16>, vector<64x32xbf16>, vector<64x64xf32> -> vector<64x64xf32>
    %cst_31 = arith.constant dense<0xFF800000> : vector<64xf32>
    %94 = vector.multi_reduction <maximumf>, %93, %cst_31 [1] : vector<64x64xf32> to vector<64xf32>
    %95 = vector.shape_cast %94 : vector<64xf32> to vector<64x1xf32>
    %96 = vector.broadcast %95 : vector<64x1xf32> to vector<64x64xf32>
    %97 = arith.subf %93, %96 : vector<64x64xf32>
    %98 = math.exp %97 : vector<64x64xf32>
    %cst_32 = arith.constant dense<0.000000e+00> : vector<64xf32>
    %99 = vector.multi_reduction <add>, %98, %cst_32 [1] : vector<64x64xf32> to vector<64xf32>
    %100 = vector.shape_cast %99 : vector<64xf32> to vector<64x1xf32>
    %101 = tpu.reciprocal %100 {approx = true} : vector<64x1xf32> -> vector<64x1xf32>
    %102 = vector.broadcast %101 : vector<64x1xf32> to vector<64x64xf32>
    %103 = arith.mulf %98, %102 : vector<64x64xf32>
    %104 = arith.truncf %103 : vector<64x64xf32> to vector<64x64xbf16>
    %105 = vector.extract_strided_slice %36 {offsets = [0, 96], sizes = [64, 32], strides = [1, 1]} : vector<128x128xbf16> to vector<64x32xbf16>
    %cst_33 = arith.constant dense<0.000000e+00> : vector<64x32xf32>
    %106 = tpu.matmul %104, %105, %cst_33 {dimension_numbers = #tpu.dot_dimension_numbers<[1], [0], [0], [1], [0, 0, 1, 1], [], []>} : vector<64x64xbf16>, vector<64x32xbf16>, vector<64x32xf32> -> vector<64x32xf32>
    %107 = arith.truncf %106 : vector<64x32xf32> to vector<64x32xbf16>
    %c0_34 = arith.constant 0 : index
    %c96 = arith.constant 96 : index
    %108 = vector.load %arg15[%c0_34, %c96] : memref<128x128xbf16, #tpu.memory_space<vmem>>, vector<64x32xbf16>
    tpu.vector_store %arg15[%c0_34, %c96], %107 {strides = array<i32>} : memref<128x128xbf16, #tpu.memory_space<vmem>>, vector<64x32xbf16>,
    %109 = vector.extract_strided_slice %32 {offsets = [64, 0], sizes = [64, 32], strides = [1, 1]} : vector<128x128xbf16> to vector<64x32xbf16>
    %110 = vector.extract_strided_slice %34 {offsets = [64, 0], sizes = [64, 32], strides = [1, 1]} : vector<128x128xbf16> to vector<64x32xbf16>
    %cst_35 = arith.constant dense<0.000000e+00> : vector<64x64xf32>
    %111 = tpu.matmul %109, %110, %cst_35 {dimension_numbers = #tpu.dot_dimension_numbers<[1], [1], [0], [0], [0, 0, 1, 0], [], []>} : vector<64x32xbf16>, vector<64x32xbf16>, vector<64x64xf32> -> vector<64x64xf32>
    %cst_36 = arith.constant dense<0xFF800000> : vector<64xf32>
    %112 = vector.multi_reduction <maximumf>, %111, %cst_36 [1] : vector<64x64xf32> to vector<64xf32>
    %113 = vector.shape_cast %112 : vector<64xf32> to vector<64x1xf32>
    %114 = vector.broadcast %113 : vector<64x1xf32> to vector<64x64xf32>
    %115 = arith.subf %111, %114 : vector<64x64xf32>
    %116 = math.exp %115 : vector<64x64xf32>
    %cst_37 = arith.constant dense<0.000000e+00> : vector<64xf32>
    %117 = vector.multi_reduction <add>, %116, %cst_37 [1] : vector<64x64xf32> to vector<64xf32>
    %118 = vector.shape_cast %117 : vector<64xf32> to vector<64x1xf32>
    %119 = tpu.reciprocal %118 {approx = true} : vector<64x1xf32> -> vector<64x1xf32>
    %120 = vector.broadcast %119 : vector<64x1xf32> to vector<64x64xf32>
    %121 = arith.mulf %116, %120 : vector<64x64xf32>
    %122 = arith.truncf %121 : vector<64x64xf32> to vector<64x64xbf16>
    %123 = vector.extract_strided_slice %36 {offsets = [64, 0], sizes = [64, 32], strides = [1, 1]} : vector<128x128xbf16> to vector<64x32xbf16>
    %cst_38 = arith.constant dense<0.000000e+00> : vector<64x32xf32>
    %124 = tpu.matmul %122, %123, %cst_38 {dimension_numbers = #tpu.dot_dimension_numbers<[1], [0], [0], [1], [0, 0, 1, 1], [], []>} : vector<64x64xbf16>, vector<64x32xbf16>, vector<64x32xf32> -> vector<64x32xf32>
    %125 = arith.truncf %124 : vector<64x32xf32> to vector<64x32xbf16>
    %c64_39 = arith.constant 64 : index
    %c0_40 = arith.constant 0 : index
    %126 = vector.load %arg15[%c64_39, %c0_40] : memref<128x128xbf16, #tpu.memory_space<vmem>>, vector<64x32xbf16>
    tpu.vector_store %arg15[%c64_39, %c0_40], %125 {strides = array<i32>} : memref<128x128xbf16, #tpu.memory_space<vmem>>, vector<64x32xbf16>,
    %127 = vector.extract_strided_slice %32 {offsets = [64, 32], sizes = [64, 32], strides = [1, 1]} : vector<128x128xbf16> to vector<64x32xbf16>
    %128 = vector.extract_strided_slice %34 {offsets = [64, 32], sizes = [64, 32], strides = [1, 1]} : vector<128x128xbf16> to vector<64x32xbf16>
    %cst_41 = arith.constant dense<0.000000e+00> : vector<64x64xf32>
    %129 = tpu.matmul %127, %128, %cst_41 {dimension_numbers = #tpu.dot_dimension_numbers<[1], [1], [0], [0], [0, 0, 1, 0], [], []>} : vector<64x32xbf16>, vector<64x32xbf16>, vector<64x64xf32> -> vector<64x64xf32>
    %cst_42 = arith.constant dense<0xFF800000> : vector<64xf32>
    %130 = vector.multi_reduction <maximumf>, %129, %cst_42 [1] : vector<64x64xf32> to vector<64xf32>
    %131 = vector.shape_cast %130 : vector<64xf32> to vector<64x1xf32>
    %132 = vector.broadcast %131 : vector<64x1xf32> to vector<64x64xf32>
    %133 = arith.subf %129, %132 : vector<64x64xf32>
    %134 = math.exp %133 : vector<64x64xf32>
    %cst_43 = arith.constant dense<0.000000e+00> : vector<64xf32>
    %135 = vector.multi_reduction <add>, %134, %cst_43 [1] : vector<64x64xf32> to vector<64xf32>
    %136 = vector.shape_cast %135 : vector<64xf32> to vector<64x1xf32>
    %137 = tpu.reciprocal %136 {approx = true} : vector<64x1xf32> -> vector<64x1xf32>
    %138 = vector.broadcast %137 : vector<64x1xf32> to vector<64x64xf32>
    %139 = arith.mulf %134, %138 : vector<64x64xf32>
    %140 = arith.truncf %139 : vector<64x64xf32> to vector<64x64xbf16>
    %141 = vector.extract_strided_slice %36 {offsets = [64, 32], sizes = [64, 32], strides = [1, 1]} : vector<128x128xbf16> to vector<64x32xbf16>
    %cst_44 = arith.constant dense<0.000000e+00> : vector<64x32xf32>
    %142 = tpu.matmul %140, %141, %cst_44 {dimension_numbers = #tpu.dot_dimension_numbers<[1], [0], [0], [1], [0, 0, 1, 1], [], []>} : vector<64x64xbf16>, vector<64x32xbf16>, vector<64x32xf32> -> vector<64x32xf32>
    %143 = arith.truncf %142 : vector<64x32xf32> to vector<64x32xbf16>
    %c64_45 = arith.constant 64 : index
    %c32_46 = arith.constant 32 : index
    %144 = vector.load %arg15[%c64_45, %c32_46] : memref<128x128xbf16, #tpu.memory_space<vmem>>, vector<64x32xbf16>
    tpu.vector_store %arg15[%c64_45, %c32_46], %143 {strides = array<i32>} : memref<128x128xbf16, #tpu.memory_space<vmem>>, vector<64x32xbf16>,
    %145 = vector.extract_strided_slice %32 {offsets = [64, 64], sizes = [64, 32], strides = [1, 1]} : vector<128x128xbf16> to vector<64x32xbf16>
    %146 = vector.extract_strided_slice %34 {offsets = [64, 64], sizes = [64, 32], strides = [1, 1]} : vector<128x128xbf16> to vector<64x32xbf16>
    %cst_47 = arith.constant dense<0.000000e+00> : vector<64x64xf32>
    %147 = tpu.matmul %145, %146, %cst_47 {dimension_numbers = #tpu.dot_dimension_numbers<[1], [1], [0], [0], [0, 0, 1, 0], [], []>} : vector<64x32xbf16>, vector<64x32xbf16>, vector<64x64xf32> -> vector<64x64xf32>
    %cst_48 = arith.constant dense<0xFF800000> : vector<64xf32>
    %148 = vector.multi_reduction <maximumf>, %147, %cst_48 [1] : vector<64x64xf32> to vector<64xf32>
    %149 = vector.shape_cast %148 : vector<64xf32> to vector<64x1xf32>
    %150 = vector.broadcast %149 : vector<64x1xf32> to vector<64x64xf32>
    %151 = arith.subf %147, %150 : vector<64x64xf32>
    %152 = math.exp %151 : vector<64x64xf32>
    %cst_49 = arith.constant dense<0.000000e+00> : vector<64xf32>
    %153 = vector.multi_reduction <add>, %152, %cst_49 [1] : vector<64x64xf32> to vector<64xf32>
    %154 = vector.shape_cast %153 : vector<64xf32> to vector<64x1xf32>
    %155 = tpu.reciprocal %154 {approx = true} : vector<64x1xf32> -> vector<64x1xf32>
    %156 = vector.broadcast %155 : vector<64x1xf32> to vector<64x64xf32>
    %157 = arith.mulf %152, %156 : vector<64x64xf32>
    %158 = arith.truncf %157 : vector<64x64xf32> to vector<64x64xbf16>
    %159 = vector.extract_strided_slice %36 {offsets = [64, 64], sizes = [64, 32], strides = [1, 1]} : vector<128x128xbf16> to vector<64x32xbf16>
    %cst_50 = arith.constant dense<0.000000e+00> : vector<64x32xf32>
    %160 = tpu.matmul %158, %159, %cst_50 {dimension_numbers = #tpu.dot_dimension_numbers<[1], [0], [0], [1], [0, 0, 1, 1], [], []>} : vector<64x64xbf16>, vector<64x32xbf16>, vector<64x32xf32> -> vector<64x32xf32>
    %161 = arith.truncf %160 : vector<64x32xf32> to vector<64x32xbf16>
    %c64_51 = arith.constant 64 : index
    %c64_52 = arith.constant 64 : index
    %162 = vector.load %arg15[%c64_51, %c64_52] : memref<128x128xbf16, #tpu.memory_space<vmem>>, vector<64x32xbf16>
    tpu.vector_store %arg15[%c64_51, %c64_52], %161 {strides = array<i32>} : memref<128x128xbf16, #tpu.memory_space<vmem>>, vector<64x32xbf16>,
    %163 = vector.extract_strided_slice %32 {offsets = [64, 96], sizes = [64, 32], strides = [1, 1]} : vector<128x128xbf16> to vector<64x32xbf16>
    %164 = vector.extract_strided_slice %34 {offsets = [64, 96], sizes = [64, 32], strides = [1, 1]} : vector<128x128xbf16> to vector<64x32xbf16>
    %cst_53 = arith.constant dense<0.000000e+00> : vector<64x64xf32>
    %165 = tpu.matmul %163, %164, %cst_53 {dimension_numbers = #tpu.dot_dimension_numbers<[1], [1], [0], [0], [0, 0, 1, 0], [], []>} : vector<64x32xbf16>, vector<64x32xbf16>, vector<64x64xf32> -> vector<64x64xf32>
    %cst_54 = arith.constant dense<0xFF800000> : vector<64xf32>
    %166 = vector.multi_reduction <maximumf>, %165, %cst_54 [1] : vector<64x64xf32> to vector<64xf32>
    %167 = vector.shape_cast %166 : vector<64xf32> to vector<64x1xf32>
    %168 = vector.broadcast %167 : vector<64x1xf32> to vector<64x64xf32>
    %169 = arith.subf %165, %168 : vector<64x64xf32>
    %170 = math.exp %169 : vector<64x64xf32>
    %cst_55 = arith.constant dense<0.000000e+00> : vector<64xf32>
    %171 = vector.multi_reduction <add>, %170, %cst_55 [1] : vector<64x64xf32> to vector<64xf32>
    %172 = vector.shape_cast %171 : vector<64xf32> to vector<64x1xf32>
    %173 = tpu.reciprocal %172 {approx = true} : vector<64x1xf32> -> vector<64x1xf32>
    %174 = vector.broadcast %173 : vector<64x1xf32> to vector<64x64xf32>
    %175 = arith.mulf %170, %174 : vector<64x64xf32>
    %176 = arith.truncf %175 : vector<64x64xf32> to vector<64x64xbf16>
    %177 = vector.extract_strided_slice %36 {offsets = [64, 96], sizes = [64, 32], strides = [1, 1]} : vector<128x128xbf16> to vector<64x32xbf16>
    %cst_56 = arith.constant dense<0.000000e+00> : vector<64x32xf32>
    %178 = tpu.matmul %176, %177, %cst_56 {dimension_numbers = #tpu.dot_dimension_numbers<[1], [0], [0], [1], [0, 0, 1, 1], [], []>} : vector<64x64xbf16>, vector<64x32xbf16>, vector<64x32xf32> -> vector<64x32xf32>
    %179 = arith.truncf %178 : vector<64x32xf32> to vector<64x32xbf16>
    %c64_57 = arith.constant 64 : index
    %c96_58 = arith.constant 96 : index
    %180 = vector.load %arg15[%c64_57, %c96_58] : memref<128x128xbf16, #tpu.memory_space<vmem>>, vector<64x32xbf16>
    tpu.vector_store %arg15[%c64_57, %c96_58], %179 {strides = array<i32>} : memref<128x128xbf16, #tpu.memory_space<vmem>>, vector<64x32xbf16>,
    %c0_59 = arith.constant 0 : index
    %c0_60 = arith.constant 0 : index
    %181 = vector.load %arg15[%c0_59, %c0_60] : memref<128x128xbf16, #tpu.memory_space<vmem>>, vector<128x128xbf16>
    %c0_61 = arith.constant 0 : index
    %c0_62 = arith.constant 0 : index
    %182 = vector.load %arg6[%c0_61, %c0_62] : memref<128x128xbf16, #tpu.memory_space<vmem>>, vector<128x128xbf16>
    %cst_63 = arith.constant dense<0.000000e+00> : vector<128x128xf32>
    %183 = tpu.matmul %181, %182, %cst_63 {dimension_numbers = #tpu.dot_dimension_numbers<[1], [0], [0], [1], [0, 0, 1, 1], [], []>} : vector<128x128xbf16>, vector<128x128xbf16>, vector<128x128xf32> -> vector<128x128xf32>
    %c0_64 = arith.constant 0 : index
    %c0_65 = arith.constant 0 : index
    %184 = vector.load %arg7[%c0_64, %c0_65] : memref<1x128xf32, #tpu.memory_space<vmem>>, vector<1x128xf32>
    %185 = vector.broadcast %184 : vector<1x128xf32> to vector<128x128xf32>
    %186 = arith.addf %183, %185 : vector<128x128xf32>
    %187 = arith.addf %186, %0 : vector<128x128xf32>
    %c0_66 = arith.constant 0 : index
    %c0_67 = arith.constant 0 : index
    %188 = vector.load %arg8[%c0_66, %c0_67] : memref<1x128xf32, #tpu.memory_space<vmem>>, vector<1x128xf32>
    %c0_68 = arith.constant 0 : index
    %c0_69 = arith.constant 0 : index
    %189 = vector.load %arg9[%c0_68, %c0_69] : memref<1x128xf32, #tpu.memory_space<vmem>>, vector<1x128xf32>
    %cst_70 = arith.constant dense<0.000000e+00> : vector<128xf32>
    %190 = vector.multi_reduction <add>, %187, %cst_70 [1] : vector<128x128xf32> to vector<128xf32>
    %191 = vector.shape_cast %190 : vector<128xf32> to vector<128x1xf32>
    %cst_71 = arith.constant 1.280000e+02 : f32
    %192 = vector.broadcast %cst_71 : f32 to vector<128x1xf32>
    %193 = arith.divf %191, %192 : vector<128x1xf32>
    %194 = vector.broadcast %193 : vector<128x1xf32> to vector<128x128xf32>
    %195 = arith.subf %187, %194 : vector<128x128xf32>
    %196 = arith.mulf %195, %195 : vector<128x128xf32>
    %cst_72 = arith.constant dense<0.000000e+00> : vector<128xf32>
    %197 = vector.multi_reduction <add>, %196, %cst_72 [1] : vector<128x128xf32> to vector<128xf32>
    %198 = vector.shape_cast %197 : vector<128xf32> to vector<128x1xf32>
    %cst_73 = arith.constant 1.280000e+02 : f32
    %199 = vector.broadcast %cst_73 : f32 to vector<128x1xf32>
    %200 = arith.divf %198, %199 : vector<128x1xf32>
    %201 = vector.broadcast %193 : vector<128x1xf32> to vector<128x128xf32>
    %202 = arith.subf %187, %201 : vector<128x128xf32>
    %cst_74 = arith.constant 9.99999974E-6 : f32
    %203 = vector.broadcast %cst_74 : f32 to vector<128x1xf32>
    %204 = arith.addf %200, %203 : vector<128x1xf32>
    %205 = math.rsqrt %204 : vector<128x1xf32>
    %206 = vector.broadcast %205 : vector<128x1xf32> to vector<128x128xf32>
    %207 = arith.mulf %202, %206 : vector<128x128xf32>
    %208 = vector.broadcast %188 : vector<1x128xf32> to vector<128x128xf32>
    %209 = arith.mulf %207, %208 : vector<128x128xf32>
    %210 = vector.broadcast %189 : vector<1x128xf32> to vector<128x128xf32>
    %211 = arith.addf %209, %210 : vector<128x128xf32>
    %212 = arith.truncf %211 : vector<128x128xf32> to vector<128x128xbf16>
    %c0_75 = arith.constant 0 : index
    %c0_76 = arith.constant 0 : index
    %213 = vector.load %arg10[%c0_75, %c0_76] : memref<128x128xbf16, #tpu.memory_space<vmem>>, vector<128x128xbf16>
    %cst_77 = arith.constant dense<0.000000e+00> : vector<128x128xf32>
    %214 = tpu.matmul %212, %213, %cst_77 {dimension_numbers = #tpu.dot_dimension_numbers<[1], [0], [0], [1], [0, 0, 1, 1], [], []>} : vector<128x128xbf16>, vector<128x128xbf16>, vector<128x128xf32> -> vector<128x128xf32>
    %c0_78 = arith.constant 0 : index
    %c0_79 = arith.constant 0 : index
    %215 = vector.load %arg11[%c0_78, %c0_79] : memref<1x128xf32, #tpu.memory_space<vmem>>, vector<1x128xf32>
    %216 = vector.broadcast %215 : vector<1x128xf32> to vector<128x128xf32>
    %217 = arith.addf %214, %216 : vector<128x128xf32>
    %cst_80 = arith.constant 5.000000e-01 : f32
    %218 = vector.broadcast %cst_80 : f32 to vector<128x128xf32>
    %219 = arith.mulf %218, %217 : vector<128x128xf32>
    %cst_81 = arith.constant 0.707106769 : f32
    %220 = vector.broadcast %cst_81 : f32 to vector<128x128xf32>
    %221 = arith.mulf %217, %220 : vector<128x128xf32>
    %222 = math.absf %221 : vector<128x128xf32>
    %cst_82 = arith.constant 0.327591091 : f32
    %223 = vector.broadcast %cst_82 : f32 to vector<128x128xf32>
    %224 = arith.mulf %223, %222 : vector<128x128xf32>
    %cst_83 = arith.constant 1.000000e+00 : f32
    %225 = vector.broadcast %cst_83 : f32 to vector<128x128xf32>
    %226 = arith.addf %225, %224 : vector<128x128xf32>
    %cst_84 = arith.constant 1.000000e+00 : f32
    %227 = vector.broadcast %cst_84 : f32 to vector<128x128xf32>
    %228 = arith.divf %227, %226 : vector<128x128xf32>
    %cst_85 = arith.constant 1.06140542 : f32
    %229 = vector.broadcast %cst_85 : f32 to vector<128x128xf32>
    %230 = arith.mulf %229, %228 : vector<128x128xf32>
    %cst_86 = arith.constant -1.45315206 : f32
    %231 = vector.broadcast %cst_86 : f32 to vector<128x128xf32>
    %232 = arith.addf %230, %231 : vector<128x128xf32>
    %233 = arith.mulf %232, %228 : vector<128x128xf32>
    %cst_87 = arith.constant 1.42141378 : f32
    %234 = vector.broadcast %cst_87 : f32 to vector<128x128xf32>
    %235 = arith.addf %233, %234 : vector<128x128xf32>
    %236 = arith.mulf %235, %228 : vector<128x128xf32>
    %cst_88 = arith.constant -0.284496725 : f32
    %237 = vector.broadcast %cst_88 : f32 to vector<128x128xf32>
    %238 = arith.addf %236, %237 : vector<128x128xf32>
    %239 = arith.mulf %238, %228 : vector<128x128xf32>
    %cst_89 = arith.constant 0.254829586 : f32
    %240 = vector.broadcast %cst_89 : f32 to vector<128x128xf32>
    %241 = arith.addf %239, %240 : vector<128x128xf32>
    %242 = arith.mulf %241, %228 : vector<128x128xf32>
    %cst_90 = arith.constant 0.000000e+00 : f32
    %243 = vector.broadcast %cst_90 : f32 to vector<128x128xf32>
    %244 = arith.subf %243, %222 : vector<128x128xf32>
    %245 = arith.mulf %244, %222 : vector<128x128xf32>
    %246 = math.exp %245 : vector<128x128xf32>
    %247 = arith.mulf %242, %246 : vector<128x128xf32>
    %cst_91 = arith.constant 1.000000e+00 : f32
    %248 = vector.broadcast %cst_91 : f32 to vector<128x128xf32>
    %249 = arith.subf %248, %247 : vector<128x128xf32>
    %cst_92 = arith.constant 0.000000e+00 : f32
    %250 = vector.broadcast %cst_92 : f32 to vector<128x128xf32>
    %251 = arith.cmpf oge, %221, %250 : vector<128x128xf32>
    %cst_93 = arith.constant 0.000000e+00 : f32
    %252 = vector.broadcast %cst_93 : f32 to vector<128x128xf32>
    %253 = arith.subf %252, %249 : vector<128x128xf32>
    %254 = arith.select %251, %249, %253 : vector<128x128xi1>, vector<128x128xf32>
    %cst_94 = arith.constant 1.000000e+00 : f32
    %255 = vector.broadcast %cst_94 : f32 to vector<128x128xf32>
    %256 = arith.addf %255, %254 : vector<128x128xf32>
    %257 = arith.mulf %219, %256 : vector<128x128xf32>
    %258 = arith.truncf %257 : vector<128x128xf32> to vector<128x128xbf16>
    %c0_95 = arith.constant 0 : index
    %c0_96 = arith.constant 0 : index
    %259 = vector.load %arg12[%c0_95, %c0_96] : memref<128x128xbf16, #tpu.memory_space<vmem>>, vector<128x128xbf16>
    %cst_97 = arith.constant dense<0.000000e+00> : vector<128x128xf32>
    %260 = tpu.matmul %258, %259, %cst_97 {dimension_numbers = #tpu.dot_dimension_numbers<[1], [0], [0], [1], [0, 0, 1, 1], [], []>} : vector<128x128xbf16>, vector<128x128xbf16>, vector<128x128xf32> -> vector<128x128xf32>
    %c0_98 = arith.constant 0 : index
    %c0_99 = arith.constant 0 : index
    %261 = vector.load %arg13[%c0_98, %c0_99] : memref<1x128xf32, #tpu.memory_space<vmem>>, vector<1x128xf32>
    %262 = vector.broadcast %261 : vector<1x128xf32> to vector<128x128xf32>
    %263 = arith.addf %260, %262 : vector<128x128xf32>
    %264 = arith.addf %263, %187 : vector<128x128xf32>
    %c0_100 = arith.constant 0 : index
    %c0_101 = arith.constant 0 : index
    %265 = vector.load %arg14[%c0_100, %c0_101] : memref<128x128xf32, #tpu.memory_space<vmem>>, vector<128x128xf32>
    tpu.vector_store %arg14[%c0_100, %c0_101], %264 {strides = array<i32>} : memref<128x128xf32, #tpu.memory_space<vmem>>, vector<128x128xf32>,
    return
  }
  func.func @transform_0(%arg0: i32) -> (i32, i32) {
    %c0_i32 = arith.constant 0 : i32
    %c0_i32_0 = arith.constant 0 : i32
    return %arg0, %c0_i32 : i32, i32
  }
  func.func @transform_1(%arg0: i32) -> (i32, i32) {
    %c0_i32 = arith.constant 0 : i32
    %c0_i32_0 = arith.constant 0 : i32
    %c0_i32_1 = arith.constant 0 : i32
    return %c0_i32, %c0_i32_0 : i32, i32
  }
  func.func @transform_2(%arg0: i32) -> (i32, i32) {
    %c0_i32 = arith.constant 0 : i32
    %c0_i32_0 = arith.constant 0 : i32
    %c0_i32_1 = arith.constant 0 : i32
    return %c0_i32, %c0_i32_0 : i32, i32
  }
  func.func @transform_3(%arg0: i32) -> (i32, i32) {
    %c0_i32 = arith.constant 0 : i32
    %c0_i32_0 = arith.constant 0 : i32
    %c0_i32_1 = arith.constant 0 : i32
    return %c0_i32, %c0_i32_0 : i32, i32
  }
  func.func @transform_4(%arg0: i32) -> (i32, i32) {
    %c0_i32 = arith.constant 0 : i32
    %c0_i32_0 = arith.constant 0 : i32
    %c0_i32_1 = arith.constant 0 : i32
    return %c0_i32, %c0_i32_0 : i32, i32
  }
  func.func @transform_5(%arg0: i32) -> (i32, i32) {
    %c0_i32 = arith.constant 0 : i32
    %c0_i32_0 = arith.constant 0 : i32
    %c0_i32_1 = arith.constant 0 : i32
    return %c0_i32, %c0_i32_0 : i32, i32
  }
  func.func @transform_6(%arg0: i32) -> (i32, i32) {
    %c0_i32 = arith.constant 0 : i32
    %c0_i32_0 = arith.constant 0 : i32
    %c0_i32_1 = arith.constant 0 : i32
    return %c0_i32, %c0_i32_0 : i32, i32
  }
  func.func @transform_7(%arg0: i32) -> (i32, i32) {
    %c0_i32 = arith.constant 0 : i32
    %c0_i32_0 = arith.constant 0 : i32
    %c0_i32_1 = arith.constant 0 : i32
    return %c0_i32, %c0_i32_0 : i32, i32
  }
  func.func @transform_8(%arg0: i32) -> (i32, i32) {
    %c0_i32 = arith.constant 0 : i32
    %c0_i32_0 = arith.constant 0 : i32
    %c0_i32_1 = arith.constant 0 : i32
    return %c0_i32, %c0_i32_0 : i32, i32
  }
  func.func @transform_9(%arg0: i32) -> (i32, i32) {
    %c0_i32 = arith.constant 0 : i32
    %c0_i32_0 = arith.constant 0 : i32
    %c0_i32_1 = arith.constant 0 : i32
    return %c0_i32, %c0_i32_0 : i32, i32
  }
  func.func @transform_10(%arg0: i32) -> (i32, i32) {
    %c0_i32 = arith.constant 0 : i32
    %c0_i32_0 = arith.constant 0 : i32
    %c0_i32_1 = arith.constant 0 : i32
    return %c0_i32, %c0_i32_0 : i32, i32
  }
  func.func @transform_11(%arg0: i32) -> (i32, i32) {
    %c0_i32 = arith.constant 0 : i32
    %c0_i32_0 = arith.constant 0 : i32
    %c0_i32_1 = arith.constant 0 : i32
    return %c0_i32, %c0_i32_0 : i32, i32
  }
  func.func @transform_12(%arg0: i32) -> (i32, i32) {
    %c0_i32 = arith.constant 0 : i32
    %c0_i32_0 = arith.constant 0 : i32
    %c0_i32_1 = arith.constant 0 : i32
    return %c0_i32, %c0_i32_0 : i32, i32
  }
  func.func @transform_13(%arg0: i32) -> (i32, i32) {
    %c0_i32 = arith.constant 0 : i32
    %c0_i32_0 = arith.constant 0 : i32
    return %arg0, %c0_i32 : i32, i32
  }
}

</mosaic_0001>

<llo_original>
// kernel: tpu_custom_call.1
$region0: #{tpu_custom_call.1}
  #allocation0 [shape = 'u32[]', space=smem, size = 0x4, offset = 0x4, fixed_abs, tag = 'smem constant byte address 0x4 - core index']
  #allocation1 [shape = 'u32[144,128]{1,0:T(1,128)}', space=vmem, size = 0x12000, scoped, tag = 'internal scratch']
  #allocation2 [shape = 'bf16[128,128]{1,0:T(16,128)(2,1)}', space=vmem, size = 0x8000, scoped, tag = 'scratch operand']
  %s0 = inlined_call_operand.hbm [shape: f32[256,128], index: 0, kind: input, shape index: {}]
  %s1 = inlined_call_operand.vmem [shape: f32[1,128], index: 1, kind: input, shape index: {}]
  %s2 = inlined_call_operand.vmem [shape: f32[1,128], index: 2, kind: input, shape index: {}]
  %s3 = inlined_call_operand.hbm [shape: bf16[128,384], index: 3, kind: input, shape index: {}]
  %s4 = inlined_call_operand.vmem [shape: f32[1,384], index: 4, kind: input, shape index: {}]
  %s5 = inlined_call_operand.hbm [shape: bf16[128,128], index: 5, kind: input, shape index: {}]
  %s6 = inlined_call_operand.vmem [shape: f32[1,128], index: 6, kind: input, shape index: {}]
  %s7 = inlined_call_operand.vmem [shape: f32[1,128], index: 7, kind: input, shape index: {}]
  %s8 = inlined_call_operand.vmem [shape: f32[1,128], index: 8, kind: input, shape index: {}]
  %s9 = inlined_call_operand.hbm [shape: bf16[128,128], index: 9, kind: input, shape index: {}]
  %s10 = inlined_call_operand.vmem [shape: f32[1,128], index: 10, kind: input, shape index: {}]
  %s11 = inlined_call_operand.hbm [shape: bf16[128,128], index: 11, kind: input, shape index: {}]
  %s12 = inlined_call_operand.vmem [shape: f32[1,128], index: 12, kind: input, shape index: {}]
  %s13 = inlined_call_operand.hbm [shape: f32[256,128], index: 13, kind: output, shape index: {}]
  %s14 = sld [smem:[#allocation0]]
  $region105: #{tpu_custom_call.1} parent=0
    _
  %s16 = ssub.s32 1, %s14
  %s17 = scalar_select 0, %s16, %s14
  $region1: #{tpu_custom_call.1} parent=0
    #allocation3 [shape = 'u8[131072]{0}', space=vmem, size = 0x20000, scoped, tag = 'input window, operand 0']
    #allocation4 [shape = 's32[2]{0}', space=sflag, size = 0x8, scoped, tag = 'scoped memory for tpu_custom_call.1']
    #allocation5 [shape = 's32[2]{0}', space=sflag, size = 0x8, scoped, tag = 'scoped memory for tpu_custom_call.1']
    #allocation6 [shape = 'u8[98304]{0}', space=vmem, size = 0x18000, scoped, tag = 'input window, operand 3, single buffered']
    #allocation7 [shape = 's32[1]{0}', space=sflag, size = 0x4, scoped, tag = 'scoped memory for tpu_custom_call.1']
    #allocation8 [shape = 'u8[32768]{0}', space=vmem, size = 0x8000, scoped, tag = 'input window, operand 5, single buffered']
    #allocation9 [shape = 'u8[32768]{0}', space=vmem, size = 0x8000, scoped, tag = 'input window, operand 9, single buffered']
    #allocation10 [shape = 's32[1]{0}', space=sflag, size = 0x4, scoped, tag = 'scoped memory for tpu_custom_call.1']
    #allocation11 [shape = 'u8[32768]{0}', space=vmem, size = 0x8000, scoped, tag = 'input window, operand 11, single buffered']
    #allocation12 [shape = 'u8[131072]{0}', space=vmem, size = 0x20000, scoped, tag = 'output window, operand 0']
    %18 = vsyncpa [#allocation4], 0
    %s19 = scalar_lea.sflag [#allocation4], 1
    %20 = vsyncpa %s19, 0
    %21 = vsyncpa [#allocation7], 0
    %22 = vsyncpa [#allocation10], 0
    %23 = vsyncpa [#allocation5], 0
    %s24 = scalar_lea.sflag [#allocation5], 1
    %25 = vsyncpa %s24, 0
    loop: start=0, step=1, limit=4
    $region2: #{tpu_custom_call.1} parent=1 // loop_pre_header
      _
    $region3: #{tpu_custom_call.1} parent=1 // loop_header
      %s27 = sphi 0, %s31
      %p28 = scmp.ge.s32.totalorder %s27, 4
      %s37 = sphi 0, %s39
      %s40 = sphi 0, %s37
      %s41 = sphi 0, %s40
      %s57 = sphi 0, %s41
      %s61 = sphi 0, %s61
      %s63 = sphi 0, %s61
      %s64 = sphi 0, %s63
      %s78 = sphi 0, %s64
      %s82 = sphi 0, %s82
      %s84 = sphi 0, %s82
      %s85 = sphi 0, %s84
      %s99 = sphi 0, %s85
      %s103 = sphi 0, %s103
      %s105 = sphi 0, %s103
      %s106 = sphi 0, %s105
      %s120 = sphi 0, %s106
      %s124 = sphi 0, %s124
      %s126 = sphi 0, %s124
      %s127 = sphi 0, %s126
      %s141 = sphi 0, %s127
      %s145 = sphi 0, %s145
      %s147 = sphi 0, %s145
      %s148 = sphi 0, %s147
      %s162 = sphi 0, %s148
      %s166 = sphi 0, %s166
      %s168 = sphi 0, %s166
      %s169 = sphi 0, %s168
      %s183 = sphi 0, %s169
      %s187 = sphi 0, %s187
      %s189 = sphi 0, %s187
      %s190 = sphi 0, %s189
      %s204 = sphi 0, %s190
      %s208 = sphi 0, %s208
      %s210 = sphi 0, %s208
      %s211 = sphi 0, %s210
      %s225 = sphi 0, %s211
      %s229 = sphi 0, %s229
      %s231 = sphi 0, %s229
      %s232 = sphi 0, %s231
      %s246 = sphi 0, %s232
      %s250 = sphi 0, %s250
      %s252 = sphi 0, %s250
      %s253 = sphi 0, %s252
      %s267 = sphi 0, %s253
      %s271 = sphi 0, %s271
      %s273 = sphi 0, %s271
      %s274 = sphi 0, %s273
      %s288 = sphi 0, %s274
      %s292 = sphi 0, %s292
      %s294 = sphi 0, %s292
      %s295 = sphi 0, %s294
      %s309 = sphi 0, %s295
      %s315 = sphi 0, %s317
      %s318 = sphi 0, %s315
      %s319 = sphi 0, %s318
      %s335 = sphi 0, %s319
    $region4: #{tpu_custom_call.1} parent=1 // loop_header_branch
      %30 = sbr.rel (%p28) target = $region8
    $region5: #{tpu_custom_call.1} parent=1 // loop_body
      %s32 = ssub.s32 %s27, 1
      %s33 = ssub.s32 %s27, 2
      %s34 = sadd.s32 %s27, 1
      %s35 = ssub.s32 %s27, %s34
      %p36 = scmp.eq.s32.totalorder %s35, 0
      %s38 = sadd.s32 %s37, 1
      %s39 = scalar_select %p36, %s37, %s38
      %p42 = pneg %p36
      %p43 = scmp.eq.s32.totalorder %s27, 1
      %p44 = por %p42, %p43
      %p45 = scmp.ne.s32.totalorder %s37, %s40
      %p46 = scmp.eq.s32.totalorder %s27, 0
      %p47 = por %p45, %p46
      %p48 = scmp.ne.s32.totalorder %s37, %s40
      %p49 = scmp.eq.s32.totalorder %s32, 1
      %p50 = por %p48, %p49
      %p51 = scmp.ne.s32.totalorder %s40, %s41
      %p52 = scmp.eq.s32.totalorder %s32, 0
      %p53 = por %p51, %p52
      %p54 = scmp.ne.s32.totalorder %s40, %s41
      %p55 = scmp.eq.s32.totalorder %s33, 1
      %p56 = por %p54, %p55
      %p58 = scmp.ne.s32.totalorder %s41, %s57
      %p59 = scmp.eq.s32.totalorder %s33, 0
      %p60 = por %p58, %p59
      %s62 = sadd.s32 %s61, 1
      %p65 = scmp.eq.s32.totalorder %s27, 1
      %p66 = scmp.ne.s32.totalorder %s61, %s63
      %p67 = scmp.eq.s32.totalorder %s27, 0
      %p68 = por %p66, %p67
      %p69 = scmp.ne.s32.totalorder %s61, %s63
      %p70 = scmp.eq.s32.totalorder %s32, 1
      %p71 = por %p69, %p70
      %p72 = scmp.ne.s32.totalorder %s63, %s64
      %p73 = scmp.eq.s32.totalorder %s32, 0
      %p74 = por %p72, %p73
      %p75 = scmp.ne.s32.totalorder %s63, %s64
      %p76 = scmp.eq.s32.totalorder %s33, 1
      %p77 = por %p75, %p76
      %p79 = scmp.ne.s32.totalorder %s64, %s78
      %p80 = scmp.eq.s32.totalorder %s33, 0
      %p81 = por %p79, %p80
      %s83 = sadd.s32 %s82, 1
      %p86 = scmp.eq.s32.totalorder %s27, 1
      %p87 = scmp.ne.s32.totalorder %s82, %s84
      %p88 = scmp.eq.s32.totalorder %s27, 0
      %p89 = por %p87, %p88
      %p90 = scmp.ne.s32.totalorder %s82, %s84
      %p91 = scmp.eq.s32.totalorder %s32, 1
      %p92 = por %p90, %p91
      %p93 = scmp.ne.s32.totalorder %s84, %s85
      %p94 = scmp.eq.s32.totalorder %s32, 0
      %p95 = por %p93, %p94
      %p96 = scmp.ne.s32.totalorder %s84, %s85
      %p97 = scmp.eq.s32.totalorder %s33, 1
      %p98 = por %p96, %p97
      %p100 = scmp.ne.s32.totalorder %s85, %s99
      %p101 = scmp.eq.s32.totalorder %s33, 0
      %p102 = por %p100, %p101
      %s104 = sadd.s32 %s103, 1
      %p107 = scmp.eq.s32.totalorder %s27, 1
      %p108 = scmp.ne.s32.totalorder %s103, %s105
      %p109 = scmp.eq.s32.totalorder %s27, 0
      %p110 = por %p108, %p109
      %p111 = scmp.ne.s32.totalorder %s103, %s105
      %p112 = scmp.eq.s32.totalorder %s32, 1
      %p113 = por %p111, %p112
      %p114 = scmp.ne.s32.totalorder %s105, %s106
      %p115 = scmp.eq.s32.totalorder %s32, 0
      %p116 = por %p114, %p115
      %p117 = scmp.ne.s32.totalorder %s105, %s106
      %p118 = scmp.eq.s32.totalorder %s33, 1
      %p119 = por %p117, %p118
      %p121 = scmp.ne.s32.totalorder %s106, %s120
      %p122 = scmp.eq.s32.totalorder %s33, 0
      %p123 = por %p121, %p122
      %s125 = sadd.s32 %s124, 1
      %p128 = scmp.eq.s32.totalorder %s27, 1
      %p129 = scmp.ne.s32.totalorder %s124, %s126
      %p130 = scmp.eq.s32.totalorder %s27, 0
      %p131 = por %p129, %p130
      %p132 = scmp.ne.s32.totalorder %s124, %s126
      %p133 = scmp.eq.s32.totalorder %s32, 1
      %p134 = por %p132, %p133
      %p135 = scmp.ne.s32.totalorder %s126, %s127
      %p136 = scmp.eq.s32.totalorder %s32, 0
      %p137 = por %p135, %p136
      %p138 = scmp.ne.s32.totalorder %s126, %s127
      %p139 = scmp.eq.s32.totalorder %s33, 1
      %p140 = por %p138, %p139
      %p142 = scmp.ne.s32.totalorder %s127, %s141
      %p143 = scmp.eq.s32.totalorder %s33, 0
      %p144 = por %p142, %p143
      %s146 = sadd.s32 %s145, 1
      %p149 = scmp.eq.s32.totalorder %s27, 1
      %p150 = scmp.ne.s32.totalorder %s145, %s147
      %p151 = scmp.eq.s32.totalorder %s27, 0
      %p152 = por %p150, %p151
      %p153 = scmp.ne.s32.totalorder %s145, %s147
      %p154 = scmp.eq.s32.totalorder %s32, 1
      %p155 = por %p153, %p154
      %p156 = scmp.ne.s32.totalorder %s147, %s148
      %p157 = scmp.eq.s32.totalorder %s32, 0
      %p158 = por %p156, %p157
      %p159 = scmp.ne.s32.totalorder %s147, %s148
      %p160 = scmp.eq.s32.totalorder %s33, 1
      %p161 = por %p159, %p160
      %p163 = scmp.ne.s32.totalorder %s148, %s162
      %p164 = scmp.eq.s32.totalorder %s33, 0
      %p165 = por %p163, %p164
      %s167 = sadd.s32 %s166, 1
      %p170 = scmp.eq.s32.totalorder %s27, 1
      %p171 = scmp.ne.s32.totalorder %s166, %s168
      %p172 = scmp.eq.s32.totalorder %s27, 0
      %p173 = por %p171, %p172
      %p174 = scmp.ne.s32.totalorder %s166, %s168
      %p175 = scmp.eq.s32.totalorder %s32, 1
      %p176 = por %p174, %p175
      %p177 = scmp.ne.s32.totalorder %s168, %s169
      %p178 = scmp.eq.s32.totalorder %s32, 0
      %p179 = por %p177, %p178
      %p180 = scmp.ne.s32.totalorder %s168, %s169
      %p181 = scmp.eq.s32.totalorder %s33, 1
      %p182 = por %p180, %p181
      %p184 = scmp.ne.s32.totalorder %s169, %s183
      %p185 = scmp.eq.s32.totalorder %s33, 0
      %p186 = por %p184, %p185
      %s188 = sadd.s32 %s187, 1
      %p191 = scmp.eq.s32.totalorder %s27, 1
      %p192 = scmp.ne.s32.totalorder %s187, %s189
      %p193 = scmp.eq.s32.totalorder %s27, 0
      %p194 = por %p192, %p193
      %p195 = scmp.ne.s32.totalorder %s187, %s189
      %p196 = scmp.eq.s32.totalorder %s32, 1
      %p197 = por %p195, %p196
      %p198 = scmp.ne.s32.totalorder %s189, %s190
      %p199 = scmp.eq.s32.totalorder %s32, 0
      %p200 = por %p198, %p199
      %p201 = scmp.ne.s32.totalorder %s189, %s190
      %p202 = scmp.eq.s32.totalorder %s33, 1
      %p203 = por %p201, %p202
      %p205 = scmp.ne.s32.totalorder %s190, %s204
      %p206 = scmp.eq.s32.totalorder %s33, 0
      %p207 = por %p205, %p206
      %s209 = sadd.s32 %s208, 1
      %p212 = scmp.eq.s32.totalorder %s27, 1
      %p213 = scmp.ne.s32.totalorder %s208, %s210
      %p214 = scmp.eq.s32.totalorder %s27, 0
      %p215 = por %p213, %p214
      %p216 = scmp.ne.s32.totalorder %s208, %s210
      %p217 = scmp.eq.s32.totalorder %s32, 1
      %p218 = por %p216, %p217
      %p219 = scmp.ne.s32.totalorder %s210, %s211
      %p220 = scmp.eq.s32.totalorder %s32, 0
      %p221 = por %p219, %p220
      %p222 = scmp.ne.s32.totalorder %s210, %s211
      %p223 = scmp.eq.s32.totalorder %s33, 1
      %p224 = por %p222, %p223
      %p226 = scmp.ne.s32.totalorder %s211, %s225
      %p227 = scmp.eq.s32.totalorder %s33, 0
      %p228 = por %p226, %p227
      %s230 = sadd.s32 %s229, 1
      %p233 = scmp.eq.s32.totalorder %s27, 1
      %p234 = scmp.ne.s32.totalorder %s229, %s231
      %p235 = scmp.eq.s32.totalorder %s27, 0
      %p236 = por %p234, %p235
      %p237 = scmp.ne.s32.totalorder %s229, %s231
      %p238 = scmp.eq.s32.totalorder %s32, 1
      %p239 = por %p237, %p238
      %p240 = scmp.ne.s32.totalorder %s231, %s232
      %p241 = scmp.eq.s32.totalorder %s32, 0
      %p242 = por %p240, %p241
      %p243 = scmp.ne.s32.totalorder %s231, %s232
      %p244 = scmp.eq.s32.totalorder %s33, 1
      %p245 = por %p243, %p244
      %p247 = scmp.ne.s32.totalorder %s232, %s246
      %p248 = scmp.eq.s32.totalorder %s33, 0
      %p249 = por %p247, %p248
      %s251 = sadd.s32 %s250, 1
      %p254 = scmp.eq.s32.totalorder %s27, 1
      %p255 = scmp.ne.s32.totalorder %s250, %s252
      %p256 = scmp.eq.s32.totalorder %s27, 0
      %p257 = por %p255, %p256
      %p258 = scmp.ne.s32.totalorder %s250, %s252
      %p259 = scmp.eq.s32.totalorder %s32, 1
      %p260 = por %p258, %p259
      %p261 = scmp.ne.s32.totalorder %s252, %s253
      %p262 = scmp.eq.s32.totalorder %s32, 0
      %p263 = por %p261, %p262
      %p264 = scmp.ne.s32.totalorder %s252, %s253
      %p265 = scmp.eq.s32.totalorder %s33, 1
      %p266 = por %p264, %p265
      %p268 = scmp.ne.s32.totalorder %s253, %s267
      %p269 = scmp.eq.s32.totalorder %s33, 0
      %p270 = por %p268, %p269
      %s272 = sadd.s32 %s271, 1
      %p275 = scmp.eq.s32.totalorder %s27, 1
      %p276 = scmp.ne.s32.totalorder %s271, %s273
      %p277 = scmp.eq.s32.totalorder %s27, 0
      %p278 = por %p276, %p277
      %p279 = scmp.ne.s32.totalorder %s271, %s273
      %p280 = scmp.eq.s32.totalorder %s32, 1
      %p281 = por %p279, %p280
      %p282 = scmp.ne.s32.totalorder %s273, %s274
      %p283 = scmp.eq.s32.totalorder %s32, 0
      %p284 = por %p282, %p283
      %p285 = scmp.ne.s32.totalorder %s273, %s274
      %p286 = scmp.eq.s32.totalorder %s33, 1
      %p287 = por %p285, %p286
      %p289 = scmp.ne.s32.totalorder %s274, %s288
      %p290 = scmp.eq.s32.totalorder %s33, 0
      %p291 = por %p289, %p290
      %s293 = sadd.s32 %s292, 1
      %p296 = scmp.eq.s32.totalorder %s27, 1
      %p297 = scmp.ne.s32.totalorder %s292, %s294
      %p298 = scmp.eq.s32.totalorder %s27, 0
      %p299 = por %p297, %p298
      %p300 = scmp.ne.s32.totalorder %s292, %s294
      %p301 = scmp.eq.s32.totalorder %s32, 1
      %p302 = por %p300, %p301
      %p303 = scmp.ne.s32.totalorder %s294, %s295
      %p304 = scmp.eq.s32.totalorder %s32, 0
      %p305 = por %p303, %p304
      %p306 = scmp.ne.s32.totalorder %s294, %s295
      %p307 = scmp.eq.s32.totalorder %s33, 1
      %p308 = por %p306, %p307
      %p310 = scmp.ne.s32.totalorder %s295, %s309
      %p311 = scmp.eq.s32.totalorder %s33, 0
      %p312 = por %p310, %p311
      %s313 = ssub.s32 %s27, %s34
      %p314 = scmp.eq.s32.totalorder %s313, 0
      %s316 = sadd.s32 %s315, 1
      %s317 = scalar_select %p314, %s315, %s316
      %p320 = pneg %p314
      %p321 = scmp.eq.s32.totalorder %s27, 1
      %p322 = por %p320, %p321
      %p323 = scmp.ne.s32.totalorder %s315, %s318
      %p324 = scmp.eq.s32.totalorder %s27, 0
      %p325 = por %p323, %p324
      %p326 = scmp.ne.s32.totalorder %s315, %s318
      %p327 = scmp.eq.s32.totalorder %s32, 1
      %p328 = por %p326, %p327
      %p329 = scmp.ne.s32.totalorder %s318, %s319
      %p330 = scmp.eq.s32.totalorder %s32, 0
      %p331 = por %p329, %p330
      %p332 = scmp.ne.s32.totalorder %s318, %s319
      %p333 = scmp.eq.s32.totalorder %s33, 1
      %p334 = por %p332, %p333
      %p336 = scmp.ne.s32.totalorder %s319, %s335
      %p337 = scmp.eq.s32.totalorder %s33, 0
      %p338 = por %p336, %p337
      %p339 = scmp.le.s32.totalorder 1, %s27
      %p340 = scmp.lt.s32.totalorder %s27, 3
      %p341 = pnand %p339, %p340
      %p342 = pneg %p341
      // Predicated region
      $region9: #{tpu_custom_call.1} parent=5 // pred_check
        _
      $region10: #{tpu_custom_call.1} parent=5 // pred_check_branch
        %344 = sbr.rel (%p341) target = $region12
      $region11: #{tpu_custom_call.1} parent=5 // pred_region
        %s345 = ssub.s32 %s27, 1
        // Predicated region
        $region13: #{tpu_custom_call.1} parent=11 // pred_check
          %p346 = pneg %p74
        $region14: #{tpu_custom_call.1} parent=11 // pred_check_branch
          %348 = sbr.rel (%p346) target = $region16
        $region15: #{tpu_custom_call.1} parent=11 // pred_region
          _
        $region16: #{tpu_custom_call.1} parent=11 // pred_fallthru
          _
        // Predicated region
        $region17: #{tpu_custom_call.1} parent=11 // pred_check
          %p349 = pneg %p95
        $region18: #{tpu_custom_call.1} parent=11 // pred_check_branch
          %351 = sbr.rel (%p349) target = $region20
        $region19: #{tpu_custom_call.1} parent=11 // pred_region
          _
        $region20: #{tpu_custom_call.1} parent=11 // pred_fallthru
          _
        // Predicated region
        $region21: #{tpu_custom_call.1} parent=11 // pred_check
          %p352 = pneg %p116
        $region22: #{tpu_custom_call.1} parent=11 // pred_check_branch
          %354 = sbr.rel (%p352) target = $region24
        $region23: #{tpu_custom_call.1} parent=11 // pred_region
          %s356 = ssub.s32 3072, 3072
          %357 = vsyncadd [#allocation7], %s356
          %s358 = sshll.u32 [#allocation6], 4
          %s359 = int_to_ptr.vmem [resolvable:$true] %s358
          %364 = dma.hbm_to_vmem [thread:$0]  %s3, 3072, %s359, [#allocation7], 192, 192, 12
        $region24: #{tpu_custom_call.1} parent=11 // pred_fallthru
          _
        // Predicated region
        $region25: #{tpu_custom_call.1} parent=11 // pred_check
          %p365 = pneg %p137
        $region26: #{tpu_custom_call.1} parent=11 // pred_check_branch
          %367 = sbr.rel (%p365) target = $region28
        $region27: #{tpu_custom_call.1} parent=11 // pred_region
          _
        $region28: #{tpu_custom_call.1} parent=11 // pred_fallthru
          _
        // Predicated region
        $region29: #{tpu_custom_call.1} parent=11 // pred_check
          %p368 = pneg %p158
        $region30: #{tpu_custom_call.1} parent=11 // pred_check_branch
          %370 = sbr.rel (%p368) target = $region32
        $region31: #{tpu_custom_call.1} parent=11 // pred_region
          %s372 = ssub.s32 1024, 1024
          %373 = vsyncadd [#allocation7], %s372
          %s374 = sshll.u32 [#allocation8], 4
          %s375 = int_to_ptr.vmem [resolvable:$true] %s374
          %380 = dma.hbm_to_vmem [thread:$0]  %s5, 1024, %s375, [#allocation7], 64, 64, 4
        $region32: #{tpu_custom_call.1} parent=11 // pred_fallthru
          _
        // Predicated region
        $region33: #{tpu_custom_call.1} parent=11 // pred_check
          %p381 = pneg %p179
        $region34: #{tpu_custom_call.1} parent=11 // pred_check_branch
          %383 = sbr.rel (%p381) target = $region36
        $region35: #{tpu_custom_call.1} parent=11 // pred_region
          _
        $region36: #{tpu_custom_call.1} parent=11 // pred_fallthru
          _
        // Predicated region
        $region37: #{tpu_custom_call.1} parent=11 // pred_check
          %p384 = pneg %p200
        $region38: #{tpu_custom_call.1} parent=11 // pred_check_branch
          %386 = sbr.rel (%p384) target = $region40
        $region39: #{tpu_custom_call.1} parent=11 // pred_region
          _
        $region40: #{tpu_custom_call.1} parent=11 // pred_fallthru
          _
        // Predicated region
        $region41: #{tpu_custom_call.1} parent=11 // pred_check
          %p387 = pneg %p221
        $region42: #{tpu_custom_call.1} parent=11 // pred_check_branch
          %389 = sbr.rel (%p387) target = $region44
        $region43: #{tpu_custom_call.1} parent=11 // pred_region
          _
        $region44: #{tpu_custom_call.1} parent=11 // pred_fallthru
          _
        // Predicated region
        $region45: #{tpu_custom_call.1} parent=11 // pred_check
          %p390 = pneg %p242
        $region46: #{tpu_custom_call.1} parent=11 // pred_check_branch
          %392 = sbr.rel (%p390) target = $region48
        $region47: #{tpu_custom_call.1} parent=11 // pred_region
          %s394 = ssub.s32 1024, 1024
          %395 = vsyncadd [#allocation10], %s394
          %s396 = sshll.u32 [#allocation9], 4
          %s397 = int_to_ptr.vmem [resolvable:$true] %s396
          %402 = dma.hbm_to_vmem [thread:$0]  %s9, 1024, %s397, [#allocation10], 64, 64, 4
        $region48: #{tpu_custom_call.1} parent=11 // pred_fallthru
          _
        // Predicated region
        $region49: #{tpu_custom_call.1} parent=11 // pred_check
          %p403 = pneg %p263
        $region50: #{tpu_custom_call.1} parent=11 // pred_check_branch
          %405 = sbr.rel (%p403) target = $region52
        $region51: #{tpu_custom_call.1} parent=11 // pred_region
          _
        $region52: #{tpu_custom_call.1} parent=11 // pred_fallthru
          _
        // Predicated region
        $region53: #{tpu_custom_call.1} parent=11 // pred_check
          %p406 = pneg %p284
        $region54: #{tpu_custom_call.1} parent=11 // pred_check_branch
          %408 = sbr.rel (%p406) target = $region56
        $region55: #{tpu_custom_call.1} parent=11 // pred_region
          %s410 = ssub.s32 1024, 1024
          %411 = vsyncadd [#allocation10], %s410
          %s412 = sshll.u32 [#allocation11], 4
          %s413 = int_to_ptr.vmem [resolvable:$true] %s412
          %418 = dma.hbm_to_vmem [thread:$0]  %s11, 1024, %s413, [#allocation10], 64, 64, 4
        $region56: #{tpu_custom_call.1} parent=11 // pred_fallthru
          _
        // Predicated region
        $region57: #{tpu_custom_call.1} parent=11 // pred_check
          %p419 = pneg %p305
        $region58: #{tpu_custom_call.1} parent=11 // pred_check_branch
          %421 = sbr.rel (%p419) target = $region60
        $region59: #{tpu_custom_call.1} parent=11 // pred_region
          _
        $region60: #{tpu_custom_call.1} parent=11 // pred_fallthru
          _
      $region12: #{tpu_custom_call.1} parent=5 // pred_fallthru
        _
      %p422 = scmp.lt.s32.totalorder %s27, 2
      // Predicated region
      $region61: #{tpu_custom_call.1} parent=5 // pred_check
        %p423 = pneg %p422
      $region62: #{tpu_custom_call.1} parent=5 // pred_check_branch
        %425 = sbr.rel (%p423) target = $region64
      $region63: #{tpu_custom_call.1} parent=5 // pred_region
        // Predicated region
        $region65: #{tpu_custom_call.1} parent=63 // pred_check
          %p426 = pneg %p47
        $region66: #{tpu_custom_call.1} parent=63 // pred_check_branch
          %428 = sbr.rel (%p426) target = $region68
        $region67: #{tpu_custom_call.1} parent=63 // pred_region
          %s429 = sand.u32 %s37, 1
          %s430 = scalar_lea.sflag [#allocation4], %s429
          %s431 = sand.u32 %s37, 1
          %s432 = smul.addr %s431, 128
          %s433 = scalar_lea.vmem [#allocation3], %s432
          %s434 = smul.u32 16, %s27
          %s436 = ssub.s32 2048, 2048
          %437 = vsyncadd %s430, %s436
          %s438 = smul.addr %s434, 128
          %s439 = scalar_lea.hbm %s0, %s438
          %s440 = sshll.u32 %s433, 4
          %s441 = int_to_ptr.vmem [resolvable:$true] %s440
          %446 = dma.hbm_to_vmem [thread:$0]  %s439, 2048, %s441, %s430, 128, 128, 8
        $region68: #{tpu_custom_call.1} parent=63 // pred_fallthru
          _
      $region64: #{tpu_custom_call.1} parent=5 // pred_fallthru
        _
      %p447 = scmp.le.s32.totalorder 1, %s27
      %p448 = scmp.lt.s32.totalorder %s27, 3
      %p449 = pnand %p447, %p448
      %p450 = pneg %p449
      // Predicated region
      $region69: #{tpu_custom_call.1} parent=5 // pred_check
        _
      $region70: #{tpu_custom_call.1} parent=5 // pred_check_branch
        %452 = sbr.rel (%p449) target = $region72
      $region71: #{tpu_custom_call.1} parent=5 // pred_region
        %s453 = ssub.s32 %s27, 1
        %s454 = sand.u32 %s40, 1
        %s455 = scalar_lea.sflag [#allocation4], %s454
        %s456 = sand.u32 %s40, 1
        %s457 = smul.addr %s456, 128
        %s458 = scalar_lea.vmem [#allocation3], %s457
        // Predicated region
        $region73: #{tpu_custom_call.1} parent=71 // pred_check
          %p459 = pneg %p53
        $region74: #{tpu_custom_call.1} parent=71 // pred_check_branch
          %461 = sbr.rel (%p459) target = $region76
        $region75: #{tpu_custom_call.1} parent=71 // pred_region
          %462 = dma.done %s455, 2048
        $region76: #{tpu_custom_call.1} parent=71 // pred_fallthru
          _
        // Predicated region
        $region77: #{tpu_custom_call.1} parent=71 // pred_check
          %p463 = pneg %p116
        $region78: #{tpu_custom_call.1} parent=71 // pred_check_branch
          %465 = sbr.rel (%p463) target = $region80
        $region79: #{tpu_custom_call.1} parent=71 // pred_region
          %466 = dma.done [#allocation7], 3072
        $region80: #{tpu_custom_call.1} parent=71 // pred_fallthru
          _
        // Predicated region
        $region81: #{tpu_custom_call.1} parent=71 // pred_check
          %p467 = pneg %p158
        $region82: #{tpu_custom_call.1} parent=71 // pred_check_branch
          %469 = sbr.rel (%p467) target = $region84
        $region83: #{tpu_custom_call.1} parent=71 // pred_region
          %470 = dma.done [#allocation7], 1024
        $region84: #{tpu_custom_call.1} parent=71 // pred_fallthru
          _
        // Predicated region
        $region85: #{tpu_custom_call.1} parent=71 // pred_check
          %p471 = pneg %p242
        $region86: #{tpu_custom_call.1} parent=71 // pred_check_branch
          %473 = sbr.rel (%p471) target = $region88
        $region87: #{tpu_custom_call.1} parent=71 // pred_region
          %474 = dma.done [#allocation10], 1024
        $region88: #{tpu_custom_call.1} parent=71 // pred_fallthru
          _
        // Predicated region
        $region89: #{tpu_custom_call.1} parent=71 // pred_check
          %p475 = pneg %p284
        $region90: #{tpu_custom_call.1} parent=71 // pred_check_branch
          %477 = sbr.rel (%p475) target = $region92
        $region91: #{tpu_custom_call.1} parent=71 // pred_region
          %478 = dma.done [#allocation10], 1024
        $region92: #{tpu_custom_call.1} parent=71 // pred_fallthru
          _
        %s479 = sand.u32 %s40, 1
        %s480 = scalar_lea.sflag [#allocation4], %s479
        %s481 = sand.u32 %s40, 1
        %s482 = smul.addr %s481, 128
        %s483 = scalar_lea.vmem [#allocation3], %s482
        %p484 = pneg %p53
        %p485 = pneg %p50
        %p486 = pneg %p74
        %p487 = pneg %p71
        %p488 = pneg %p95
        %p489 = pneg %p92
        %p490 = pneg %p116
        %p491 = pneg %p113
        %p492 = pneg %p137
        %p493 = pneg %p134
        %p494 = pneg %p158
        %p495 = pneg %p155
        %p496 = pneg %p179
        %p497 = pneg %p176
        %p498 = pneg %p200
        %p499 = pneg %p197
        %p500 = pneg %p221
        %p501 = pneg %p218
        %p502 = pneg %p242
        %p503 = pneg %p239
        %p504 = pneg %p263
        %p505 = pneg %p260
        %p506 = pneg %p284
        %p507 = pneg %p281
        %p508 = pneg %p305
        %p509 = pneg %p302
        %p510 = pneg %p331
        %p511 = pneg %p328
        %s512 = sand.u32 %s318, 1
        %s513 = scalar_lea.sflag [#allocation5], %s512
        %s514 = sand.u32 %s318, 1
        %s515 = smul.addr %s514, 128
        %s516 = scalar_lea.vmem [#allocation12], %s515
        %s517 = smul.u32 16, %s32
        %s518 = smul.u32 16, %s32
        %v520 = vld [vmem:[%s458] sm:$0xff]
        %v521 = vld [vmem:[%s458 + $0x8] sm:$0xff]
        %v522 = vld [vmem:[%s458 + $0x10] sm:$0xff]
        %v523 = vld [vmem:[%s458 + $0x18] sm:$0xff]
        %v524 = vld [vmem:[%s458 + $0x20] sm:$0xff]
        %v525 = vld [vmem:[%s458 + $0x28] sm:$0xff]
        %v526 = vld [vmem:[%s458 + $0x30] sm:$0xff]
        %v527 = vld [vmem:[%s458 + $0x38] sm:$0xff]
        %v528 = vld [vmem:[%s458 + $0x40] sm:$0xff]
        %v529 = vld [vmem:[%s458 + $0x48] sm:$0xff]
        %v530 = vld [vmem:[%s458 + $0x50] sm:$0xff]
        %v531 = vld [vmem:[%s458 + $0x58] sm:$0xff]
        %v532 = vld [vmem:[%s458 + $0x60] sm:$0xff]
        %v533 = vld [vmem:[%s458 + $0x68] sm:$0xff]
        %v534 = vld [vmem:[%s458 + $0x70] sm:$0xff]
        %v535 = vld [vmem:[%s458 + $0x78] sm:$0xff]
        %v536 = vld [vmem:[%s1] sm:$0x1]
        %v537 = vld [vmem:[%s2] sm:$0x1]
        %538 = vadd.xlane.f32.xlu0 %v520
        %v539 = vpop.xlane.xlu0 %538
        %540 = vadd.xlane.f32.xlu0 %v521
        %v541 = vpop.xlane.xlu0 %540
        %542 = vadd.xlane.f32.xlu0 %v522
        %v543 = vpop.xlane.xlu0 %542
        %544 = vadd.xlane.f32.xlu0 %v523
        %v545 = vpop.xlane.xlu0 %544
        %546 = vadd.xlane.f32.xlu0 %v524
        %v547 = vpop.xlane.xlu0 %546
        %548 = vadd.xlane.f32.xlu0 %v525
        %v549 = vpop.xlane.xlu0 %548
        %550 = vadd.xlane.f32.xlu0 %v526
        %v551 = vpop.xlane.xlu0 %550
        %552 = vadd.xlane.f32.xlu0 %v527
        %v553 = vpop.xlane.xlu0 %552
        %554 = vadd.xlane.f32.xlu0 %v528
        %v555 = vpop.xlane.xlu0 %554
        %556 = vadd.xlane.f32.xlu0 %v529
        %v557 = vpop.xlane.xlu0 %556
        %558 = vadd.xlane.f32.xlu0 %v530
        %v559 = vpop.xlane.xlu0 %558
        %560 = vadd.xlane.f32.xlu0 %v531
        %v561 = vpop.xlane.xlu0 %560
        %562 = vadd.xlane.f32.xlu0 %v532
        %v563 = vpop.xlane.xlu0 %562
        %564 = vadd.xlane.f32.xlu0 %v533
        %v565 = vpop.xlane.xlu0 %564
        %566 = vadd.xlane.f32.xlu0 %v534
        %v567 = vpop.xlane.xlu0 %566
        %568 = vadd.xlane.f32.xlu0 %v535
        %v569 = vpop.xlane.xlu0 %568
        %v570 = vrcp.pop 128.0
        %v571 = vmul.f32 %v539, %v570
        %v572 = vmul.f32 %v541, %v570
        %v573 = vmul.f32 %v543, %v570
        %v574 = vmul.f32 %v545, %v570
        %v575 = vmul.f32 %v547, %v570
        %v576 = vmul.f32 %v549, %v570
        %v577 = vmul.f32 %v551, %v570
        %v578 = vmul.f32 %v553, %v570
        %v579 = vmul.f32 %v555, %v570
        %v580 = vmul.f32 %v557, %v570
        %v581 = vmul.f32 %v559, %v570
        %v582 = vmul.f32 %v561, %v570
        %v583 = vmul.f32 %v563, %v570
        %v584 = vmul.f32 %v565, %v570
        %v585 = vmul.f32 %v567, %v570
        %v586 = vmul.f32 %v569, %v570
        %v587 = vsub.f32 %v520, %v571
        %v588 = vsub.f32 %v521, %v572
        %v589 = vsub.f32 %v522, %v573
        %v590 = vsub.f32 %v523, %v574
        %v591 = vsub.f32 %v524, %v575
        %v592 = vsub.f32 %v525, %v576
        %v593 = vsub.f32 %v526, %v577
        %v594 = vsub.f32 %v527, %v578
        %v595 = vsub.f32 %v528, %v579
        %v596 = vsub.f32 %v529, %v580
        %v597 = vsub.f32 %v530, %v581
        %v598 = vsub.f32 %v531, %v582
        %v599 = vsub.f32 %v532, %v583
        %v600 = vsub.f32 %v533, %v584
        %v601 = vsub.f32 %v534, %v585
        %v602 = vsub.f32 %v535, %v586
        %v603 = vmul.f32 %v587, %v587
        %v604 = vmul.f32 %v588, %v588
        %v605 = vmul.f32 %v589, %v589
        %v606 = vmul.f32 %v590, %v590
        %v607 = vmul.f32 %v591, %v591
        %v608 = vmul.f32 %v592, %v592
        %v609 = vmul.f32 %v593, %v593
        %v610 = vmul.f32 %v594, %v594
        %v611 = vmul.f32 %v595, %v595
        %v612 = vmul.f32 %v596, %v596
        %v613 = vmul.f32 %v597, %v597
        %v614 = vmul.f32 %v598, %v598
        %v615 = vmul.f32 %v599, %v599
        %v616 = vmul.f32 %v600, %v600
        %v617 = vmul.f32 %v601, %v601
        %v618 = vmul.f32 %v602, %v602
        %619 = vadd.xlane.f32.xlu0 %v603
        %v620 = vpop.xlane.xlu0 %619
        %621 = vadd.xlane.f32.xlu0 %v604
        %v622 = vpop.xlane.xlu0 %621
        %623 = vadd.xlane.f32.xlu0 %v605
        %v624 = vpop.xlane.xlu0 %623
        %625 = vadd.xlane.f32.xlu0 %v606
        %v626 = vpop.xlane.xlu0 %625
        %627 = vadd.xlane.f32.xlu0 %v607
        %v628 = vpop.xlane.xlu0 %627
        %629 = vadd.xlane.f32.xlu0 %v608
        %v630 = vpop.xlane.xlu0 %629
        %631 = vadd.xlane.f32.xlu0 %v609
        %v632 = vpop.xlane.xlu0 %631
        %633 = vadd.xlane.f32.xlu0 %v610
        %v634 = vpop.xlane.xlu0 %633
        %635 = vadd.xlane.f32.xlu0 %v611
        %v636 = vpop.xlane.xlu0 %635
        %637 = vadd.xlane.f32.xlu0 %v612
        %v638 = vpop.xlane.xlu0 %637
        %639 = vadd.xlane.f32.xlu0 %v613
        %v640 = vpop.xlane.xlu0 %639
        %641 = vadd.xlane.f32.xlu0 %v614
        %v642 = vpop.xlane.xlu0 %641
        %643 = vadd.xlane.f32.xlu0 %v615
        %v644 = vpop.xlane.xlu0 %643
        %645 = vadd.xlane.f32.xlu0 %v616
        %v646 = vpop.xlane.xlu0 %645
        %647 = vadd.xlane.f32.xlu0 %v617
        %v648 = vpop.xlane.xlu0 %647
        %649 = vadd.xlane.f32.xlu0 %v618
        %v650 = vpop.xlane.xlu0 %649
        %v651 = vmul.f32 %v620, %v570
        %v652 = vmul.f32 %v622, %v570
        %v653 = vmul.f32 %v624, %v570
        %v654 = vmul.f32 %v626, %v570
        %v655 = vmul.f32 %v628, %v570
        %v656 = vmul.f32 %v630, %v570
        %v657 = vmul.f32 %v632, %v570
        %v658 = vmul.f32 %v634, %v570
        %v659 = vmul.f32 %v636, %v570
        %v660 = vmul.f32 %v638, %v570
        %v661 = vmul.f32 %v640, %v570
        %v662 = vmul.f32 %v642, %v570
        %v663 = vmul.f32 %v644, %v570
        %v664 = vmul.f32 %v646, %v570
        %v665 = vmul.f32 %v648, %v570
        %v666 = vmul.f32 %v650, %v570
        %v667 = vadd.f32 %v651, 1e-05
        %v668 = vadd.f32 %v652, 1e-05
        %v669 = vadd.f32 %v653, 1e-05
        %v670 = vadd.f32 %v654, 1e-05
        %v671 = vadd.f32 %v655, 1e-05
        %v672 = vadd.f32 %v656, 1e-05
        %v673 = vadd.f32 %v657, 1e-05
        %v674 = vadd.f32 %v658, 1e-05
        %v675 = vadd.f32 %v659, 1e-05
        %v676 = vadd.f32 %v660, 1e-05
        %v677 = vadd.f32 %v661, 1e-05
        %v678 = vadd.f32 %v662, 1e-05
        %v679 = vadd.f32 %v663, 1e-05
        %v680 = vadd.f32 %v664, 1e-05
        %v681 = vadd.f32 %v665, 1e-05
        %v682 = vadd.f32 %v666, 1e-05
        %v683 = vrsqrt.pop %v667
        %v684 = vrsqrt.pop %v668
        %v685 = vrsqrt.pop %v669
        %v686 = vrsqrt.pop %v670
        %v687 = vrsqrt.pop %v671
        %v688 = vrsqrt.pop %v672
        %v689 = vrsqrt.pop %v673
        %v690 = vrsqrt.pop %v674
        %v691 = vrsqrt.pop %v675
        %v692 = vrsqrt.pop %v676
        %v693 = vrsqrt.pop %v677
        %v694 = vrsqrt.pop %v678
        %v695 = vrsqrt.pop %v679
        %v696 = vrsqrt.pop %v680
        %v697 = vrsqrt.pop %v681
        %v698 = vrsqrt.pop %v682
        %v699 = vmul.f32 %v587, %v683
        %v700 = vmul.f32 %v588, %v684
        %v701 = vmul.f32 %v589, %v685
        %v702 = vmul.f32 %v590, %v686
        %v703 = vmul.f32 %v591, %v687
        %v704 = vmul.f32 %v592, %v688
        %v705 = vmul.f32 %v593, %v689
        %v706 = vmul.f32 %v594, %v690
        %v707 = vmul.f32 %v595, %v691
        %v708 = vmul.f32 %v596, %v692
        %v709 = vmul.f32 %v597, %v693
        %v710 = vmul.f32 %v598, %v694
        %v711 = vmul.f32 %v599, %v695
        %v712 = vmul.f32 %v600, %v696
        %v713 = vmul.f32 %v601, %v697
        %v714 = vmul.f32 %v602, %v698
        %v716 = vlaneseq
        %v717 = vshrl.u32 %v716, 7
        %v718 = vsub.s32 0, %v717
        %v719 = vrot.slane %v536, %v718
        %v721 = vmul.f32 %v699, %v719
        %v722 = vmul.f32 %v700, %v719
        %v723 = vmul.f32 %v701, %v719
        %v724 = vmul.f32 %v702, %v719
        %v725 = vmul.f32 %v703, %v719
        %v726 = vmul.f32 %v704, %v719
        %v727 = vmul.f32 %v705, %v719
        %v728 = vmul.f32 %v706, %v719
        %v729 = vmul.f32 %v707, %v719
        %v730 = vmul.f32 %v708, %v719
        %v731 = vmul.f32 %v709, %v719
        %v732 = vmul.f32 %v710, %v719
        %v733 = vmul.f32 %v711, %v719
        %v734 = vmul.f32 %v712, %v719
        %v735 = vmul.f32 %v713, %v719
        %v736 = vmul.f32 %v714, %v719
        %v738 = vlaneseq
        %v739 = vshrl.u32 %v738, 7
        %v740 = vsub.s32 0, %v739
        %v741 = vrot.slane %v537, %v740
        %v743 = vadd.f32 %v721, %v741
        %v744 = vadd.f32 %v722, %v741
        %v745 = vadd.f32 %v723, %v741
        %v746 = vadd.f32 %v724, %v741
        %v747 = vadd.f32 %v725, %v741
        %v748 = vadd.f32 %v726, %v741
        %v749 = vadd.f32 %v727, %v741
        %v750 = vadd.f32 %v728, %v741
        %v751 = vadd.f32 %v729, %v741
        %v752 = vadd.f32 %v730, %v741
        %v753 = vadd.f32 %v731, %v741
        %v754 = vadd.f32 %v732, %v741
        %v755 = vadd.f32 %v733, %v741
        %v756 = vadd.f32 %v734, %v741
        %v757 = vadd.f32 %v735, %v741
        %v758 = vadd.f32 %v736, %v741
        %v759 = vpack.c.bf16 %v744, %v743
        %v760 = vpack.c.bf16 %v746, %v745
        %v761 = vpack.c.bf16 %v748, %v747
        %v762 = vpack.c.bf16 %v750, %v749
        %v763 = vpack.c.bf16 %v752, %v751
        %v764 = vpack.c.bf16 %v754, %v753
        %v765 = vpack.c.bf16 %v756, %v755
        %v766 = vpack.c.bf16 %v758, %v757
        %v767 = vld [vmem:[#allocation6] sm:$0xff]
        %v768 = vld [vmem:[#allocation6 + $0x8] sm:$0xf]
        %v769 = vld [vmem:[#allocation6 + $0xc] sm:$0xff]
        %v770 = vld [vmem:[#allocation6 + $0x14] sm:$0xf]
        %v771 = vld [vmem:[#allocation6 + $0x18] sm:$0xff]
        %v772 = vld [vmem:[#allocation6 + $0x20] sm:$0xf]
        %v773 = vld [vmem:[#allocation6 + $0x24] sm:$0xff]
        %v774 = vld [vmem:[#allocation6 + $0x2c] sm:$0xf]
        %v775 = vld [vmem:[#allocation6 + $0x30] sm:$0xff]
        %v776 = vld [vmem:[#allocation6 + $0x38] sm:$0xf]
        %v777 = vld [vmem:[#allocation6 + $0x3c] sm:$0xff]
        %v778 = vld [vmem:[#allocation6 + $0x44] sm:$0xf]
        %v779 = vld [vmem:[#allocation6 + $0x48] sm:$0xff]
        %v780 = vld [vmem:[#allocation6 + $0x50] sm:$0xf]
        %v781 = vld [vmem:[#allocation6 + $0x54] sm:$0xff]
        %v782 = vld [vmem:[#allocation6 + $0x5c] sm:$0xf]
        %v783 = vld [vmem:[#allocation6 + $0x60] sm:$0xff]
        %v784 = vld [vmem:[#allocation6 + $0x68] sm:$0xf]
        %v785 = vld [vmem:[#allocation6 + $0x6c] sm:$0xff]
        %v786 = vld [vmem:[#allocation6 + $0x74] sm:$0xf]
        %v787 = vld [vmem:[#allocation6 + $0x78] sm:$0xff]
        %v788 = vld [vmem:[#allocation6 + $0x80] sm:$0xf]
        %v789 = vld [vmem:[#allocation6 + $0x84] sm:$0xff]
        %v790 = vld [vmem:[#allocation6 + $0x8c] sm:$0xf]
        %v791 = vld [vmem:[#allocation6 + $0x90] sm:$0xff]
        %v792 = vld [vmem:[#allocation6 + $0x98] sm:$0xf]
        %v793 = vld [vmem:[#allocation6 + $0x9c] sm:$0xff]
        %v794 = vld [vmem:[#allocation6 + $0xa4] sm:$0xf]
        %v795 = vld [vmem:[#allocation6 + $0xa8] sm:$0xff]
        %v796 = vld [vmem:[#allocation6 + $0xb0] sm:$0xf]
        %v797 = vld [vmem:[#allocation6 + $0xb4] sm:$0xff]
        %v798 = vld [vmem:[#allocation6 + $0xbc] sm:$0xf]
        %v799 = vld [vmem:[%s4] sm:$0x7]
        %v801 = vlaneseq
        %v802 = vshrl.u32 %v801, 7
        %v803 = vsub.s32 0, %v802
        %v804 = vrot.slane %v799, %v803
        %v805 = vlaneseq
        %v806 = vshrl.u32 %v805, 7
        %v807 = vsub.s32 1, %v806
        %v808 = vrot.slane %v799, %v807
        %v809 = vlaneseq
        %v810 = vshrl.u32 %v809, 7
        %v811 = vsub.s32 2, %v810
        %v812 = vrot.slane %v799, %v811
        %v848 = vunpack.c.l.b16 %v767
        %v849 = vunpack.c.h.b16 %v767
        %v850 = vunpack.c.l.b16 %v768
        %v851 = vunpack.c.l.b16 %v769
        %v852 = vunpack.c.h.b16 %v769
        %v853 = vunpack.c.l.b16 %v770
        %v854 = vunpack.c.l.b16 %v771
        %v855 = vunpack.c.h.b16 %v771
        %v856 = vunpack.c.l.b16 %v772
        %v857 = vunpack.c.l.b16 %v773
        %v858 = vunpack.c.h.b16 %v773
        %v859 = vunpack.c.l.b16 %v774
        %v860 = vunpack.c.l.b16 %v775
        %v861 = vunpack.c.h.b16 %v775
        %v862 = vunpack.c.l.b16 %v776
        %v863 = vunpack.c.l.b16 %v777
        %v864 = vunpack.c.h.b16 %v777
        %v865 = vunpack.c.l.b16 %v778
        %v866 = vunpack.c.l.b16 %v779
        %v867 = vunpack.c.h.b16 %v779
        %v868 = vunpack.c.l.b16 %v780
        %v869 = vunpack.c.l.b16 %v781
        %v870 = vunpack.c.h.b16 %v781
        %v871 = vunpack.c.l.b16 %v782
        %v872 = vunpack.c.l.b16 %v783
        %v873 = vunpack.c.h.b16 %v783
        %v874 = vunpack.c.l.b16 %v784
        %v875 = vunpack.c.l.b16 %v785
        %v876 = vunpack.c.h.b16 %v785
        %v877 = vunpack.c.l.b16 %v786
        %v878 = vunpack.c.l.b16 %v787
        %v879 = vunpack.c.h.b16 %v787
        %v880 = vunpack.c.l.b16 %v788
        %v881 = vunpack.c.l.b16 %v789
        %v882 = vunpack.c.h.b16 %v789
        %v883 = vunpack.c.l.b16 %v790
        %v884 = vunpack.c.l.b16 %v791
        %v885 = vunpack.c.h.b16 %v791
        %v886 = vunpack.c.l.b16 %v792
        %v887 = vunpack.c.l.b16 %v793
        %v888 = vunpack.c.h.b16 %v793
        %v889 = vunpack.c.l.b16 %v794
        %v890 = vunpack.c.l.b16 %v795
        %v891 = vunpack.c.h.b16 %v795
        %v892 = vunpack.c.l.b16 %v796
        %v893 = vunpack.c.l.b16 %v797
        %v894 = vunpack.c.h.b16 %v797
        %v895 = vunpack.c.l.b16 %v798
        %v896 = vpack.c.b16 %v851, %v848
        %v897 = vpack.c.b16 %v852, %v849
        %v898 = vpack.c.b16 %v853, %v850
        %v899 = vpack.c.b16 %v857, %v854
        %v900 = vpack.c.b16 %v858, %v855
        %v901 = vpack.c.b16 %v859, %v856
        %v902 = vpack.c.b16 %v863, %v860
        %v903 = vpack.c.b16 %v864, %v861
        %v904 = vpack.c.b16 %v865, %v862
        %v905 = vpack.c.b16 %v869, %v866
        %v906 = vpack.c.b16 %v870, %v867
        %v907 = vpack.c.b16 %v871, %v868
        %v908 = vpack.c.b16 %v875, %v872
        %v909 = vpack.c.b16 %v876, %v873
        %v910 = vpack.c.b16 %v877, %v874
        %v911 = vpack.c.b16 %v881, %v878
        %v912 = vpack.c.b16 %v882, %v879
        %v913 = vpack.c.b16 %v883, %v880
        %v914 = vpack.c.b16 %v887, %v884
        %v915 = vpack.c.b16 %v888, %v885
        %v916 = vpack.c.b16 %v889, %v886
        %v917 = vpack.c.b16 %v893, %v890
        %v918 = vpack.c.b16 %v894, %v891
        %v919 = vpack.c.b16 %v895, %v892
        %944 = vmatprep.subr.bf16.mxu0 %v897
        %945 = vmatpush1.bf16.msra.mxu0 %v896
        %946 = vmatprep.subr.bf16.mxu0 %v900
        %947 = vmatpush1.bf16.msra.mxu0 %v899
        %948 = vmatprep.subr.bf16.mxu0 %v903
        %949 = vmatpush1.bf16.msra.mxu0 %v902
        %950 = vmatprep.subr.bf16.mxu0 %v906
        %951 = vmatpush1.bf16.msra.mxu0 %v905
        %952 = vmatprep.subr.bf16.mxu0 %v909
        %953 = vmatpush1.bf16.msra.mxu0 %v908
        %954 = vmatprep.subr.bf16.mxu0 %v912
        %955 = vmatpush1.bf16.msra.mxu0 %v911
        %956 = vmatprep.subr.bf16.mxu0 %v915
        %957 = vmatpush1.bf16.msra.mxu0 %v914
        %958 = vmatprep.subr.bf16.mxu0 %v918
        %959 = vmatpush1.bf16.msra.mxu0 %v917
        %960 = vmatprep.subr.bf16.mxu0 0
        %961 = vmatpush1.bf16.msra.mxu0 0
        %962 = vmatprep.subr.bf16.mxu0 0
        %963 = vmatpush1.bf16.msra.mxu0 0
        %964 = vmatprep.subr.bf16.mxu0 0
        %965 = vmatpush1.bf16.msra.mxu0 0
        %966 = vmatprep.subr.bf16.mxu0 0
        %967 = vmatpush1.bf16.msra.mxu0 0
        %968 = vmatprep.subr.bf16.mxu0 0
        %969 = vmatpush1.bf16.msra.mxu0 0
        %970 = vmatprep.subr.bf16.mxu0 0
        %971 = vmatpush1.bf16.msra.mxu0 0
        %972 = vmatprep.subr.bf16.mxu0 0
        %973 = vmatpush1.bf16.msra.mxu0 0
        %974 = vmatprep.subr.bf16.mxu0 0
        %975 = vmatpush1.bf16.msra.mxu0 0
        %976 = vmatprep.mubr.bf16.mxu0 0
        %977 = vmatmul.mubr.bf16.gmra.mrb[0].mxu0 %v759
        %v978 = vpop.f32.mrb[0].mxu0
        %v979 = vadd.f32 %v804, %v978
        %v980 = vpop.f32.mrb[0].mxu0
        %v981 = vadd.f32 %v808, %v980
        %v982 = vpop.f32.mrb[0].mxu0
        %v983 = vadd.f32 %v804, %v982
        %v984 = vpop.f32.mrb[0].mxu0
        %v985 = vadd.f32 %v808, %v984
        %986 = vmatprep.mubr.bf16.mxu0 0
        %987 = vmatmul.mubr.bf16.gmra.mrb[0].mxu0 %v760
        %v988 = vpop.f32.mrb[0].mxu0
        %v989 = vadd.f32 %v804, %v988
        %v990 = vpop.f32.mrb[0].mxu0
        %v991 = vadd.f32 %v808, %v990
        %v992 = vpop.f32.mrb[0].mxu0
        %v993 = vadd.f32 %v804, %v992
        %v994 = vpop.f32.mrb[0].mxu0
        %v995 = vadd.f32 %v808, %v994
        %996 = vmatprep.mubr.bf16.mxu0 0
        %997 = vmatmul.mubr.bf16.gmra.mrb[0].mxu0 %v761
        %v998 = vpop.f32.mrb[0].mxu0
        %v999 = vadd.f32 %v804, %v998
        %v1000 = vpop.f32.mrb[0].mxu0
        %v1001 = vadd.f32 %v808, %v1000
        %v1002 = vpop.f32.mrb[0].mxu0
        %v1003 = vadd.f32 %v804, %v1002
        %v1004 = vpop.f32.mrb[0].mxu0
        %v1005 = vadd.f32 %v808, %v1004
        %1006 = vmatprep.mubr.bf16.mxu0 0
        %1007 = vmatmul.mubr.bf16.gmra.mrb[0].mxu0 %v762
        %v1008 = vpop.f32.mrb[0].mxu0
        %v1009 = vadd.f32 %v804, %v1008
        %v1010 = vpop.f32.mrb[0].mxu0
        %v1011 = vadd.f32 %v808, %v1010
        %v1012 = vpop.f32.mrb[0].mxu0
        %v1013 = vadd.f32 %v804, %v1012
        %v1014 = vpop.f32.mrb[0].mxu0
        %v1015 = vadd.f32 %v808, %v1014
        %1016 = vmatprep.mubr.bf16.mxu0 0
        %1017 = vmatmul.mubr.bf16.gmra.mrb[0].mxu0 %v763
        %v1018 = vpop.f32.mrb[0].mxu0
        %v1019 = vadd.f32 %v804, %v1018
        %v1020 = vpop.f32.mrb[0].mxu0
        %v1021 = vadd.f32 %v808, %v1020
        %v1022 = vpop.f32.mrb[0].mxu0
        %v1023 = vadd.f32 %v804, %v1022
        %v1024 = vpop.f32.mrb[0].mxu0
        %v1025 = vadd.f32 %v808, %v1024
        %1026 = vmatprep.mubr.bf16.mxu0 0
        %1027 = vmatmul.mubr.bf16.gmra.mrb[0].mxu0 %v764
        %v1028 = vpop.f32.mrb[0].mxu0
        %v1029 = vadd.f32 %v804, %v1028
        %v1030 = vpop.f32.mrb[0].mxu0
        %v1031 = vadd.f32 %v808, %v1030
        %v1032 = vpop.f32.mrb[0].mxu0
        %v1033 = vadd.f32 %v804, %v1032
        %v1034 = vpop.f32.mrb[0].mxu0
        %v1035 = vadd.f32 %v808, %v1034
        %1036 = vmatprep.mubr.bf16.mxu0 0
        %1037 = vmatmul.mubr.bf16.gmra.mrb[0].mxu0 %v765
        %v1038 = vpop.f32.mrb[0].mxu0
        %v1039 = vadd.f32 %v804, %v1038
        %v1040 = vpop.f32.mrb[0].mxu0
        %v1041 = vadd.f32 %v808, %v1040
        %v1042 = vpop.f32.mrb[0].mxu0
        %v1043 = vadd.f32 %v804, %v1042
        %v1044 = vpop.f32.mrb[0].mxu0
        %v1045 = vadd.f32 %v808, %v1044
        %1046 = vmatprep.mubr.bf16.mxu0 0
        %1047 = vmatmul.mubr.bf16.gmra.mrb[0].mxu0 %v766
        %v1048 = vpop.f32.mrb[0].mxu0
        %v1049 = vadd.f32 %v804, %v1048
        %v1050 = vpop.f32.mrb[0].mxu0
        %v1051 = vadd.f32 %v808, %v1050
        %v1052 = vpop.f32.mrb[0].mxu0
        %v1053 = vadd.f32 %v804, %v1052
        %v1054 = vpop.f32.mrb[0].mxu0
        %v1055 = vadd.f32 %v808, %v1054
        %1056 = vdwg.mxu0
        %1057 = vmatprep.subr.bf16.mxu0 0
        %1058 = vmatpush1.bf16.msra.mxu0 %v898
        %1059 = vmatprep.subr.bf16.mxu0 0
        %1060 = vmatpush1.bf16.msra.mxu0 %v901
        %1061 = vmatprep.subr.bf16.mxu0 0
        %1062 = vmatpush1.bf16.msra.mxu0 %v904
        %1063 = vmatprep.subr.bf16.mxu0 0
        %1064 = vmatpush1.bf16.msra.mxu0 %v907
        %1065 = vmatprep.subr.bf16.mxu0 0
        %1066 = vmatpush1.bf16.msra.mxu0 %v910
        %1067 = vmatprep.subr.bf16.mxu0 0
        %1068 = vmatpush1.bf16.msra.mxu0 %v913
        %1069 = vmatprep.subr.bf16.mxu0 0
        %1070 = vmatpush1.bf16.msra.mxu0 %v916
        %1071 = vmatprep.subr.bf16.mxu0 0
        %1072 = vmatpush1.bf16.msra.mxu0 %v919
        %1073 = vmatprep.subr.bf16.mxu0 0
        %1074 = vmatpush1.bf16.msra.mxu0 0
        %1075 = vmatprep.subr.bf16.mxu0 0
        %1076 = vmatpush1.bf16.msra.mxu0 0
        %1077 = vmatprep.subr.bf16.mxu0 0
        %1078 = vmatpush1.bf16.msra.mxu0 0
        %1079 = vmatprep.subr.bf16.mxu0 0
        %1080 = vmatpush1.bf16.msra.mxu0 0
        %1081 = vmatprep.subr.bf16.mxu0 0
        %1082 = vmatpush1.bf16.msra.mxu0 0
        %1083 = vmatprep.subr.bf16.mxu0 0
        %1084 = vmatpush1.bf16.msra.mxu0 0
        %1085 = vmatprep.subr.bf16.mxu0 0
        %1086 = vmatpush1.bf16.msra.mxu0 0
        %1087 = vmatprep.subr.bf16.mxu0 0
        %1088 = vmatpush1.bf16.msra.mxu0 0
        %1089 = vmatprep.mubr.bf16.mxu0 0
        %1090 = vmatmul.mubr.bf16.gmra.mrb[0].mxu0 %v759
        %v1091 = vpop.f32.mrb[0].mxu0
        %v1092 = vadd.f32 %v812, %v1091
        %v1093 = vpop.f32.mrb[0].mxu0
        %v1094 = vpop.f32.mrb[0].mxu0
        %v1095 = vadd.f32 %v812, %v1094
        %v1096 = vpop.f32.mrb[0].mxu0
        %1097 = vmatprep.mubr.bf16.mxu0 0
        %1098 = vmatmul.mubr.bf16.gmra.mrb[0].mxu0 %v760
        %v1099 = vpop.f32.mrb[0].mxu0
        %v1100 = vadd.f32 %v812, %v1099
        %v1101 = vpop.f32.mrb[0].mxu0
        %v1102 = vpop.f32.mrb[0].mxu0
        %v1103 = vadd.f32 %v812, %v1102
        %v1104 = vpop.f32.mrb[0].mxu0
        %1105 = vmatprep.mubr.bf16.mxu0 0
        %1106 = vmatmul.mubr.bf16.gmra.mrb[0].mxu0 %v761
        %v1107 = vpop.f32.mrb[0].mxu0
        %v1108 = vadd.f32 %v812, %v1107
        %v1109 = vpop.f32.mrb[0].mxu0
        %v1110 = vpop.f32.mrb[0].mxu0
        %v1111 = vadd.f32 %v812, %v1110
        %v1112 = vpop.f32.mrb[0].mxu0
        %1113 = vmatprep.mubr.bf16.mxu0 0
        %1114 = vmatmul.mubr.bf16.gmra.mrb[0].mxu0 %v762
        %v1115 = vpop.f32.mrb[0].mxu0
        %v1116 = vadd.f32 %v812, %v1115
        %v1117 = vpop.f32.mrb[0].mxu0
        %v1118 = vpop.f32.mrb[0].mxu0
        %v1119 = vadd.f32 %v812, %v1118
        %v1120 = vpop.f32.mrb[0].mxu0
        %1121 = vmatprep.mubr.bf16.mxu0 0
        %1122 = vmatmul.mubr.bf16.gmra.mrb[0].mxu0 %v763
        %v1123 = vpop.f32.mrb[0].mxu0
        %v1124 = vadd.f32 %v812, %v1123
        %v1125 = vpop.f32.mrb[0].mxu0
        %v1126 = vpop.f32.mrb[0].mxu0
        %v1127 = vadd.f32 %v812, %v1126
        %v1128 = vpop.f32.mrb[0].mxu0
        %1129 = vmatprep.mubr.bf16.mxu0 0
        %1130 = vmatmul.mubr.bf16.gmra.mrb[0].mxu0 %v764
        %v1131 = vpop.f32.mrb[0].mxu0
        %v1132 = vadd.f32 %v812, %v1131
        %v1133 = vpop.f32.mrb[0].mxu0
        %v1134 = vpop.f32.mrb[0].mxu0
        %v1135 = vadd.f32 %v812, %v1134
        %v1136 = vpop.f32.mrb[0].mxu0
        %1137 = vmatprep.mubr.bf16.mxu0 0
        %1138 = vmatmul.mubr.bf16.gmra.mrb[0].mxu0 %v765
        %v1139 = vpop.f32.mrb[0].mxu0
        %v1140 = vadd.f32 %v812, %v1139
        %v1141 = vpop.f32.mrb[0].mxu0
        %v1142 = vpop.f32.mrb[0].mxu0
        %v1143 = vadd.f32 %v812, %v1142
        %v1144 = vpop.f32.mrb[0].mxu0
        %1145 = vmatprep.mubr.bf16.mxu0 0
        %1146 = vmatmul.mubr.bf16.gmra.mrb[0].mxu0 %v766
        %v1147 = vpop.f32.mrb[0].mxu0
        %v1148 = vadd.f32 %v812, %v1147
        %v1149 = vpop.f32.mrb[0].mxu0
        %v1150 = vpop.f32.mrb[0].mxu0
        %v1151 = vadd.f32 %v812, %v1150
        %v1152 = vpop.f32.mrb[0].mxu0
        %1153 = vdwg.mxu0
        %v1154 = vpack.c.bf16 %v983, %v979
        %v1155 = vpack.c.bf16 %v993, %v989
        %v1156 = vpack.c.bf16 %v1003, %v999
        %v1157 = vpack.c.bf16 %v1013, %v1009
        %v1158 = vpack.c.bf16 %v1023, %v1019
        %v1159 = vpack.c.bf16 %v1033, %v1029
        %v1160 = vpack.c.bf16 %v1043, %v1039
        %v1161 = vpack.c.bf16 %v1053, %v1049
        %v1162 = vpack.c.bf16 %v985, %v981
        %v1163 = vpack.c.bf16 %v995, %v991
        %v1164 = vpack.c.bf16 %v1005, %v1001
        %v1165 = vpack.c.bf16 %v1015, %v1011
        %v1166 = vpack.c.bf16 %v1025, %v1021
        %v1167 = vpack.c.bf16 %v1035, %v1031
        %v1168 = vpack.c.bf16 %v1045, %v1041
        %v1169 = vpack.c.bf16 %v1055, %v1051
        %v1170 = vpack.c.bf16 %v1095, %v1092
        %v1171 = vpack.c.bf16 %v1103, %v1100
        %v1172 = vpack.c.bf16 %v1111, %v1108
        %v1173 = vpack.c.bf16 %v1119, %v1116
        %v1174 = vpack.c.bf16 %v1127, %v1124
        %v1175 = vpack.c.bf16 %v1135, %v1132
        %v1176 = vpack.c.bf16 %v1143, %v1140
        %v1177 = vpack.c.bf16 %v1151, %v1148
        %vm1178 = vcmask 261120
        %v1180 = vsel %vm1178, %v1154, 0
        %v1183 = vsel %vm1178, %v1155, 0
        %v1186 = vsel %vm1178, %v1156, 0
        %v1189 = vsel %vm1178, %v1157, 0
        %v1192 = vsel %vm1178, %v1162, 0
        %v1195 = vsel %vm1178, %v1163, 0
        %v1198 = vsel %vm1178, %v1164, 0
        %v1201 = vsel %vm1178, %v1165, 0
        %1203 = vmatprep.subr.bf16.mxu0 0
        %1204 = vmatpush1.bf16.xpose.msra.mxu0 %v1192
        %1205 = vmatprep.subr.bf16.mxu0 0
        %1206 = vmatpush1.bf16.xpose.msra.mxu0 %v1195
        %1207 = vmatprep.subr.bf16.mxu0 0
        %1208 = vmatpush1.bf16.xpose.msra.mxu0 %v1198
        %1209 = vmatprep.subr.bf16.mxu0 0
        %1210 = vmatpush1.bf16.xpose.msra.mxu0 %v1201
        %1211 = vmatprep.subr.bf16.mxu0 0
        %1212 = vmatpush1.bf16.xpose.msra.mxu0 0
        %1213 = vmatprep.subr.bf16.mxu0 0
        %1214 = vmatpush1.bf16.xpose.msra.mxu0 0
        %1215 = vmatprep.subr.bf16.mxu0 0
        %1216 = vmatpush1.bf16.xpose.msra.mxu0 0
        %1217 = vmatprep.subr.bf16.mxu0 0
        %1218 = vmatpush1.bf16.xpose.msra.mxu0 0
        %1219 = vmatprep.subr.bf16.mxu0 0
        %1220 = vmatpush1.bf16.xpose.msra.mxu0 0
        %1221 = vmatprep.subr.bf16.mxu0 0
        %1222 = vmatpush1.bf16.xpose.msra.mxu0 0
        %1223 = vmatprep.subr.bf16.mxu0 0
        %1224 = vmatpush1.bf16.xpose.msra.mxu0 0
        %1225 = vmatprep.subr.bf16.mxu0 0
        %1226 = vmatpush1.bf16.xpose.msra.mxu0 0
        %1227 = vmatprep.subr.bf16.mxu0 0
        %1228 = vmatpush1.bf16.xpose.msra.mxu0 0
        %1229 = vmatprep.subr.bf16.mxu0 0
        %1230 = vmatpush1.bf16.xpose.msra.mxu0 0
        %1231 = vmatprep.subr.bf16.mxu0 0
        %1232 = vmatpush1.bf16.xpose.msra.mxu0 0
        %1233 = vmatprep.subr.bf16.mxu0 0
        %1234 = vmatpush1.bf16.xpose.msra.mxu0 0
        %1235 = vmatprep.mubr.bf16.mxu0 0
        %1236 = vmatmul.mubr.bf16.gmra.mrb[0].mxu0 %v1180
        %v1237 = vpop.f32.mrb[0].mxu0
        %v1238 = vadd.f32 0.0, %v1237
        %v1239 = vpop.f32.mrb[0].mxu0
        %v1240 = vpop.f32.mrb[0].mxu0
        %v1241 = vadd.f32 0.0, %v1240
        %v1242 = vpop.f32.mrb[0].mxu0
        %1243 = vmatprep.mubr.bf16.mxu0 0
        %1244 = vmatmul.mubr.bf16.gmra.mrb[0].mxu0 %v1183
        %v1245 = vpop.f32.mrb[0].mxu0
        %v1246 = vadd.f32 0.0, %v1245
        %v1247 = vpop.f32.mrb[0].mxu0
        %v1248 = vpop.f32.mrb[0].mxu0
        %v1249 = vadd.f32 0.0, %v1248
        %v1250 = vpop.f32.mrb[0].mxu0
        %1251 = vmatprep.mubr.bf16.mxu0 0
        %1252 = vmatmul.mubr.bf16.gmra.mrb[0].mxu0 %v1186
        %v1253 = vpop.f32.mrb[0].mxu0
        %v1254 = vadd.f32 0.0, %v1253
        %v1255 = vpop.f32.mrb[0].mxu0
        %v1256 = vpop.f32.mrb[0].mxu0
        %v1257 = vadd.f32 0.0, %v1256
        %v1258 = vpop.f32.mrb[0].mxu0
        %1259 = vmatprep.mubr.bf16.mxu0 0
        %1260 = vmatmul.mubr.bf16.gmra.mrb[0].mxu0 %v1189
        %v1261 = vpop.f32.mrb[0].mxu0
        %v1262 = vadd.f32 0.0, %v1261
        %v1263 = vpop.f32.mrb[0].mxu0
        %v1264 = vpop.f32.mrb[0].mxu0
        %v1265 = vadd.f32 0.0, %v1264
        %v1266 = vpop.f32.mrb[0].mxu0
        %1267 = vdwg.mxu0
        %vm1268 = vcmask 523264
        %v1269 = vsel %vm1268, %v1238, -inf
        %1270 = vmax.xlane.f32.xlu0 %v1269
        %v1271 = vpop.xlane.xlu0 %1270
        %v1272 = vsel %vm1268, %v1241, -inf
        %1273 = vmax.xlane.f32.xlu0 %v1272
        %v1274 = vpop.xlane.xlu0 %1273
        %v1275 = vsel %vm1268, %v1246, -inf
        %1276 = vmax.xlane.f32.xlu0 %v1275
        %v1277 = vpop.xlane.xlu0 %1276
        %v1278 = vsel %vm1268, %v1249, -inf
        %1279 = vmax.xlane.f32.xlu0 %v1278
        %v1280 = vpop.xlane.xlu0 %1279
        %v1281 = vsel %vm1268, %v1254, -inf
        %1282 = vmax.xlane.f32.xlu0 %v1281
        %v1283 = vpop.xlane.xlu0 %1282
        %v1284 = vsel %vm1268, %v1257, -inf
        %1285 = vmax.xlane.f32.xlu0 %v1284
        %v1286 = vpop.xlane.xlu0 %1285
        %v1287 = vsel %vm1268, %v1262, -inf
        %1288 = vmax.xlane.f32.xlu0 %v1287
        %v1289 = vpop.xlane.xlu0 %1288
        %v1290 = vsel %vm1268, %v1265, -inf
        %1291 = vmax.xlane.f32.xlu0 %v1290
        %v1292 = vpop.xlane.xlu0 %1291
        %v1293 = vsub.f32 %v1238, %v1271
        %v1294 = vsub.f32 %v1241, %v1274
        %v1295 = vsub.f32 %v1246, %v1277
        %v1296 = vsub.f32 %v1249, %v1280
        %v1297 = vsub.f32 %v1254, %v1283
        %v1298 = vsub.f32 %v1257, %v1286
        %v1299 = vsub.f32 %v1262, %v1289
        %v1300 = vsub.f32 %v1265, %v1292
        %v1301 = vmul.f32 %v1293, 1.442695
        %v1302 = vpow.pop %v1301
        %v1303 = vmul.f32 %v1294, 1.442695
        %v1304 = vpow.pop %v1303
        %v1305 = vmul.f32 %v1295, 1.442695
        %v1306 = vpow.pop %v1305
        %v1307 = vmul.f32 %v1296, 1.442695
        %v1308 = vpow.pop %v1307
        %v1309 = vmul.f32 %v1297, 1.442695
        %v1310 = vpow.pop %v1309
        %v1311 = vmul.f32 %v1298, 1.442695
        %v1312 = vpow.pop %v1311
        %v1313 = vmul.f32 %v1299, 1.442695
        %v1314 = vpow.pop %v1313
        %v1315 = vmul.f32 %v1300, 1.442695
        %v1316 = vpow.pop %v1315
        %v1317 = vsel %vm1268, %v1302, 0.0
        %1318 = vadd.xlane.f32.xlu0 %v1317
        %v1319 = vpop.xlane.xlu0 %1318
        %v1320 = vsel %vm1268, %v1304, 0.0
        %1321 = vadd.xlane.f32.xlu0 %v1320
        %v1322 = vpop.xlane.xlu0 %1321
        %v1323 = vsel %vm1268, %v1306, 0.0
        %1324 = vadd.xlane.f32.xlu0 %v1323
        %v1325 = vpop.xlane.xlu0 %1324
        %v1326 = vsel %vm1268, %v1308, 0.0
        %1327 = vadd.xlane.f32.xlu0 %v1326
        %v1328 = vpop.xlane.xlu0 %1327
        %v1329 = vsel %vm1268, %v1310, 0.0
        %1330 = vadd.xlane.f32.xlu0 %v1329
        %v1331 = vpop.xlane.xlu0 %1330
        %v1332 = vsel %vm1268, %v1312, 0.0
        %1333 = vadd.xlane.f32.xlu0 %v1332
        %v1334 = vpop.xlane.xlu0 %1333
        %v1335 = vsel %vm1268, %v1314, 0.0
        %1336 = vadd.xlane.f32.xlu0 %v1335
        %v1337 = vpop.xlane.xlu0 %1336
        %v1338 = vsel %vm1268, %v1316, 0.0
        %1339 = vadd.xlane.f32.xlu0 %v1338
        %v1340 = vpop.xlane.xlu0 %1339
        %v1341 = vrcp.pop %v1319
        %v1342 = vrcp.pop %v1322
        %v1343 = vrcp.pop %v1325
        %v1344 = vrcp.pop %v1328
        %v1345 = vrcp.pop %v1331
        %v1346 = vrcp.pop %v1334
        %v1347 = vrcp.pop %v1337
        %v1348 = vrcp.pop %v1340
        %v1349 = vmul.f32 %v1302, %v1341
        %v1350 = vmul.f32 %v1304, %v1342
        %v1351 = vmul.f32 %v1306, %v1343
        %v1352 = vmul.f32 %v1308, %v1344
        %v1353 = vmul.f32 %v1310, %v1345
        %v1354 = vmul.f32 %v1312, %v1346
        %v1355 = vmul.f32 %v1314, %v1347
        %v1356 = vmul.f32 %v1316, %v1348
        %v1357 = vpack.c.bf16 %v1350, %v1349
        %v1358 = vpack.c.bf16 %v1352, %v1351
        %v1359 = vpack.c.bf16 %v1354, %v1353
        %v1360 = vpack.c.bf16 %v1356, %v1355
        %v1362 = vsel %vm1268, %v1357, 0
        %v1365 = vsel %vm1268, %v1358, 0
        %v1368 = vsel %vm1268, %v1359, 0
        %v1371 = vsel %vm1268, %v1360, 0
        %1373 = vmatprep.subr.bf16.mxu0 0
        %1374 = vmatpush1.bf16.msra.mxu0 %v1170
        %1375 = vmatprep.subr.bf16.mxu0 0
        %1376 = vmatpush1.bf16.msra.mxu0 %v1171
        %1377 = vmatprep.subr.bf16.mxu0 0
        %1378 = vmatpush1.bf16.msra.mxu0 %v1172
        %1379 = vmatprep.subr.bf16.mxu0 0
        %1380 = vmatpush1.bf16.msra.mxu0 %v1173
        %1381 = vmatprep.subr.bf16.mxu0 0
        %1382 = vmatpush1.bf16.msra.mxu0 0
        %1383 = vmatprep.subr.bf16.mxu0 0
        %1384 = vmatpush1.bf16.msra.mxu0 0
        %1385 = vmatprep.subr.bf16.mxu0 0
        %1386 = vmatpush1.bf16.msra.mxu0 0
        %1387 = vmatprep.subr.bf16.mxu0 0
        %1388 = vmatpush1.bf16.msra.mxu0 0
        %1389 = vmatprep.subr.bf16.mxu0 0
        %1390 = vmatpush1.bf16.msra.mxu0 0
        %1391 = vmatprep.subr.bf16.mxu0 0
        %1392 = vmatpush1.bf16.msra.mxu0 0
        %1393 = vmatprep.subr.bf16.mxu0 0
        %1394 = vmatpush1.bf16.msra.mxu0 0
        %1395 = vmatprep.subr.bf16.mxu0 0
        %1396 = vmatpush1.bf16.msra.mxu0 0
        %1397 = vmatprep.subr.bf16.mxu0 0
        %1398 = vmatpush1.bf16.msra.mxu0 0
        %1399 = vmatprep.subr.bf16.mxu0 0
        %1400 = vmatpush1.bf16.msra.mxu0 0
        %1401 = vmatprep.subr.bf16.mxu0 0
        %1402 = vmatpush1.bf16.msra.mxu0 0
        %1403 = vmatprep.subr.bf16.mxu0 0
        %1404 = vmatpush1.bf16.msra.mxu0 0
        %1405 = vmatprep.mubr.bf16.mxu0 0
        %1406 = vmatmul.mubr.bf16.gmra.mrb[0].mxu0 %v1362
        %v1407 = vpop.f32.mrb[0].mxu0
        %v1408 = vadd.f32 0.0, %v1407
        %v1409 = vpop.f32.mrb[0].mxu0
        %v1410 = vpop.f32.mrb[0].mxu0
        %v1411 = vadd.f32 0.0, %v1410
        %v1412 = vpop.f32.mrb[0].mxu0
        %1413 = vmatprep.mubr.bf16.mxu0 0
        %1414 = vmatmul.mubr.bf16.gmra.mrb[0].mxu0 %v1365
        %v1415 = vpop.f32.mrb[0].mxu0
        %v1416 = vadd.f32 0.0, %v1415
        %v1417 = vpop.f32.mrb[0].mxu0
        %v1418 = vpop.f32.mrb[0].mxu0
        %v1419 = vadd.f32 0.0, %v1418
        %v1420 = vpop.f32.mrb[0].mxu0
        %1421 = vmatprep.mubr.bf16.mxu0 0
        %1422 = vmatmul.mubr.bf16.gmra.mrb[0].mxu0 %v1368
        %v1423 = vpop.f32.mrb[0].mxu0
        %v1424 = vadd.f32 0.0, %v1423
        %v1425 = vpop.f32.mrb[0].mxu0
        %v1426 = vpop.f32.mrb[0].mxu0
        %v1427 = vadd.f32 0.0, %v1426
        %v1428 = vpop.f32.mrb[0].mxu0
        %1429 = vmatprep.mubr.bf16.mxu0 0
        %1430 = vmatmul.mubr.bf16.gmra.mrb[0].mxu0 %v1371
        %v1431 = vpop.f32.mrb[0].mxu0
        %v1432 = vadd.f32 0.0, %v1431
        %v1433 = vpop.f32.mrb[0].mxu0
        %v1434 = vpop.f32.mrb[0].mxu0
        %v1435 = vadd.f32 0.0, %v1434
        %v1436 = vpop.f32.mrb[0].mxu0
        %1437 = vdwg.mxu0
        %v1438 = vpack.c.bf16 %v1411, %v1408
        %v1439 = vpack.c.bf16 %v1419, %v1416
        %v1440 = vpack.c.bf16 %v1427, %v1424
        %v1441 = vpack.c.bf16 %v1435, %v1432
        %1442 = vst.msk [vmem:[#allocation2] sm:$0xff] %vm1178, %v1438
        %1443 = vst.msk [vmem:[#allocation2 + $0x8] sm:$0xff] %vm1178, %v1439
        %1444 = vst.msk [vmem:[#allocation2 + $0x10] sm:$0xff] %vm1178, %v1440
        %1445 = vst.msk [vmem:[#allocation2 + $0x18] sm:$0xff] %vm1178, %v1441
        %1450 = vrot.lane.b32.xlu0 %v1154, 96
        %v1451 = vpop.permute.xlu0 %1450
        %1452 = vrot.lane.b32.xlu0 %v1155, 96
        %v1453 = vpop.permute.xlu0 %1452
        %1454 = vrot.lane.b32.xlu0 %v1156, 96
        %v1455 = vpop.permute.xlu0 %1454
        %1456 = vrot.lane.b32.xlu0 %v1157, 96
        %v1457 = vpop.permute.xlu0 %1456
        %1462 = vrot.lane.b32.xlu0 %v1162, 96
        %v1463 = vpop.permute.xlu0 %1462
        %1464 = vrot.lane.b32.xlu0 %v1163, 96
        %v1465 = vpop.permute.xlu0 %1464
        %1466 = vrot.lane.b32.xlu0 %v1164, 96
        %v1467 = vpop.permute.xlu0 %1466
        %1468 = vrot.lane.b32.xlu0 %v1165, 96
        %v1469 = vpop.permute.xlu0 %1468
        %v1471 = vsel %vm1178, %v1451, 0
        %v1474 = vsel %vm1178, %v1453, 0
        %v1477 = vsel %vm1178, %v1455, 0
        %v1480 = vsel %vm1178, %v1457, 0
        %v1483 = vsel %vm1178, %v1463, 0
        %v1486 = vsel %vm1178, %v1465, 0
        %v1489 = vsel %vm1178, %v1467, 0
        %v1492 = vsel %vm1178, %v1469, 0
        %1494 = vmatprep.subr.bf16.mxu0 0
        %1495 = vmatpush1.bf16.xpose.msra.mxu0 %v1483
        %1496 = vmatprep.subr.bf16.mxu0 0
        %1497 = vmatpush1.bf16.xpose.msra.mxu0 %v1486
        %1498 = vmatprep.subr.bf16.mxu0 0
        %1499 = vmatpush1.bf16.xpose.msra.mxu0 %v1489
        %1500 = vmatprep.subr.bf16.mxu0 0
        %1501 = vmatpush1.bf16.xpose.msra.mxu0 %v1492
        %1502 = vmatprep.subr.bf16.mxu0 0
        %1503 = vmatpush1.bf16.xpose.msra.mxu0 0
        %1504 = vmatprep.subr.bf16.mxu0 0
        %1505 = vmatpush1.bf16.xpose.msra.mxu0 0
        %1506 = vmatprep.subr.bf16.mxu0 0
        %1507 = vmatpush1.bf16.xpose.msra.mxu0 0
        %1508 = vmatprep.subr.bf16.mxu0 0
        %1509 = vmatpush1.bf16.xpose.msra.mxu0 0
        %1510 = vmatprep.subr.bf16.mxu0 0
        %1511 = vmatpush1.bf16.xpose.msra.mxu0 0
        %1512 = vmatprep.subr.bf16.mxu0 0
        %1513 = vmatpush1.bf16.xpose.msra.mxu0 0
        %1514 = vmatprep.subr.bf16.mxu0 0
        %1515 = vmatpush1.bf16.xpose.msra.mxu0 0
        %1516 = vmatprep.subr.bf16.mxu0 0
        %1517 = vmatpush1.bf16.xpose.msra.mxu0 0
        %1518 = vmatprep.subr.bf16.mxu0 0
        %1519 = vmatpush1.bf16.xpose.msra.mxu0 0
        %1520 = vmatprep.subr.bf16.mxu0 0
        %1521 = vmatpush1.bf16.xpose.msra.mxu0 0
        %1522 = vmatprep.subr.bf16.mxu0 0
        %1523 = vmatpush1.bf16.xpose.msra.mxu0 0
        %1524 = vmatprep.subr.bf16.mxu0 0
        %1525 = vmatpush1.bf16.xpose.msra.mxu0 0
        %1526 = vmatprep.mubr.bf16.mxu0 0
        %1527 = vmatmul.mubr.bf16.gmra.mrb[0].mxu0 %v1471
        %v1528 = vpop.f32.mrb[0].mxu0
        %v1529 = vadd.f32 0.0, %v1528
        %v1530 = vpop.f32.mrb[0].mxu0
        %v1531 = vpop.f32.mrb[0].mxu0
        %v1532 = vadd.f32 0.0, %v1531
        %v1533 = vpop.f32.mrb[0].mxu0
        %1534 = vmatprep.mubr.bf16.mxu0 0
        %1535 = vmatmul.mubr.bf16.gmra.mrb[0].mxu0 %v1474
        %v1536 = vpop.f32.mrb[0].mxu0
        %v1537 = vadd.f32 0.0, %v1536
        %v1538 = vpop.f32.mrb[0].mxu0
        %v1539 = vpop.f32.mrb[0].mxu0
        %v1540 = vadd.f32 0.0, %v1539
        %v1541 = vpop.f32.mrb[0].mxu0
        %1542 = vmatprep.mubr.bf16.mxu0 0
        %1543 = vmatmul.mubr.bf16.gmra.mrb[0].mxu0 %v1477
        %v1544 = vpop.f32.mrb[0].mxu0
        %v1545 = vadd.f32 0.0, %v1544
        %v1546 = vpop.f32.mrb[0].mxu0
        %v1547 = vpop.f32.mrb[0].mxu0
        %v1548 = vadd.f32 0.0, %v1547
        %v1549 = vpop.f32.mrb[0].mxu0
        %1550 = vmatprep.mubr.bf16.mxu0 0
        %1551 = vmatmul.mubr.bf16.gmra.mrb[0].mxu0 %v1480
        %v1552 = vpop.f32.mrb[0].mxu0
        %v1553 = vadd.f32 0.0, %v1552
        %v1554 = vpop.f32.mrb[0].mxu0
        %v1555 = vpop.f32.mrb[0].mxu0
        %v1556 = vadd.f32 0.0, %v1555
        %v1557 = vpop.f32.mrb[0].mxu0
        %1558 = vdwg.mxu0
        %v1559 = vsel %vm1268, %v1529, -inf
        %1560 = vmax.xlane.f32.xlu0 %v1559
        %v1561 = vpop.xlane.xlu0 %1560
        %v1562 = vsel %vm1268, %v1532, -inf
        %1563 = vmax.xlane.f32.xlu0 %v1562
        %v1564 = vpop.xlane.xlu0 %1563
        %v1565 = vsel %vm1268, %v1537, -inf
        %1566 = vmax.xlane.f32.xlu0 %v1565
        %v1567 = vpop.xlane.xlu0 %1566
        %v1568 = vsel %vm1268, %v1540, -inf
        %1569 = vmax.xlane.f32.xlu0 %v1568
        %v1570 = vpop.xlane.xlu0 %1569
        %v1571 = vsel %vm1268, %v1545, -inf
        %1572 = vmax.xlane.f32.xlu0 %v1571
        %v1573 = vpop.xlane.xlu0 %1572
        %v1574 = vsel %vm1268, %v1548, -inf
        %1575 = vmax.xlane.f32.xlu0 %v1574
        %v1576 = vpop.xlane.xlu0 %1575
        %v1577 = vsel %vm1268, %v1553, -inf
        %1578 = vmax.xlane.f32.xlu0 %v1577
        %v1579 = vpop.xlane.xlu0 %1578
        %v1580 = vsel %vm1268, %v1556, -inf
        %1581 = vmax.xlane.f32.xlu0 %v1580
        %v1582 = vpop.xlane.xlu0 %1581
        %v1583 = vsub.f32 %v1529, %v1561
        %v1584 = vsub.f32 %v1532, %v1564
        %v1585 = vsub.f32 %v1537, %v1567
        %v1586 = vsub.f32 %v1540, %v1570
        %v1587 = vsub.f32 %v1545, %v1573
        %v1588 = vsub.f32 %v1548, %v1576
        %v1589 = vsub.f32 %v1553, %v1579
        %v1590 = vsub.f32 %v1556, %v1582
        %v1591 = vmul.f32 %v1583, 1.442695
        %v1592 = vpow.pop %v1591
        %v1593 = vmul.f32 %v1584, 1.442695
        %v1594 = vpow.pop %v1593
        %v1595 = vmul.f32 %v1585, 1.442695
        %v1596 = vpow.pop %v1595
        %v1597 = vmul.f32 %v1586, 1.442695
        %v1598 = vpow.pop %v1597
        %v1599 = vmul.f32 %v1587, 1.442695
        %v1600 = vpow.pop %v1599
        %v1601 = vmul.f32 %v1588, 1.442695
        %v1602 = vpow.pop %v1601
        %v1603 = vmul.f32 %v1589, 1.442695
        %v1604 = vpow.pop %v1603
        %v1605 = vmul.f32 %v1590, 1.442695
        %v1606 = vpow.pop %v1605
        %v1607 = vsel %vm1268, %v1592, 0.0
        %1608 = vadd.xlane.f32.xlu0 %v1607
        %v1609 = vpop.xlane.xlu0 %1608
        %v1610 = vsel %vm1268, %v1594, 0.0
        %1611 = vadd.xlane.f32.xlu0 %v1610
        %v1612 = vpop.xlane.xlu0 %1611
        %v1613 = vsel %vm1268, %v1596, 0.0
        %1614 = vadd.xlane.f32.xlu0 %v1613
        %v1615 = vpop.xlane.xlu0 %1614
        %v1616 = vsel %vm1268, %v1598, 0.0
        %1617 = vadd.xlane.f32.xlu0 %v1616
        %v1618 = vpop.xlane.xlu0 %1617
        %v1619 = vsel %vm1268, %v1600, 0.0
        %1620 = vadd.xlane.f32.xlu0 %v1619
        %v1621 = vpop.xlane.xlu0 %1620
        %v1622 = vsel %vm1268, %v1602, 0.0
        %1623 = vadd.xlane.f32.xlu0 %v1622
        %v1624 = vpop.xlane.xlu0 %1623
        %v1625 = vsel %vm1268, %v1604, 0.0
        %1626 = vadd.xlane.f32.xlu0 %v1625
        %v1627 = vpop.xlane.xlu0 %1626
        %v1628 = vsel %vm1268, %v1606, 0.0
        %1629 = vadd.xlane.f32.xlu0 %v1628
        %v1630 = vpop.xlane.xlu0 %1629
        %v1631 = vrcp.pop %v1609
        %v1632 = vrcp.pop %v1612
        %v1633 = vrcp.pop %v1615
        %v1634 = vrcp.pop %v1618
        %v1635 = vrcp.pop %v1621
        %v1636 = vrcp.pop %v1624
        %v1637 = vrcp.pop %v1627
        %v1638 = vrcp.pop %v1630
        %v1639 = vmul.f32 %v1592, %v1631
        %v1640 = vmul.f32 %v1594, %v1632
        %v1641 = vmul.f32 %v1596, %v1633
        %v1642 = vmul.f32 %v1598, %v1634
        %v1643 = vmul.f32 %v1600, %v1635
        %v1644 = vmul.f32 %v1602, %v1636
        %v1645 = vmul.f32 %v1604, %v1637
        %v1646 = vmul.f32 %v1606, %v1638
        %v1647 = vpack.c.bf16 %v1640, %v1639
        %v1648 = vpack.c.bf16 %v1642, %v1641
        %v1649 = vpack.c.bf16 %v1644, %v1643
        %v1650 = vpack.c.bf16 %v1646, %v1645
        %1655 = vrot.lane.b32.xlu0 %v1170, 96
        %v1656 = vpop.permute.xlu0 %1655
        %1657 = vrot.lane.b32.xlu0 %v1171, 96
        %v1658 = vpop.permute.xlu0 %1657
        %1659 = vrot.lane.b32.xlu0 %v1172, 96
        %v1660 = vpop.permute.xlu0 %1659
        %1661 = vrot.lane.b32.xlu0 %v1173, 96
        %v1662 = vpop.permute.xlu0 %1661
        %v1668 = vsel %vm1268, %v1647, 0
        %v1671 = vsel %vm1268, %v1648, 0
        %v1674 = vsel %vm1268, %v1649, 0
        %v1677 = vsel %vm1268, %v1650, 0
        %1679 = vmatprep.subr.bf16.mxu0 0
        %1680 = vmatpush1.bf16.msra.mxu0 %v1656
        %1681 = vmatprep.subr.bf16.mxu0 0
        %1682 = vmatpush1.bf16.msra.mxu0 %v1658
        %1683 = vmatprep.subr.bf16.mxu0 0
        %1684 = vmatpush1.bf16.msra.mxu0 %v1660
        %1685 = vmatprep.subr.bf16.mxu0 0
        %1686 = vmatpush1.bf16.msra.mxu0 %v1662
        %1687 = vmatprep.subr.bf16.mxu0 0
        %1688 = vmatpush1.bf16.msra.mxu0 0
        %1689 = vmatprep.subr.bf16.mxu0 0
        %1690 = vmatpush1.bf16.msra.mxu0 0
        %1691 = vmatprep.subr.bf16.mxu0 0
        %1692 = vmatpush1.bf16.msra.mxu0 0
        %1693 = vmatprep.subr.bf16.mxu0 0
        %1694 = vmatpush1.bf16.msra.mxu0 0
        %1695 = vmatprep.subr.bf16.mxu0 0
        %1696 = vmatpush1.bf16.msra.mxu0 0
        %1697 = vmatprep.subr.bf16.mxu0 0
        %1698 = vmatpush1.bf16.msra.mxu0 0
        %1699 = vmatprep.subr.bf16.mxu0 0
        %1700 = vmatpush1.bf16.msra.mxu0 0
        %1701 = vmatprep.subr.bf16.mxu0 0
        %1702 = vmatpush1.bf16.msra.mxu0 0
        %1703 = vmatprep.subr.bf16.mxu0 0
        %1704 = vmatpush1.bf16.msra.mxu0 0
        %1705 = vmatprep.subr.bf16.mxu0 0
        %1706 = vmatpush1.bf16.msra.mxu0 0
        %1707 = vmatprep.subr.bf16.mxu0 0
        %1708 = vmatpush1.bf16.msra.mxu0 0
        %1709 = vmatprep.subr.bf16.mxu0 0
        %1710 = vmatpush1.bf16.msra.mxu0 0
        %1711 = vmatprep.mubr.bf16.mxu0 0
        %1712 = vmatmul.mubr.bf16.gmra.mrb[0].mxu0 %v1668
        %v1713 = vpop.f32.mrb[0].mxu0
        %v1714 = vadd.f32 0.0, %v1713
        %v1715 = vpop.f32.mrb[0].mxu0
        %v1716 = vpop.f32.mrb[0].mxu0
        %v1717 = vadd.f32 0.0, %v1716
        %v1718 = vpop.f32.mrb[0].mxu0
        %1719 = vmatprep.mubr.bf16.mxu0 0
        %1720 = vmatmul.mubr.bf16.gmra.mrb[0].mxu0 %v1671
        %v1721 = vpop.f32.mrb[0].mxu0
        %v1722 = vadd.f32 0.0, %v1721
        %v1723 = vpop.f32.mrb[0].mxu0
        %v1724 = vpop.f32.mrb[0].mxu0
        %v1725 = vadd.f32 0.0, %v1724
        %v1726 = vpop.f32.mrb[0].mxu0
        %1727 = vmatprep.mubr.bf16.mxu0 0
        %1728 = vmatmul.mubr.bf16.gmra.mrb[0].mxu0 %v1674
        %v1729 = vpop.f32.mrb[0].mxu0
        %v1730 = vadd.f32 0.0, %v1729
        %v1731 = vpop.f32.mrb[0].mxu0
        %v1732 = vpop.f32.mrb[0].mxu0
        %v1733 = vadd.f32 0.0, %v1732
        %v1734 = vpop.f32.mrb[0].mxu0
        %1735 = vmatprep.mubr.bf16.mxu0 0
        %1736 = vmatmul.mubr.bf16.gmra.mrb[0].mxu0 %v1677
        %v1737 = vpop.f32.mrb[0].mxu0
        %v1738 = vadd.f32 0.0, %v1737
        %v1739 = vpop.f32.mrb[0].mxu0
        %v1740 = vpop.f32.mrb[0].mxu0
        %v1741 = vadd.f32 0.0, %v1740
        %v1742 = vpop.f32.mrb[0].mxu0
        %1743 = vdwg.mxu0
        %v1744 = vpack.c.bf16 %v1717, %v1714
        %v1745 = vpack.c.bf16 %v1725, %v1722
        %v1746 = vpack.c.bf16 %v1733, %v1730
        %v1747 = vpack.c.bf16 %v1741, %v1738
        %1752 = vrot.lane.b32.xlu0 %v1744, 32
        %v1753 = vpop.permute.xlu0 %1752
        %1754 = vrot.lane.b32.xlu0 %v1745, 32
        %v1755 = vpop.permute.xlu0 %1754
        %1756 = vrot.lane.b32.xlu0 %v1746, 32
        %v1757 = vpop.permute.xlu0 %1756
        %1758 = vrot.lane.b32.xlu0 %v1747, 32
        %v1759 = vpop.permute.xlu0 %1758
        %vm1764 = vcmask 523520
        %1765 = vst.msk [vmem:[#allocation2] sm:$0xff] %vm1764, %v1753
        %1766 = vst.msk [vmem:[#allocation2 + $0x8] sm:$0xff] %vm1764, %v1755
        %1767 = vst.msk [vmem:[#allocation2 + $0x10] sm:$0xff] %vm1764, %v1757
        %1768 = vst.msk [vmem:[#allocation2 + $0x18] sm:$0xff] %vm1764, %v1759
        %1769 = vrot.lane.b32.xlu0 %v1154, 64
        %v1770 = vpop.permute.xlu0 %1769
        %1771 = vrot.lane.b32.xlu0 %v1155, 64
        %v1772 = vpop.permute.xlu0 %1771
        %1773 = vrot.lane.b32.xlu0 %v1156, 64
        %v1774 = vpop.permute.xlu0 %1773
        %1775 = vrot.lane.b32.xlu0 %v1157, 64
        %v1776 = vpop.permute.xlu0 %1775
        %1777 = vrot.lane.b32.xlu0 %v1162, 64
        %v1778 = vpop.permute.xlu0 %1777
        %1779 = vrot.lane.b32.xlu0 %v1163, 64
        %v1780 = vpop.permute.xlu0 %1779
        %1781 = vrot.lane.b32.xlu0 %v1164, 64
        %v1782 = vpop.permute.xlu0 %1781
        %1783 = vrot.lane.b32.xlu0 %v1165, 64
        %v1784 = vpop.permute.xlu0 %1783
        %v1786 = vsel %vm1178, %v1770, 0
        %v1789 = vsel %vm1178, %v1772, 0
        %v1792 = vsel %vm1178, %v1774, 0
        %v1795 = vsel %vm1178, %v1776, 0
        %v1798 = vsel %vm1178, %v1778, 0
        %v1801 = vsel %vm1178, %v1780, 0
        %v1804 = vsel %vm1178, %v1782, 0
        %v1807 = vsel %vm1178, %v1784, 0
        %1809 = vmatprep.subr.bf16.mxu0 0
        %1810 = vmatpush1.bf16.xpose.msra.mxu0 %v1798
        %1811 = vmatprep.subr.bf16.mxu0 0
        %1812 = vmatpush1.bf16.xpose.msra.mxu0 %v1801
        %1813 = vmatprep.subr.bf16.mxu0 0
        %1814 = vmatpush1.bf16.xpose.msra.mxu0 %v1804
        %1815 = vmatprep.subr.bf16.mxu0 0
        %1816 = vmatpush1.bf16.xpose.msra.mxu0 %v1807
        %1817 = vmatprep.subr.bf16.mxu0 0
        %1818 = vmatpush1.bf16.xpose.msra.mxu0 0
        %1819 = vmatprep.subr.bf16.mxu0 0
        %1820 = vmatpush1.bf16.xpose.msra.mxu0 0
        %1821 = vmatprep.subr.bf16.mxu0 0
        %1822 = vmatpush1.bf16.xpose.msra.mxu0 0
        %1823 = vmatprep.subr.bf16.mxu0 0
        %1824 = vmatpush1.bf16.xpose.msra.mxu0 0
        %1825 = vmatprep.subr.bf16.mxu0 0
        %1826 = vmatpush1.bf16.xpose.msra.mxu0 0
        %1827 = vmatprep.subr.bf16.mxu0 0
        %1828 = vmatpush1.bf16.xpose.msra.mxu0 0
        %1829 = vmatprep.subr.bf16.mxu0 0
        %1830 = vmatpush1.bf16.xpose.msra.mxu0 0
        %1831 = vmatprep.subr.bf16.mxu0 0
        %1832 = vmatpush1.bf16.xpose.msra.mxu0 0
        %1833 = vmatprep.subr.bf16.mxu0 0
        %1834 = vmatpush1.bf16.xpose.msra.mxu0 0
        %1835 = vmatprep.subr.bf16.mxu0 0
        %1836 = vmatpush1.bf16.xpose.msra.mxu0 0
        %1837 = vmatprep.subr.bf16.mxu0 0
        %1838 = vmatpush1.bf16.xpose.msra.mxu0 0
        %1839 = vmatprep.subr.bf16.mxu0 0
        %1840 = vmatpush1.bf16.xpose.msra.mxu0 0
        %1841 = vmatprep.mubr.bf16.mxu0 0
        %1842 = vmatmul.mubr.bf16.gmra.mrb[0].mxu0 %v1786
        %v1843 = vpop.f32.mrb[0].mxu0
        %v1844 = vadd.f32 0.0, %v1843
        %v1845 = vpop.f32.mrb[0].mxu0
        %v1846 = vpop.f32.mrb[0].mxu0
        %v1847 = vadd.f32 0.0, %v1846
        %v1848 = vpop.f32.mrb[0].mxu0
        %1849 = vmatprep.mubr.bf16.mxu0 0
        %1850 = vmatmul.mubr.bf16.gmra.mrb[0].mxu0 %v1789
        %v1851 = vpop.f32.mrb[0].mxu0
        %v1852 = vadd.f32 0.0, %v1851
        %v1853 = vpop.f32.mrb[0].mxu0
        %v1854 = vpop.f32.mrb[0].mxu0
        %v1855 = vadd.f32 0.0, %v1854
        %v1856 = vpop.f32.mrb[0].mxu0
        %1857 = vmatprep.mubr.bf16.mxu0 0
        %1858 = vmatmul.mubr.bf16.gmra.mrb[0].mxu0 %v1792
        %v1859 = vpop.f32.mrb[0].mxu0
        %v1860 = vadd.f32 0.0, %v1859
        %v1861 = vpop.f32.mrb[0].mxu0
        %v1862 = vpop.f32.mrb[0].mxu0
        %v1863 = vadd.f32 0.0, %v1862
        %v1864 = vpop.f32.mrb[0].mxu0
        %1865 = vmatprep.mubr.bf16.mxu0 0
        %1866 = vmatmul.mubr.bf16.gmra.mrb[0].mxu0 %v1795
        %v1867 = vpop.f32.mrb[0].mxu0
        %v1868 = vadd.f32 0.0, %v1867
        %v1869 = vpop.f32.mrb[0].mxu0
        %v1870 = vpop.f32.mrb[0].mxu0
        %v1871 = vadd.f32 0.0, %v1870
        %v1872 = vpop.f32.mrb[0].mxu0
        %1873 = vdwg.mxu0
        %v1874 = vsel %vm1268, %v1844, -inf
        %1875 = vmax.xlane.f32.xlu0 %v1874
        %v1876 = vpop.xlane.xlu0 %1875
        %v1877 = vsel %vm1268, %v1847, -inf
        %1878 = vmax.xlane.f32.xlu0 %v1877
        %v1879 = vpop.xlane.xlu0 %1878
        %v1880 = vsel %vm1268, %v1852, -inf
        %1881 = vmax.xlane.f32.xlu0 %v1880
        %v1882 = vpop.xlane.xlu0 %1881
        %v1883 = vsel %vm1268, %v1855, -inf
        %1884 = vmax.xlane.f32.xlu0 %v1883
        %v1885 = vpop.xlane.xlu0 %1884
        %v1886 = vsel %vm1268, %v1860, -inf
        %1887 = vmax.xlane.f32.xlu0 %v1886
        %v1888 = vpop.xlane.xlu0 %1887
        %v1889 = vsel %vm1268, %v1863, -inf
        %1890 = vmax.xlane.f32.xlu0 %v1889
        %v1891 = vpop.xlane.xlu0 %1890
        %v1892 = vsel %vm1268, %v1868, -inf
        %1893 = vmax.xlane.f32.xlu0 %v1892
        %v1894 = vpop.xlane.xlu0 %1893
        %v1895 = vsel %vm1268, %v1871, -inf
        %1896 = vmax.xlane.f32.xlu0 %v1895
        %v1897 = vpop.xlane.xlu0 %1896
        %v1898 = vsub.f32 %v1844, %v1876
        %v1899 = vsub.f32 %v1847, %v1879
        %v1900 = vsub.f32 %v1852, %v1882
        %v1901 = vsub.f32 %v1855, %v1885
        %v1902 = vsub.f32 %v1860, %v1888
        %v1903 = vsub.f32 %v1863, %v1891
        %v1904 = vsub.f32 %v1868, %v1894
        %v1905 = vsub.f32 %v1871, %v1897
        %v1906 = vmul.f32 %v1898, 1.442695
        %v1907 = vpow.pop %v1906
        %v1908 = vmul.f32 %v1899, 1.442695
        %v1909 = vpow.pop %v1908
        %v1910 = vmul.f32 %v1900, 1.442695
        %v1911 = vpow.pop %v1910
        %v1912 = vmul.f32 %v1901, 1.442695
        %v1913 = vpow.pop %v1912
        %v1914 = vmul.f32 %v1902, 1.442695
        %v1915 = vpow.pop %v1914
        %v1916 = vmul.f32 %v1903, 1.442695
        %v1917 = vpow.pop %v1916
        %v1918 = vmul.f32 %v1904, 1.442695
        %v1919 = vpow.pop %v1918
        %v1920 = vmul.f32 %v1905, 1.442695
        %v1921 = vpow.pop %v1920
        %v1922 = vsel %vm1268, %v1907, 0.0
        %1923 = vadd.xlane.f32.xlu0 %v1922
        %v1924 = vpop.xlane.xlu0 %1923
        %v1925 = vsel %vm1268, %v1909, 0.0
        %1926 = vadd.xlane.f32.xlu0 %v1925
        %v1927 = vpop.xlane.xlu0 %1926
        %v1928 = vsel %vm1268, %v1911, 0.0
        %1929 = vadd.xlane.f32.xlu0 %v1928
        %v1930 = vpop.xlane.xlu0 %1929
        %v1931 = vsel %vm1268, %v1913, 0.0
        %1932 = vadd.xlane.f32.xlu0 %v1931
        %v1933 = vpop.xlane.xlu0 %1932
        %v1934 = vsel %vm1268, %v1915, 0.0
        %1935 = vadd.xlane.f32.xlu0 %v1934
        %v1936 = vpop.xlane.xlu0 %1935
        %v1937 = vsel %vm1268, %v1917, 0.0
        %1938 = vadd.xlane.f32.xlu0 %v1937
        %v1939 = vpop.xlane.xlu0 %1938
        %v1940 = vsel %vm1268, %v1919, 0.0
        %1941 = vadd.xlane.f32.xlu0 %v1940
        %v1942 = vpop.xlane.xlu0 %1941
        %v1943 = vsel %vm1268, %v1921, 0.0
        %1944 = vadd.xlane.f32.xlu0 %v1943
        %v1945 = vpop.xlane.xlu0 %1944
        %v1946 = vrcp.pop %v1924
        %v1947 = vrcp.pop %v1927
        %v1948 = vrcp.pop %v1930
        %v1949 = vrcp.pop %v1933
        %v1950 = vrcp.pop %v1936
        %v1951 = vrcp.pop %v1939
        %v1952 = vrcp.pop %v1942
        %v1953 = vrcp.pop %v1945
        %v1954 = vmul.f32 %v1907, %v1946
        %v1955 = vmul.f32 %v1909, %v1947
        %v1956 = vmul.f32 %v1911, %v1948
        %v1957 = vmul.f32 %v1913, %v1949
        %v1958 = vmul.f32 %v1915, %v1950
        %v1959 = vmul.f32 %v1917, %v1951
        %v1960 = vmul.f32 %v1919, %v1952
        %v1961 = vmul.f32 %v1921, %v1953
        %v1962 = vpack.c.bf16 %v1955, %v1954
        %v1963 = vpack.c.bf16 %v1957, %v1956
        %v1964 = vpack.c.bf16 %v1959, %v1958
        %v1965 = vpack.c.bf16 %v1961, %v1960
        %1966 = vrot.lane.b32.xlu0 %v1170, 64
        %v1967 = vpop.permute.xlu0 %1966
        %1968 = vrot.lane.b32.xlu0 %v1171, 64
        %v1969 = vpop.permute.xlu0 %1968
        %1970 = vrot.lane.b32.xlu0 %v1172, 64
        %v1971 = vpop.permute.xlu0 %1970
        %1972 = vrot.lane.b32.xlu0 %v1173, 64
        %v1973 = vpop.permute.xlu0 %1972
        %v1979 = vsel %vm1268, %v1962, 0
        %v1982 = vsel %vm1268, %v1963, 0
        %v1985 = vsel %vm1268, %v1964, 0
        %v1988 = vsel %vm1268, %v1965, 0
        %1990 = vmatprep.subr.bf16.mxu0 0
        %1991 = vmatpush1.bf16.msra.mxu0 %v1967
        %1992 = vmatprep.subr.bf16.mxu0 0
        %1993 = vmatpush1.bf16.msra.mxu0 %v1969
        %1994 = vmatprep.subr.bf16.mxu0 0
        %1995 = vmatpush1.bf16.msra.mxu0 %v1971
        %1996 = vmatprep.subr.bf16.mxu0 0
        %1997 = vmatpush1.bf16.msra.mxu0 %v1973
        %1998 = vmatprep.subr.bf16.mxu0 0
        %1999 = vmatpush1.bf16.msra.mxu0 0
        %2000 = vmatprep.subr.bf16.mxu0 0
        %2001 = vmatpush1.bf16.msra.mxu0 0
        %2002 = vmatprep.subr.bf16.mxu0 0
        %2003 = vmatpush1.bf16.msra.mxu0 0
        %2004 = vmatprep.subr.bf16.mxu0 0
        %2005 = vmatpush1.bf16.msra.mxu0 0
        %2006 = vmatprep.subr.bf16.mxu0 0
        %2007 = vmatpush1.bf16.msra.mxu0 0
        %2008 = vmatprep.subr.bf16.mxu0 0
        %2009 = vmatpush1.bf16.msra.mxu0 0
        %2010 = vmatprep.subr.bf16.mxu0 0
        %2011 = vmatpush1.bf16.msra.mxu0 0
        %2012 = vmatprep.subr.bf16.mxu0 0
        %2013 = vmatpush1.bf16.msra.mxu0 0
        %2014 = vmatprep.subr.bf16.mxu0 0
        %2015 = vmatpush1.bf16.msra.mxu0 0
        %2016 = vmatprep.subr.bf16.mxu0 0
        %2017 = vmatpush1.bf16.msra.mxu0 0
        %2018 = vmatprep.subr.bf16.mxu0 0
        %2019 = vmatpush1.bf16.msra.mxu0 0
        %2020 = vmatprep.subr.bf16.mxu0 0
        %2021 = vmatpush1.bf16.msra.mxu0 0
        %2022 = vmatprep.mubr.bf16.mxu0 0
        %2023 = vmatmul.mubr.bf16.gmra.mrb[0].mxu0 %v1979
        %v2024 = vpop.f32.mrb[0].mxu0
        %v2025 = vadd.f32 0.0, %v2024
        %v2026 = vpop.f32.mrb[0].mxu0
        %v2027 = vpop.f32.mrb[0].mxu0
        %v2028 = vadd.f32 0.0, %v2027
        %v2029 = vpop.f32.mrb[0].mxu0
        %2030 = vmatprep.mubr.bf16.mxu0 0
        %2031 = vmatmul.mubr.bf16.gmra.mrb[0].mxu0 %v1982
        %v2032 = vpop.f32.mrb[0].mxu0
        %v2033 = vadd.f32 0.0, %v2032
        %v2034 = vpop.f32.mrb[0].mxu0
        %v2035 = vpop.f32.mrb[0].mxu0
        %v2036 = vadd.f32 0.0, %v2035
        %v2037 = vpop.f32.mrb[0].mxu0
        %2038 = vmatprep.mubr.bf16.mxu0 0
        %2039 = vmatmul.mubr.bf16.gmra.mrb[0].mxu0 %v1985
        %v2040 = vpop.f32.mrb[0].mxu0
        %v2041 = vadd.f32 0.0, %v2040
        %v2042 = vpop.f32.mrb[0].mxu0
        %v2043 = vpop.f32.mrb[0].mxu0
        %v2044 = vadd.f32 0.0, %v2043
        %v2045 = vpop.f32.mrb[0].mxu0
        %2046 = vmatprep.mubr.bf16.mxu0 0
        %2047 = vmatmul.mubr.bf16.gmra.mrb[0].mxu0 %v1988
        %v2048 = vpop.f32.mrb[0].mxu0
        %v2049 = vadd.f32 0.0, %v2048
        %v2050 = vpop.f32.mrb[0].mxu0
        %v2051 = vpop.f32.mrb[0].mxu0
        %v2052 = vadd.f32 0.0, %v2051
        %v2053 = vpop.f32.mrb[0].mxu0
        %2054 = vdwg.mxu0
        %v2055 = vpack.c.bf16 %v2028, %v2025
        %v2056 = vpack.c.bf16 %v2036, %v2033
        %v2057 = vpack.c.bf16 %v2044, %v2041
        %v2058 = vpack.c.bf16 %v2052, %v2049
        %2063 = vrot.lane.b32.xlu0 %v2055, 64
        %v2064 = vpop.permute.xlu0 %2063
        %2065 = vrot.lane.b32.xlu0 %v2056, 64
        %v2066 = vpop.permute.xlu0 %2065
        %2067 = vrot.lane.b32.xlu0 %v2057, 64
        %v2068 = vpop.permute.xlu0 %2067
        %2069 = vrot.lane.b32.xlu0 %v2058, 64
        %v2070 = vpop.permute.xlu0 %2069
        %vm2075 = vcmask 785920
        %2076 = vst.msk [vmem:[#allocation2] sm:$0xff] %vm2075, %v2064
        %2077 = vst.msk [vmem:[#allocation2 + $0x8] sm:$0xff] %vm2075, %v2066
        %2078 = vst.msk [vmem:[#allocation2 + $0x10] sm:$0xff] %vm2075, %v2068
        %2079 = vst.msk [vmem:[#allocation2 + $0x18] sm:$0xff] %vm2075, %v2070
        %2080 = vrot.lane.b32.xlu0 %v1154, 32
        %v2081 = vpop.permute.xlu0 %2080
        %2082 = vrot.lane.b32.xlu0 %v1155, 32
        %v2083 = vpop.permute.xlu0 %2082
        %2084 = vrot.lane.b32.xlu0 %v1156, 32
        %v2085 = vpop.permute.xlu0 %2084
        %2086 = vrot.lane.b32.xlu0 %v1157, 32
        %v2087 = vpop.permute.xlu0 %2086
        %2088 = vrot.lane.b32.xlu0 %v1162, 32
        %v2089 = vpop.permute.xlu0 %2088
        %2090 = vrot.lane.b32.xlu0 %v1163, 32
        %v2091 = vpop.permute.xlu0 %2090
        %2092 = vrot.lane.b32.xlu0 %v1164, 32
        %v2093 = vpop.permute.xlu0 %2092
        %2094 = vrot.lane.b32.xlu0 %v1165, 32
        %v2095 = vpop.permute.xlu0 %2094
        %v2097 = vsel %vm1178, %v2081, 0
        %v2100 = vsel %vm1178, %v2083, 0
        %v2103 = vsel %vm1178, %v2085, 0
        %v2106 = vsel %vm1178, %v2087, 0
        %v2109 = vsel %vm1178, %v2089, 0
        %v2112 = vsel %vm1178, %v2091, 0
        %v2115 = vsel %vm1178, %v2093, 0
        %v2118 = vsel %vm1178, %v2095, 0
        %2120 = vmatprep.subr.bf16.mxu0 0
        %2121 = vmatpush1.bf16.xpose.msra.mxu0 %v2109
        %2122 = vmatprep.subr.bf16.mxu0 0
        %2123 = vmatpush1.bf16.xpose.msra.mxu0 %v2112
        %2124 = vmatprep.subr.bf16.mxu0 0
        %2125 = vmatpush1.bf16.xpose.msra.mxu0 %v2115
        %2126 = vmatprep.subr.bf16.mxu0 0
        %2127 = vmatpush1.bf16.xpose.msra.mxu0 %v2118
        %2128 = vmatprep.subr.bf16.mxu0 0
        %2129 = vmatpush1.bf16.xpose.msra.mxu0 0
        %2130 = vmatprep.subr.bf16.mxu0 0
        %2131 = vmatpush1.bf16.xpose.msra.mxu0 0
        %2132 = vmatprep.subr.bf16.mxu0 0
        %2133 = vmatpush1.bf16.xpose.msra.mxu0 0
        %2134 = vmatprep.subr.bf16.mxu0 0
        %2135 = vmatpush1.bf16.xpose.msra.mxu0 0
        %2136 = vmatprep.subr.bf16.mxu0 0
        %2137 = vmatpush1.bf16.xpose.msra.mxu0 0
        %2138 = vmatprep.subr.bf16.mxu0 0
        %2139 = vmatpush1.bf16.xpose.msra.mxu0 0
        %2140 = vmatprep.subr.bf16.mxu0 0
        %2141 = vmatpush1.bf16.xpose.msra.mxu0 0
        %2142 = vmatprep.subr.bf16.mxu0 0
        %2143 = vmatpush1.bf16.xpose.msra.mxu0 0
        %2144 = vmatprep.subr.bf16.mxu0 0
        %2145 = vmatpush1.bf16.xpose.msra.mxu0 0
        %2146 = vmatprep.subr.bf16.mxu0 0
        %2147 = vmatpush1.bf16.xpose.msra.mxu0 0
        %2148 = vmatprep.subr.bf16.mxu0 0
        %2149 = vmatpush1.bf16.xpose.msra.mxu0 0
        %2150 = vmatprep.subr.bf16.mxu0 0
        %2151 = vmatpush1.bf16.xpose.msra.mxu0 0
        %2152 = vmatprep.mubr.bf16.mxu0 0
        %2153 = vmatmul.mubr.bf16.gmra.mrb[0].mxu0 %v2097
        %v2154 = vpop.f32.mrb[0].mxu0
        %v2155 = vadd.f32 0.0, %v2154
        %v2156 = vpop.f32.mrb[0].mxu0
        %v2157 = vpop.f32.mrb[0].mxu0
        %v2158 = vadd.f32 0.0, %v2157
        %v2159 = vpop.f32.mrb[0].mxu0
        %2160 = vmatprep.mubr.bf16.mxu0 0
        %2161 = vmatmul.mubr.bf16.gmra.mrb[0].mxu0 %v2100
        %v2162 = vpop.f32.mrb[0].mxu0
        %v2163 = vadd.f32 0.0, %v2162
        %v2164 = vpop.f32.mrb[0].mxu0
        %v2165 = vpop.f32.mrb[0].mxu0
        %v2166 = vadd.f32 0.0, %v2165
        %v2167 = vpop.f32.mrb[0].mxu0
        %2168 = vmatprep.mubr.bf16.mxu0 0
        %2169 = vmatmul.mubr.bf16.gmra.mrb[0].mxu0 %v2103
        %v2170 = vpop.f32.mrb[0].mxu0
        %v2171 = vadd.f32 0.0, %v2170
        %v2172 = vpop.f32.mrb[0].mxu0
        %v2173 = vpop.f32.mrb[0].mxu0
        %v2174 = vadd.f32 0.0, %v2173
        %v2175 = vpop.f32.mrb[0].mxu0
        %2176 = vmatprep.mubr.bf16.mxu0 0
        %2177 = vmatmul.mubr.bf16.gmra.mrb[0].mxu0 %v2106
        %v2178 = vpop.f32.mrb[0].mxu0
        %v2179 = vadd.f32 0.0, %v2178
        %v2180 = vpop.f32.mrb[0].mxu0
        %v2181 = vpop.f32.mrb[0].mxu0
        %v2182 = vadd.f32 0.0, %v2181
        %v2183 = vpop.f32.mrb[0].mxu0
        %2184 = vdwg.mxu0
        %v2185 = vsel %vm1268, %v2155, -inf
        %2186 = vmax.xlane.f32.xlu0 %v2185
        %v2187 = vpop.xlane.xlu0 %2186
        %v2188 = vsel %vm1268, %v2158, -inf
        %2189 = vmax.xlane.f32.xlu0 %v2188
        %v2190 = vpop.xlane.xlu0 %2189
        %v2191 = vsel %vm1268, %v2163, -inf
        %2192 = vmax.xlane.f32.xlu0 %v2191
        %v2193 = vpop.xlane.xlu0 %2192
        %v2194 = vsel %vm1268, %v2166, -inf
        %2195 = vmax.xlane.f32.xlu0 %v2194
        %v2196 = vpop.xlane.xlu0 %2195
        %v2197 = vsel %vm1268, %v2171, -inf
        %2198 = vmax.xlane.f32.xlu0 %v2197
        %v2199 = vpop.xlane.xlu0 %2198
        %v2200 = vsel %vm1268, %v2174, -inf
        %2201 = vmax.xlane.f32.xlu0 %v2200
        %v2202 = vpop.xlane.xlu0 %2201
        %v2203 = vsel %vm1268, %v2179, -inf
        %2204 = vmax.xlane.f32.xlu0 %v2203
        %v2205 = vpop.xlane.xlu0 %2204
        %v2206 = vsel %vm1268, %v2182, -inf
        %2207 = vmax.xlane.f32.xlu0 %v2206
        %v2208 = vpop.xlane.xlu0 %2207
        %v2209 = vsub.f32 %v2155, %v2187
        %v2210 = vsub.f32 %v2158, %v2190
        %v2211 = vsub.f32 %v2163, %v2193
        %v2212 = vsub.f32 %v2166, %v2196
        %v2213 = vsub.f32 %v2171, %v2199
        %v2214 = vsub.f32 %v2174, %v2202
        %v2215 = vsub.f32 %v2179, %v2205
        %v2216 = vsub.f32 %v2182, %v2208
        %v2217 = vmul.f32 %v2209, 1.442695
        %v2218 = vpow.pop %v2217
        %v2219 = vmul.f32 %v2210, 1.442695
        %v2220 = vpow.pop %v2219
        %v2221 = vmul.f32 %v2211, 1.442695
        %v2222 = vpow.pop %v2221
        %v2223 = vmul.f32 %v2212, 1.442695
        %v2224 = vpow.pop %v2223
        %v2225 = vmul.f32 %v2213, 1.442695
        %v2226 = vpow.pop %v2225
        %v2227 = vmul.f32 %v2214, 1.442695
        %v2228 = vpow.pop %v2227
        %v2229 = vmul.f32 %v2215, 1.442695
        %v2230 = vpow.pop %v2229
        %v2231 = vmul.f32 %v2216, 1.442695
        %v2232 = vpow.pop %v2231
        %v2233 = vsel %vm1268, %v2218, 0.0
        %2234 = vadd.xlane.f32.xlu0 %v2233
        %v2235 = vpop.xlane.xlu0 %2234
        %v2236 = vsel %vm1268, %v2220, 0.0
        %2237 = vadd.xlane.f32.xlu0 %v2236
        %v2238 = vpop.xlane.xlu0 %2237
        %v2239 = vsel %vm1268, %v2222, 0.0
        %2240 = vadd.xlane.f32.xlu0 %v2239
        %v2241 = vpop.xlane.xlu0 %2240
        %v2242 = vsel %vm1268, %v2224, 0.0
        %2243 = vadd.xlane.f32.xlu0 %v2242
        %v2244 = vpop.xlane.xlu0 %2243
        %v2245 = vsel %vm1268, %v2226, 0.0
        %2246 = vadd.xlane.f32.xlu0 %v2245
        %v2247 = vpop.xlane.xlu0 %2246
        %v2248 = vsel %vm1268, %v2228, 0.0
        %2249 = vadd.xlane.f32.xlu0 %v2248
        %v2250 = vpop.xlane.xlu0 %2249
        %v2251 = vsel %vm1268, %v2230, 0.0
        %2252 = vadd.xlane.f32.xlu0 %v2251
        %v2253 = vpop.xlane.xlu0 %2252
        %v2254 = vsel %vm1268, %v2232, 0.0
        %2255 = vadd.xlane.f32.xlu0 %v2254
        %v2256 = vpop.xlane.xlu0 %2255
        %v2257 = vrcp.pop %v2235
        %v2258 = vrcp.pop %v2238
        %v2259 = vrcp.pop %v2241
        %v2260 = vrcp.pop %v2244
        %v2261 = vrcp.pop %v2247
        %v2262 = vrcp.pop %v2250
        %v2263 = vrcp.pop %v2253
        %v2264 = vrcp.pop %v2256
        %v2265 = vmul.f32 %v2218, %v2257
        %v2266 = vmul.f32 %v2220, %v2258
        %v2267 = vmul.f32 %v2222, %v2259
        %v2268 = vmul.f32 %v2224, %v2260
        %v2269 = vmul.f32 %v2226, %v2261
        %v2270 = vmul.f32 %v2228, %v2262
        %v2271 = vmul.f32 %v2230, %v2263
        %v2272 = vmul.f32 %v2232, %v2264
        %v2273 = vpack.c.bf16 %v2266, %v2265
        %v2274 = vpack.c.bf16 %v2268, %v2267
        %v2275 = vpack.c.bf16 %v2270, %v2269
        %v2276 = vpack.c.bf16 %v2272, %v2271
        %2277 = vrot.lane.b32.xlu0 %v1170, 32
        %v2278 = vpop.permute.xlu0 %2277
        %2279 = vrot.lane.b32.xlu0 %v1171, 32
        %v2280 = vpop.permute.xlu0 %2279
        %2281 = vrot.lane.b32.xlu0 %v1172, 32
        %v2282 = vpop.permute.xlu0 %2281
        %2283 = vrot.lane.b32.xlu0 %v1173, 32
        %v2284 = vpop.permute.xlu0 %2283
        %v2290 = vsel %vm1268, %v2273, 0
        %v2293 = vsel %vm1268, %v2274, 0
        %v2296 = vsel %vm1268, %v2275, 0
        %v2299 = vsel %vm1268, %v2276, 0
        %2301 = vmatprep.subr.bf16.mxu0 0
        %2302 = vmatpush1.bf16.msra.mxu0 %v2278
        %2303 = vmatprep.subr.bf16.mxu0 0
        %2304 = vmatpush1.bf16.msra.mxu0 %v2280
        %2305 = vmatprep.subr.bf16.mxu0 0
        %2306 = vmatpush1.bf16.msra.mxu0 %v2282
        %2307 = vmatprep.subr.bf16.mxu0 0
        %2308 = vmatpush1.bf16.msra.mxu0 %v2284
        %2309 = vmatprep.subr.bf16.mxu0 0
        %2310 = vmatpush1.bf16.msra.mxu0 0
        %2311 = vmatprep.subr.bf16.mxu0 0
        %2312 = vmatpush1.bf16.msra.mxu0 0
        %2313 = vmatprep.subr.bf16.mxu0 0
        %2314 = vmatpush1.bf16.msra.mxu0 0
        %2315 = vmatprep.subr.bf16.mxu0 0
        %2316 = vmatpush1.bf16.msra.mxu0 0
        %2317 = vmatprep.subr.bf16.mxu0 0
        %2318 = vmatpush1.bf16.msra.mxu0 0
        %2319 = vmatprep.subr.bf16.mxu0 0
        %2320 = vmatpush1.bf16.msra.mxu0 0
        %2321 = vmatprep.subr.bf16.mxu0 0
        %2322 = vmatpush1.bf16.msra.mxu0 0
        %2323 = vmatprep.subr.bf16.mxu0 0
        %2324 = vmatpush1.bf16.msra.mxu0 0
        %2325 = vmatprep.subr.bf16.mxu0 0
        %2326 = vmatpush1.bf16.msra.mxu0 0
        %2327 = vmatprep.subr.bf16.mxu0 0
        %2328 = vmatpush1.bf16.msra.mxu0 0
        %2329 = vmatprep.subr.bf16.mxu0 0
        %2330 = vmatpush1.bf16.msra.mxu0 0
        %2331 = vmatprep.subr.bf16.mxu0 0
        %2332 = vmatpush1.bf16.msra.mxu0 0
        %2333 = vmatprep.mubr.bf16.mxu0 0
        %2334 = vmatmul.mubr.bf16.gmra.mrb[0].mxu0 %v2290
        %v2335 = vpop.f32.mrb[0].mxu0
        %v2336 = vadd.f32 0.0, %v2335
        %v2337 = vpop.f32.mrb[0].mxu0
        %v2338 = vpop.f32.mrb[0].mxu0
        %v2339 = vadd.f32 0.0, %v2338
        %v2340 = vpop.f32.mrb[0].mxu0
        %2341 = vmatprep.mubr.bf16.mxu0 0
        %2342 = vmatmul.mubr.bf16.gmra.mrb[0].mxu0 %v2293
        %v2343 = vpop.f32.mrb[0].mxu0
        %v2344 = vadd.f32 0.0, %v2343
        %v2345 = vpop.f32.mrb[0].mxu0
        %v2346 = vpop.f32.mrb[0].mxu0
        %v2347 = vadd.f32 0.0, %v2346
        %v2348 = vpop.f32.mrb[0].mxu0
        %2349 = vmatprep.mubr.bf16.mxu0 0
        %2350 = vmatmul.mubr.bf16.gmra.mrb[0].mxu0 %v2296
        %v2351 = vpop.f32.mrb[0].mxu0
        %v2352 = vadd.f32 0.0, %v2351
        %v2353 = vpop.f32.mrb[0].mxu0
        %v2354 = vpop.f32.mrb[0].mxu0
        %v2355 = vadd.f32 0.0, %v2354
        %v2356 = vpop.f32.mrb[0].mxu0
        %2357 = vmatprep.mubr.bf16.mxu0 0
        %2358 = vmatmul.mubr.bf16.gmra.mrb[0].mxu0 %v2299
        %v2359 = vpop.f32.mrb[0].mxu0
        %v2360 = vadd.f32 0.0, %v2359
        %v2361 = vpop.f32.mrb[0].mxu0
        %v2362 = vpop.f32.mrb[0].mxu0
        %v2363 = vadd.f32 0.0, %v2362
        %v2364 = vpop.f32.mrb[0].mxu0
        %2365 = vdwg.mxu0
        %v2366 = vpack.c.bf16 %v2339, %v2336
        %v2367 = vpack.c.bf16 %v2347, %v2344
        %v2368 = vpack.c.bf16 %v2355, %v2352
        %v2369 = vpack.c.bf16 %v2363, %v2360
        %2374 = vrot.lane.b32.xlu0 %v2366, 96
        %v2375 = vpop.permute.xlu0 %2374
        %2376 = vrot.lane.b32.xlu0 %v2367, 96
        %v2377 = vpop.permute.xlu0 %2376
        %2378 = vrot.lane.b32.xlu0 %v2368, 96
        %v2379 = vpop.permute.xlu0 %2378
        %2380 = vrot.lane.b32.xlu0 %v2369, 96
        %v2381 = vpop.permute.xlu0 %2380
        %vm2386 = vcmask 1048320
        %2387 = vst.msk [vmem:[#allocation2] sm:$0xff] %vm2386, %v2375
        %2388 = vst.msk [vmem:[#allocation2 + $0x8] sm:$0xff] %vm2386, %v2377
        %2389 = vst.msk [vmem:[#allocation2 + $0x10] sm:$0xff] %vm2386, %v2379
        %2390 = vst.msk [vmem:[#allocation2 + $0x18] sm:$0xff] %vm2386, %v2381
        %v2392 = vsel %vm1178, %v1158, 0
        %v2395 = vsel %vm1178, %v1159, 0
        %v2398 = vsel %vm1178, %v1160, 0
        %v2401 = vsel %vm1178, %v1161, 0
        %v2404 = vsel %vm1178, %v1166, 0
        %v2407 = vsel %vm1178, %v1167, 0
        %v2410 = vsel %vm1178, %v1168, 0
        %v2413 = vsel %vm1178, %v1169, 0
        %2415 = vmatprep.subr.bf16.mxu0 0
        %2416 = vmatpush1.bf16.xpose.msra.mxu0 %v2404
        %2417 = vmatprep.subr.bf16.mxu0 0
        %2418 = vmatpush1.bf16.xpose.msra.mxu0 %v2407
        %2419 = vmatprep.subr.bf16.mxu0 0
        %2420 = vmatpush1.bf16.xpose.msra.mxu0 %v2410
        %2421 = vmatprep.subr.bf16.mxu0 0
        %2422 = vmatpush1.bf16.xpose.msra.mxu0 %v2413
        %2423 = vmatprep.subr.bf16.mxu0 0
        %2424 = vmatpush1.bf16.xpose.msra.mxu0 0
        %2425 = vmatprep.subr.bf16.mxu0 0
        %2426 = vmatpush1.bf16.xpose.msra.mxu0 0
        %2427 = vmatprep.subr.bf16.mxu0 0
        %2428 = vmatpush1.bf16.xpose.msra.mxu0 0
        %2429 = vmatprep.subr.bf16.mxu0 0
        %2430 = vmatpush1.bf16.xpose.msra.mxu0 0
        %2431 = vmatprep.subr.bf16.mxu0 0
        %2432 = vmatpush1.bf16.xpose.msra.mxu0 0
        %2433 = vmatprep.subr.bf16.mxu0 0
        %2434 = vmatpush1.bf16.xpose.msra.mxu0 0
        %2435 = vmatprep.subr.bf16.mxu0 0
        %2436 = vmatpush1.bf16.xpose.msra.mxu0 0
        %2437 = vmatprep.subr.bf16.mxu0 0
        %2438 = vmatpush1.bf16.xpose.msra.mxu0 0
        %2439 = vmatprep.subr.bf16.mxu0 0
        %2440 = vmatpush1.bf16.xpose.msra.mxu0 0
        %2441 = vmatprep.subr.bf16.mxu0 0
        %2442 = vmatpush1.bf16.xpose.msra.mxu0 0
        %2443 = vmatprep.subr.bf16.mxu0 0
        %2444 = vmatpush1.bf16.xpose.msra.mxu0 0
        %2445 = vmatprep.subr.bf16.mxu0 0
        %2446 = vmatpush1.bf16.xpose.msra.mxu0 0
        %2447 = vmatprep.mubr.bf16.mxu0 0
        %2448 = vmatmul.mubr.bf16.gmra.mrb[0].mxu0 %v2392
        %v2449 = vpop.f32.mrb[0].mxu0
        %v2450 = vadd.f32 0.0, %v2449
        %v2451 = vpop.f32.mrb[0].mxu0
        %v2452 = vpop.f32.mrb[0].mxu0
        %v2453 = vadd.f32 0.0, %v2452
        %v2454 = vpop.f32.mrb[0].mxu0
        %2455 = vmatprep.mubr.bf16.mxu0 0
        %2456 = vmatmul.mubr.bf16.gmra.mrb[0].mxu0 %v2395
        %v2457 = vpop.f32.mrb[0].mxu0
        %v2458 = vadd.f32 0.0, %v2457
        %v2459 = vpop.f32.mrb[0].mxu0
        %v2460 = vpop.f32.mrb[0].mxu0
        %v2461 = vadd.f32 0.0, %v2460
        %v2462 = vpop.f32.mrb[0].mxu0
        %2463 = vmatprep.mubr.bf16.mxu0 0
        %2464 = vmatmul.mubr.bf16.gmra.mrb[0].mxu0 %v2398
        %v2465 = vpop.f32.mrb[0].mxu0
        %v2466 = vadd.f32 0.0, %v2465
        %v2467 = vpop.f32.mrb[0].mxu0
        %v2468 = vpop.f32.mrb[0].mxu0
        %v2469 = vadd.f32 0.0, %v2468
        %v2470 = vpop.f32.mrb[0].mxu0
        %2471 = vmatprep.mubr.bf16.mxu0 0
        %2472 = vmatmul.mubr.bf16.gmra.mrb[0].mxu0 %v2401
        %v2473 = vpop.f32.mrb[0].mxu0
        %v2474 = vadd.f32 0.0, %v2473
        %v2475 = vpop.f32.mrb[0].mxu0
        %v2476 = vpop.f32.mrb[0].mxu0
        %v2477 = vadd.f32 0.0, %v2476
        %v2478 = vpop.f32.mrb[0].mxu0
        %2479 = vdwg.mxu0
        %v2480 = vsel %vm1268, %v2450, -inf
        %2481 = vmax.xlane.f32.xlu0 %v2480
        %v2482 = vpop.xlane.xlu0 %2481
        %v2483 = vsel %vm1268, %v2453, -inf
        %2484 = vmax.xlane.f32.xlu0 %v2483
        %v2485 = vpop.xlane.xlu0 %2484
        %v2486 = vsel %vm1268, %v2458, -inf
        %2487 = vmax.xlane.f32.xlu0 %v2486
        %v2488 = vpop.xlane.xlu0 %2487
        %v2489 = vsel %vm1268, %v2461, -inf
        %2490 = vmax.xlane.f32.xlu0 %v2489
        %v2491 = vpop.xlane.xlu0 %2490
        %v2492 = vsel %vm1268, %v2466, -inf
        %2493 = vmax.xlane.f32.xlu0 %v2492
        %v2494 = vpop.xlane.xlu0 %2493
        %v2495 = vsel %vm1268, %v2469, -inf
        %2496 = vmax.xlane.f32.xlu0 %v2495
        %v2497 = vpop.xlane.xlu0 %2496
        %v2498 = vsel %vm1268, %v2474, -inf
        %2499 = vmax.xlane.f32.xlu0 %v2498
        %v2500 = vpop.xlane.xlu0 %2499
        %v2501 = vsel %vm1268, %v2477, -inf
        %2502 = vmax.xlane.f32.xlu0 %v2501
        %v2503 = vpop.xlane.xlu0 %2502
        %v2504 = vsub.f32 %v2450, %v2482
        %v2505 = vsub.f32 %v2453, %v2485
        %v2506 = vsub.f32 %v2458, %v2488
        %v2507 = vsub.f32 %v2461, %v2491
        %v2508 = vsub.f32 %v2466, %v2494
        %v2509 = vsub.f32 %v2469, %v2497
        %v2510 = vsub.f32 %v2474, %v2500
        %v2511 = vsub.f32 %v2477, %v2503
        %v2512 = vmul.f32 %v2504, 1.442695
        %v2513 = vpow.pop %v2512
        %v2514 = vmul.f32 %v2505, 1.442695
        %v2515 = vpow.pop %v2514
        %v2516 = vmul.f32 %v2506, 1.442695
        %v2517 = vpow.pop %v2516
        %v2518 = vmul.f32 %v2507, 1.442695
        %v2519 = vpow.pop %v2518
        %v2520 = vmul.f32 %v2508, 1.442695
        %v2521 = vpow.pop %v2520
        %v2522 = vmul.f32 %v2509, 1.442695
        %v2523 = vpow.pop %v2522
        %v2524 = vmul.f32 %v2510, 1.442695
        %v2525 = vpow.pop %v2524
        %v2526 = vmul.f32 %v2511, 1.442695
        %v2527 = vpow.pop %v2526
        %v2528 = vsel %vm1268, %v2513, 0.0
        %2529 = vadd.xlane.f32.xlu0 %v2528
        %v2530 = vpop.xlane.xlu0 %2529
        %v2531 = vsel %vm1268, %v2515, 0.0
        %2532 = vadd.xlane.f32.xlu0 %v2531
        %v2533 = vpop.xlane.xlu0 %2532
        %v2534 = vsel %vm1268, %v2517, 0.0
        %2535 = vadd.xlane.f32.xlu0 %v2534
        %v2536 = vpop.xlane.xlu0 %2535
        %v2537 = vsel %vm1268, %v2519, 0.0
        %2538 = vadd.xlane.f32.xlu0 %v2537
        %v2539 = vpop.xlane.xlu0 %2538
        %v2540 = vsel %vm1268, %v2521, 0.0
        %2541 = vadd.xlane.f32.xlu0 %v2540
        %v2542 = vpop.xlane.xlu0 %2541
        %v2543 = vsel %vm1268, %v2523, 0.0
        %2544 = vadd.xlane.f32.xlu0 %v2543
        %v2545 = vpop.xlane.xlu0 %2544
        %v2546 = vsel %vm1268, %v2525, 0.0
        %2547 = vadd.xlane.f32.xlu0 %v2546
        %v2548 = vpop.xlane.xlu0 %2547
        %v2549 = vsel %vm1268, %v2527, 0.0
        %2550 = vadd.xlane.f32.xlu0 %v2549
        %v2551 = vpop.xlane.xlu0 %2550
        %v2552 = vrcp.pop %v2530
        %v2553 = vrcp.pop %v2533
        %v2554 = vrcp.pop %v2536
        %v2555 = vrcp.pop %v2539
        %v2556 = vrcp.pop %v2542
        %v2557 = vrcp.pop %v2545
        %v2558 = vrcp.pop %v2548
        %v2559 = vrcp.pop %v2551
        %v2560 = vmul.f32 %v2513, %v2552
        %v2561 = vmul.f32 %v2515, %v2553
        %v2562 = vmul.f32 %v2517, %v2554
        %v2563 = vmul.f32 %v2519, %v2555
        %v2564 = vmul.f32 %v2521, %v2556
        %v2565 = vmul.f32 %v2523, %v2557
        %v2566 = vmul.f32 %v2525, %v2558
        %v2567 = vmul.f32 %v2527, %v2559
        %v2568 = vpack.c.bf16 %v2561, %v2560
        %v2569 = vpack.c.bf16 %v2563, %v2562
        %v2570 = vpack.c.bf16 %v2565, %v2564
        %v2571 = vpack.c.bf16 %v2567, %v2566
        %v2573 = vsel %vm1268, %v2568, 0
        %v2576 = vsel %vm1268, %v2569, 0
        %v2579 = vsel %vm1268, %v2570, 0
        %v2582 = vsel %vm1268, %v2571, 0
        %2584 = vmatprep.subr.bf16.mxu0 0
        %2585 = vmatpush1.bf16.msra.mxu0 %v1174
        %2586 = vmatprep.subr.bf16.mxu0 0
        %2587 = vmatpush1.bf16.msra.mxu0 %v1175
        %2588 = vmatprep.subr.bf16.mxu0 0
        %2589 = vmatpush1.bf16.msra.mxu0 %v1176
        %2590 = vmatprep.subr.bf16.mxu0 0
        %2591 = vmatpush1.bf16.msra.mxu0 %v1177
        %2592 = vmatprep.subr.bf16.mxu0 0
        %2593 = vmatpush1.bf16.msra.mxu0 0
        %2594 = vmatprep.subr.bf16.mxu0 0
        %2595 = vmatpush1.bf16.msra.mxu0 0
        %2596 = vmatprep.subr.bf16.mxu0 0
        %2597 = vmatpush1.bf16.msra.mxu0 0
        %2598 = vmatprep.subr.bf16.mxu0 0
        %2599 = vmatpush1.bf16.msra.mxu0 0
        %2600 = vmatprep.subr.bf16.mxu0 0
        %2601 = vmatpush1.bf16.msra.mxu0 0
        %2602 = vmatprep.subr.bf16.mxu0 0
        %2603 = vmatpush1.bf16.msra.mxu0 0
        %2604 = vmatprep.subr.bf16.mxu0 0
        %2605 = vmatpush1.bf16.msra.mxu0 0
        %2606 = vmatprep.subr.bf16.mxu0 0
        %2607 = vmatpush1.bf16.msra.mxu0 0
        %2608 = vmatprep.subr.bf16.mxu0 0
        %2609 = vmatpush1.bf16.msra.mxu0 0
        %2610 = vmatprep.subr.bf16.mxu0 0
        %2611 = vmatpush1.bf16.msra.mxu0 0
        %2612 = vmatprep.subr.bf16.mxu0 0
        %2613 = vmatpush1.bf16.msra.mxu0 0
        %2614 = vmatprep.subr.bf16.mxu0 0
        %2615 = vmatpush1.bf16.msra.mxu0 0
        %2616 = vmatprep.mubr.bf16.mxu0 0
        %2617 = vmatmul.mubr.bf16.gmra.mrb[0].mxu0 %v2573
        %v2618 = vpop.f32.mrb[0].mxu0
        %v2619 = vadd.f32 0.0, %v2618
        %v2620 = vpop.f32.mrb[0].mxu0
        %v2621 = vpop.f32.mrb[0].mxu0
        %v2622 = vadd.f32 0.0, %v2621
        %v2623 = vpop.f32.mrb[0].mxu0
        %2624 = vmatprep.mubr.bf16.mxu0 0
        %2625 = vmatmul.mubr.bf16.gmra.mrb[0].mxu0 %v2576
        %v2626 = vpop.f32.mrb[0].mxu0
        %v2627 = vadd.f32 0.0, %v2626
        %v2628 = vpop.f32.mrb[0].mxu0
        %v2629 = vpop.f32.mrb[0].mxu0
        %v2630 = vadd.f32 0.0, %v2629
        %v2631 = vpop.f32.mrb[0].mxu0
        %2632 = vmatprep.mubr.bf16.mxu0 0
        %2633 = vmatmul.mubr.bf16.gmra.mrb[0].mxu0 %v2579
        %v2634 = vpop.f32.mrb[0].mxu0
        %v2635 = vadd.f32 0.0, %v2634
        %v2636 = vpop.f32.mrb[0].mxu0
        %v2637 = vpop.f32.mrb[0].mxu0
        %v2638 = vadd.f32 0.0, %v2637
        %v2639 = vpop.f32.mrb[0].mxu0
        %2640 = vmatprep.mubr.bf16.mxu0 0
        %2641 = vmatmul.mubr.bf16.gmra.mrb[0].mxu0 %v2582
        %v2642 = vpop.f32.mrb[0].mxu0
        %v2643 = vadd.f32 0.0, %v2642
        %v2644 = vpop.f32.mrb[0].mxu0
        %v2645 = vpop.f32.mrb[0].mxu0
        %v2646 = vadd.f32 0.0, %v2645
        %v2647 = vpop.f32.mrb[0].mxu0
        %2648 = vdwg.mxu0
        %v2649 = vpack.c.bf16 %v2622, %v2619
        %v2650 = vpack.c.bf16 %v2630, %v2627
        %v2651 = vpack.c.bf16 %v2638, %v2635
        %v2652 = vpack.c.bf16 %v2646, %v2643
        %2653 = vst.msk [vmem:[#allocation2 + $0x20] sm:$0xff] %vm1178, %v2649
        %2654 = vst.msk [vmem:[#allocation2 + $0x28] sm:$0xff] %vm1178, %v2650
        %2655 = vst.msk [vmem:[#allocation2 + $0x30] sm:$0xff] %vm1178, %v2651
        %2656 = vst.msk [vmem:[#allocation2 + $0x38] sm:$0xff] %vm1178, %v2652
        %2661 = vrot.lane.b32.xlu0 %v1158, 96
        %v2662 = vpop.permute.xlu0 %2661
        %2663 = vrot.lane.b32.xlu0 %v1159, 96
        %v2664 = vpop.permute.xlu0 %2663
        %2665 = vrot.lane.b32.xlu0 %v1160, 96
        %v2666 = vpop.permute.xlu0 %2665
        %2667 = vrot.lane.b32.xlu0 %v1161, 96
        %v2668 = vpop.permute.xlu0 %2667
        %2673 = vrot.lane.b32.xlu0 %v1166, 96
        %v2674 = vpop.permute.xlu0 %2673
        %2675 = vrot.lane.b32.xlu0 %v1167, 96
        %v2676 = vpop.permute.xlu0 %2675
        %2677 = vrot.lane.b32.xlu0 %v1168, 96
        %v2678 = vpop.permute.xlu0 %2677
        %2679 = vrot.lane.b32.xlu0 %v1169, 96
        %v2680 = vpop.permute.xlu0 %2679
        %v2682 = vsel %vm1178, %v2662, 0
        %v2685 = vsel %vm1178, %v2664, 0
        %v2688 = vsel %vm1178, %v2666, 0
        %v2691 = vsel %vm1178, %v2668, 0
        %v2694 = vsel %vm1178, %v2674, 0
        %v2697 = vsel %vm1178, %v2676, 0
        %v2700 = vsel %vm1178, %v2678, 0
        %v2703 = vsel %vm1178, %v2680, 0
        %2705 = vmatprep.subr.bf16.mxu0 0
        %2706 = vmatpush1.bf16.xpose.msra.mxu0 %v2694
        %2707 = vmatprep.subr.bf16.mxu0 0
        %2708 = vmatpush1.bf16.xpose.msra.mxu0 %v2697
        %2709 = vmatprep.subr.bf16.mxu0 0
        %2710 = vmatpush1.bf16.xpose.msra.mxu0 %v2700
        %2711 = vmatprep.subr.bf16.mxu0 0
        %2712 = vmatpush1.bf16.xpose.msra.mxu0 %v2703
        %2713 = vmatprep.subr.bf16.mxu0 0
        %2714 = vmatpush1.bf16.xpose.msra.mxu0 0
        %2715 = vmatprep.subr.bf16.mxu0 0
        %2716 = vmatpush1.bf16.xpose.msra.mxu0 0
        %2717 = vmatprep.subr.bf16.mxu0 0
        %2718 = vmatpush1.bf16.xpose.msra.mxu0 0
        %2719 = vmatprep.subr.bf16.mxu0 0
        %2720 = vmatpush1.bf16.xpose.msra.mxu0 0
        %2721 = vmatprep.subr.bf16.mxu0 0
        %2722 = vmatpush1.bf16.xpose.msra.mxu0 0
        %2723 = vmatprep.subr.bf16.mxu0 0
        %2724 = vmatpush1.bf16.xpose.msra.mxu0 0
        %2725 = vmatprep.subr.bf16.mxu0 0
        %2726 = vmatpush1.bf16.xpose.msra.mxu0 0
        %2727 = vmatprep.subr.bf16.mxu0 0
        %2728 = vmatpush1.bf16.xpose.msra.mxu0 0
        %2729 = vmatprep.subr.bf16.mxu0 0
        %2730 = vmatpush1.bf16.xpose.msra.mxu0 0
        %2731 = vmatprep.subr.bf16.mxu0 0
        %2732 = vmatpush1.bf16.xpose.msra.mxu0 0
        %2733 = vmatprep.subr.bf16.mxu0 0
        %2734 = vmatpush1.bf16.xpose.msra.mxu0 0
        %2735 = vmatprep.subr.bf16.mxu0 0
        %2736 = vmatpush1.bf16.xpose.msra.mxu0 0
        %2737 = vmatprep.mubr.bf16.mxu0 0
        %2738 = vmatmul.mubr.bf16.gmra.mrb[0].mxu0 %v2682
        %v2739 = vpop.f32.mrb[0].mxu0
        %v2740 = vadd.f32 0.0, %v2739
        %v2741 = vpop.f32.mrb[0].mxu0
        %v2742 = vpop.f32.mrb[0].mxu0
        %v2743 = vadd.f32 0.0, %v2742
        %v2744 = vpop.f32.mrb[0].mxu0
        %2745 = vmatprep.mubr.bf16.mxu0 0
        %2746 = vmatmul.mubr.bf16.gmra.mrb[0].mxu0 %v2685
        %v2747 = vpop.f32.mrb[0].mxu0
        %v2748 = vadd.f32 0.0, %v2747
        %v2749 = vpop.f32.mrb[0].mxu0
        %v2750 = vpop.f32.mrb[0].mxu0
        %v2751 = vadd.f32 0.0, %v2750
        %v2752 = vpop.f32.mrb[0].mxu0
        %2753 = vmatprep.mubr.bf16.mxu0 0
        %2754 = vmatmul.mubr.bf16.gmra.mrb[0].mxu0 %v2688
        %v2755 = vpop.f32.mrb[0].mxu0
        %v2756 = vadd.f32 0.0, %v2755
        %v2757 = vpop.f32.mrb[0].mxu0
        %v2758 = vpop.f32.mrb[0].mxu0
        %v2759 = vadd.f32 0.0, %v2758
        %v2760 = vpop.f32.mrb[0].mxu0
        %2761 = vmatprep.mubr.bf16.mxu0 0
        %2762 = vmatmul.mubr.bf16.gmra.mrb[0].mxu0 %v2691
        %v2763 = vpop.f32.mrb[0].mxu0
        %v2764 = vadd.f32 0.0, %v2763
        %v2765 = vpop.f32.mrb[0].mxu0
        %v2766 = vpop.f32.mrb[0].mxu0
        %v2767 = vadd.f32 0.0, %v2766
        %v2768 = vpop.f32.mrb[0].mxu0
        %2769 = vdwg.mxu0
        %v2770 = vsel %vm1268, %v2740, -inf
        %2771 = vmax.xlane.f32.xlu0 %v2770
        %v2772 = vpop.xlane.xlu0 %2771
        %v2773 = vsel %vm1268, %v2743, -inf
        %2774 = vmax.xlane.f32.xlu0 %v2773
        %v2775 = vpop.xlane.xlu0 %2774
        %v2776 = vsel %vm1268, %v2748, -inf
        %2777 = vmax.xlane.f32.xlu0 %v2776
        %v2778 = vpop.xlane.xlu0 %2777
        %v2779 = vsel %vm1268, %v2751, -inf
        %2780 = vmax.xlane.f32.xlu0 %v2779
        %v2781 = vpop.xlane.xlu0 %2780
        %v2782 = vsel %vm1268, %v2756, -inf
        %2783 = vmax.xlane.f32.xlu0 %v2782
        %v2784 = vpop.xlane.xlu0 %2783
        %v2785 = vsel %vm1268, %v2759, -inf
        %2786 = vmax.xlane.f32.xlu0 %v2785
        %v2787 = vpop.xlane.xlu0 %2786
        %v2788 = vsel %vm1268, %v2764, -inf
        %2789 = vmax.xlane.f32.xlu0 %v2788
        %v2790 = vpop.xlane.xlu0 %2789
        %v2791 = vsel %vm1268, %v2767, -inf
        %2792 = vmax.xlane.f32.xlu0 %v2791
        %v2793 = vpop.xlane.xlu0 %2792
        %v2794 = vsub.f32 %v2740, %v2772
        %v2795 = vsub.f32 %v2743, %v2775
        %v2796 = vsub.f32 %v2748, %v2778
        %v2797 = vsub.f32 %v2751, %v2781
        %v2798 = vsub.f32 %v2756, %v2784
        %v2799 = vsub.f32 %v2759, %v2787
        %v2800 = vsub.f32 %v2764, %v2790
        %v2801 = vsub.f32 %v2767, %v2793
        %v2802 = vmul.f32 %v2794, 1.442695
        %v2803 = vpow.pop %v2802
        %v2804 = vmul.f32 %v2795, 1.442695
        %v2805 = vpow.pop %v2804
        %v2806 = vmul.f32 %v2796, 1.442695
        %v2807 = vpow.pop %v2806
        %v2808 = vmul.f32 %v2797, 1.442695
        %v2809 = vpow.pop %v2808
        %v2810 = vmul.f32 %v2798, 1.442695
        %v2811 = vpow.pop %v2810
        %v2812 = vmul.f32 %v2799, 1.442695
        %v2813 = vpow.pop %v2812
        %v2814 = vmul.f32 %v2800, 1.442695
        %v2815 = vpow.pop %v2814
        %v2816 = vmul.f32 %v2801, 1.442695
        %v2817 = vpow.pop %v2816
        %v2818 = vsel %vm1268, %v2803, 0.0
        %2819 = vadd.xlane.f32.xlu0 %v2818
        %v2820 = vpop.xlane.xlu0 %2819
        %v2821 = vsel %vm1268, %v2805, 0.0
        %2822 = vadd.xlane.f32.xlu0 %v2821
        %v2823 = vpop.xlane.xlu0 %2822
        %v2824 = vsel %vm1268, %v2807, 0.0
        %2825 = vadd.xlane.f32.xlu0 %v2824
        %v2826 = vpop.xlane.xlu0 %2825
        %v2827 = vsel %vm1268, %v2809, 0.0
        %2828 = vadd.xlane.f32.xlu0 %v2827
        %v2829 = vpop.xlane.xlu0 %2828
        %v2830 = vsel %vm1268, %v2811, 0.0
        %2831 = vadd.xlane.f32.xlu0 %v2830
        %v2832 = vpop.xlane.xlu0 %2831
        %v2833 = vsel %vm1268, %v2813, 0.0
        %2834 = vadd.xlane.f32.xlu0 %v2833
        %v2835 = vpop.xlane.xlu0 %2834
        %v2836 = vsel %vm1268, %v2815, 0.0
        %2837 = vadd.xlane.f32.xlu0 %v2836
        %v2838 = vpop.xlane.xlu0 %2837
        %v2839 = vsel %vm1268, %v2817, 0.0
        %2840 = vadd.xlane.f32.xlu0 %v2839
        %v2841 = vpop.xlane.xlu0 %2840
        %v2842 = vrcp.pop %v2820
        %v2843 = vrcp.pop %v2823
        %v2844 = vrcp.pop %v2826
        %v2845 = vrcp.pop %v2829
        %v2846 = vrcp.pop %v2832
        %v2847 = vrcp.pop %v2835
        %v2848 = vrcp.pop %v2838
        %v2849 = vrcp.pop %v2841
        %v2850 = vmul.f32 %v2803, %v2842
        %v2851 = vmul.f32 %v2805, %v2843
        %v2852 = vmul.f32 %v2807, %v2844
        %v2853 = vmul.f32 %v2809, %v2845
        %v2854 = vmul.f32 %v2811, %v2846
        %v2855 = vmul.f32 %v2813, %v2847
        %v2856 = vmul.f32 %v2815, %v2848
        %v2857 = vmul.f32 %v2817, %v2849
        %v2858 = vpack.c.bf16 %v2851, %v2850
        %v2859 = vpack.c.bf16 %v2853, %v2852
        %v2860 = vpack.c.bf16 %v2855, %v2854
        %v2861 = vpack.c.bf16 %v2857, %v2856
        %2866 = vrot.lane.b32.xlu0 %v1174, 96
        %v2867 = vpop.permute.xlu0 %2866
        %2868 = vrot.lane.b32.xlu0 %v1175, 96
        %v2869 = vpop.permute.xlu0 %2868
        %2870 = vrot.lane.b32.xlu0 %v1176, 96
        %v2871 = vpop.permute.xlu0 %2870
        %2872 = vrot.lane.b32.xlu0 %v1177, 96
        %v2873 = vpop.permute.xlu0 %2872
        %v2879 = vsel %vm1268, %v2858, 0
        %v2882 = vsel %vm1268, %v2859, 0
        %v2885 = vsel %vm1268, %v2860, 0
        %v2888 = vsel %vm1268, %v2861, 0
        %2890 = vmatprep.subr.bf16.mxu0 0
        %2891 = vmatpush1.bf16.msra.mxu0 %v2867
        %2892 = vmatprep.subr.bf16.mxu0 0
        %2893 = vmatpush1.bf16.msra.mxu0 %v2869
        %2894 = vmatprep.subr.bf16.mxu0 0
        %2895 = vmatpush1.bf16.msra.mxu0 %v2871
        %2896 = vmatprep.subr.bf16.mxu0 0
        %2897 = vmatpush1.bf16.msra.mxu0 %v2873
        %2898 = vmatprep.subr.bf16.mxu0 0
        %2899 = vmatpush1.bf16.msra.mxu0 0
        %2900 = vmatprep.subr.bf16.mxu0 0
        %2901 = vmatpush1.bf16.msra.mxu0 0
        %2902 = vmatprep.subr.bf16.mxu0 0
        %2903 = vmatpush1.bf16.msra.mxu0 0
        %2904 = vmatprep.subr.bf16.mxu0 0
        %2905 = vmatpush1.bf16.msra.mxu0 0
        %2906 = vmatprep.subr.bf16.mxu0 0
        %2907 = vmatpush1.bf16.msra.mxu0 0
        %2908 = vmatprep.subr.bf16.mxu0 0
        %2909 = vmatpush1.bf16.msra.mxu0 0
        %2910 = vmatprep.subr.bf16.mxu0 0
        %2911 = vmatpush1.bf16.msra.mxu0 0
        %2912 = vmatprep.subr.bf16.mxu0 0
        %2913 = vmatpush1.bf16.msra.mxu0 0
        %2914 = vmatprep.subr.bf16.mxu0 0
        %2915 = vmatpush1.bf16.msra.mxu0 0
        %2916 = vmatprep.subr.bf16.mxu0 0
        %2917 = vmatpush1.bf16.msra.mxu0 0
        %2918 = vmatprep.subr.bf16.mxu0 0
        %2919 = vmatpush1.bf16.msra.mxu0 0
        %2920 = vmatprep.subr.bf16.mxu0 0
        %2921 = vmatpush1.bf16.msra.mxu0 0
        %2922 = vmatprep.mubr.bf16.mxu0 0
        %2923 = vmatmul.mubr.bf16.gmra.mrb[0].mxu0 %v2879
        %v2924 = vpop.f32.mrb[0].mxu0
        %v2925 = vadd.f32 0.0, %v2924
        %v2926 = vpop.f32.mrb[0].mxu0
        %v2927 = vpop.f32.mrb[0].mxu0
        %v2928 = vadd.f32 0.0, %v2927
        %v2929 = vpop.f32.mrb[0].mxu0
        %2930 = vmatprep.mubr.bf16.mxu0 0
        %2931 = vmatmul.mubr.bf16.gmra.mrb[0].mxu0 %v2882
        %v2932 = vpop.f32.mrb[0].mxu0
        %v2933 = vadd.f32 0.0, %v2932
        %v2934 = vpop.f32.mrb[0].mxu0
        %v2935 = vpop.f32.mrb[0].mxu0
        %v2936 = vadd.f32 0.0, %v2935
        %v2937 = vpop.f32.mrb[0].mxu0
        %2938 = vmatprep.mubr.bf16.mxu0 0
        %2939 = vmatmul.mubr.bf16.gmra.mrb[0].mxu0 %v2885
        %v2940 = vpop.f32.mrb[0].mxu0
        %v2941 = vadd.f32 0.0, %v2940
        %v2942 = vpop.f32.mrb[0].mxu0
        %v2943 = vpop.f32.mrb[0].mxu0
        %v2944 = vadd.f32 0.0, %v2943
        %v2945 = vpop.f32.mrb[0].mxu0
        %2946 = vmatprep.mubr.bf16.mxu0 0
        %2947 = vmatmul.mubr.bf16.gmra.mrb[0].mxu0 %v2888
        %v2948 = vpop.f32.mrb[0].mxu0
        %v2949 = vadd.f32 0.0, %v2948
        %v2950 = vpop.f32.mrb[0].mxu0
        %v2951 = vpop.f32.mrb[0].mxu0
        %v2952 = vadd.f32 0.0, %v2951
        %v2953 = vpop.f32.mrb[0].mxu0
        %2954 = vdwg.mxu0
        %v2955 = vpack.c.bf16 %v2928, %v2925
        %v2956 = vpack.c.bf16 %v2936, %v2933
        %v2957 = vpack.c.bf16 %v2944, %v2941
        %v2958 = vpack.c.bf16 %v2952, %v2949
        %2963 = vrot.lane.b32.xlu0 %v2955, 32
        %v2964 = vpop.permute.xlu0 %2963
        %2965 = vrot.lane.b32.xlu0 %v2956, 32
        %v2966 = vpop.permute.xlu0 %2965
        %2967 = vrot.lane.b32.xlu0 %v2957, 32
        %v2968 = vpop.permute.xlu0 %2967
        %2969 = vrot.lane.b32.xlu0 %v2958, 32
        %v2970 = vpop.permute.xlu0 %2969
        %2975 = vst.msk [vmem:[#allocation2 + $0x20] sm:$0xff] %vm1764, %v2964
        %2976 = vst.msk [vmem:[#allocation2 + $0x28] sm:$0xff] %vm1764, %v2966
        %2977 = vst.msk [vmem:[#allocation2 + $0x30] sm:$0xff] %vm1764, %v2968
        %2978 = vst.msk [vmem:[#allocation2 + $0x38] sm:$0xff] %vm1764, %v2970
        %2979 = vrot.lane.b32.xlu0 %v1158, 64
        %v2980 = vpop.permute.xlu0 %2979
        %2981 = vrot.lane.b32.xlu0 %v1159, 64
        %v2982 = vpop.permute.xlu0 %2981
        %2983 = vrot.lane.b32.xlu0 %v1160, 64
        %v2984 = vpop.permute.xlu0 %2983
        %2985 = vrot.lane.b32.xlu0 %v1161, 64
        %v2986 = vpop.permute.xlu0 %2985
        %2987 = vrot.lane.b32.xlu0 %v1166, 64
        %v2988 = vpop.permute.xlu0 %2987
        %2989 = vrot.lane.b32.xlu0 %v1167, 64
        %v2990 = vpop.permute.xlu0 %2989
        %2991 = vrot.lane.b32.xlu0 %v1168, 64
        %v2992 = vpop.permute.xlu0 %2991
        %2993 = vrot.lane.b32.xlu0 %v1169, 64
        %v2994 = vpop.permute.xlu0 %2993
        %v2996 = vsel %vm1178, %v2980, 0
        %v2999 = vsel %vm1178, %v2982, 0
        %v3002 = vsel %vm1178, %v2984, 0
        %v3005 = vsel %vm1178, %v2986, 0
        %v3008 = vsel %vm1178, %v2988, 0
        %v3011 = vsel %vm1178, %v2990, 0
        %v3014 = vsel %vm1178, %v2992, 0
        %v3017 = vsel %vm1178, %v2994, 0
        %3019 = vmatprep.subr.bf16.mxu0 0
        %3020 = vmatpush1.bf16.xpose.msra.mxu0 %v3008
        %3021 = vmatprep.subr.bf16.mxu0 0
        %3022 = vmatpush1.bf16.xpose.msra.mxu0 %v3011
        %3023 = vmatprep.subr.bf16.mxu0 0
        %3024 = vmatpush1.bf16.xpose.msra.mxu0 %v3014
        %3025 = vmatprep.subr.bf16.mxu0 0
        %3026 = vmatpush1.bf16.xpose.msra.mxu0 %v3017
        %3027 = vmatprep.subr.bf16.mxu0 0
        %3028 = vmatpush1.bf16.xpose.msra.mxu0 0
        %3029 = vmatprep.subr.bf16.mxu0 0
        %3030 = vmatpush1.bf16.xpose.msra.mxu0 0
        %3031 = vmatprep.subr.bf16.mxu0 0
        %3032 = vmatpush1.bf16.xpose.msra.mxu0 0
        %3033 = vmatprep.subr.bf16.mxu0 0
        %3034 = vmatpush1.bf16.xpose.msra.mxu0 0
        %3035 = vmatprep.subr.bf16.mxu0 0
        %3036 = vmatpush1.bf16.xpose.msra.mxu0 0
        %3037 = vmatprep.subr.bf16.mxu0 0
        %3038 = vmatpush1.bf16.xpose.msra.mxu0 0
        %3039 = vmatprep.subr.bf16.mxu0 0
        %3040 = vmatpush1.bf16.xpose.msra.mxu0 0
        %3041 = vmatprep.subr.bf16.mxu0 0
        %3042 = vmatpush1.bf16.xpose.msra.mxu0 0
        %3043 = vmatprep.subr.bf16.mxu0 0
        %3044 = vmatpush1.bf16.xpose.msra.mxu0 0
        %3045 = vmatprep.subr.bf16.mxu0 0
        %3046 = vmatpush1.bf16.xpose.msra.mxu0 0
        %3047 = vmatprep.subr.bf16.mxu0 0
        %3048 = vmatpush1.bf16.xpose.msra.mxu0 0
        %3049 = vmatprep.subr.bf16.mxu0 0
        %3050 = vmatpush1.bf16.xpose.msra.mxu0 0
        %3051 = vmatprep.mubr.bf16.mxu0 0
        %3052 = vmatmul.mubr.bf16.gmra.mrb[0].mxu0 %v2996
        %v3053 = vpop.f32.mrb[0].mxu0
        %v3054 = vadd.f32 0.0, %v3053
        %v3055 = vpop.f32.mrb[0].mxu0
        %v3056 = vpop.f32.mrb[0].mxu0
        %v3057 = vadd.f32 0.0, %v3056
        %v3058 = vpop.f32.mrb[0].mxu0
        %3059 = vmatprep.mubr.bf16.mxu0 0
        %3060 = vmatmul.mubr.bf16.gmra.mrb[0].mxu0 %v2999
        %v3061 = vpop.f32.mrb[0].mxu0
        %v3062 = vadd.f32 0.0, %v3061
        %v3063 = vpop.f32.mrb[0].mxu0
        %v3064 = vpop.f32.mrb[0].mxu0
        %v3065 = vadd.f32 0.0, %v3064
        %v3066 = vpop.f32.mrb[0].mxu0
        %3067 = vmatprep.mubr.bf16.mxu0 0
        %3068 = vmatmul.mubr.bf16.gmra.mrb[0].mxu0 %v3002
        %v3069 = vpop.f32.mrb[0].mxu0
        %v3070 = vadd.f32 0.0, %v3069
        %v3071 = vpop.f32.mrb[0].mxu0
        %v3072 = vpop.f32.mrb[0].mxu0
        %v3073 = vadd.f32 0.0, %v3072
        %v3074 = vpop.f32.mrb[0].mxu0
        %3075 = vmatprep.mubr.bf16.mxu0 0
        %3076 = vmatmul.mubr.bf16.gmra.mrb[0].mxu0 %v3005
        %v3077 = vpop.f32.mrb[0].mxu0
        %v3078 = vadd.f32 0.0, %v3077
        %v3079 = vpop.f32.mrb[0].mxu0
        %v3080 = vpop.f32.mrb[0].mxu0
        %v3081 = vadd.f32 0.0, %v3080
        %v3082 = vpop.f32.mrb[0].mxu0
        %3083 = vdwg.mxu0
        %v3084 = vsel %vm1268, %v3054, -inf
        %3085 = vmax.xlane.f32.xlu0 %v3084
        %v3086 = vpop.xlane.xlu0 %3085
        %v3087 = vsel %vm1268, %v3057, -inf
        %3088 = vmax.xlane.f32.xlu0 %v3087
        %v3089 = vpop.xlane.xlu0 %3088
        %v3090 = vsel %vm1268, %v3062, -inf
        %3091 = vmax.xlane.f32.xlu0 %v3090
        %v3092 = vpop.xlane.xlu0 %3091
        %v3093 = vsel %vm1268, %v3065, -inf
        %3094 = vmax.xlane.f32.xlu0 %v3093
        %v3095 = vpop.xlane.xlu0 %3094
        %v3096 = vsel %vm1268, %v3070, -inf
        %3097 = vmax.xlane.f32.xlu0 %v3096
        %v3098 = vpop.xlane.xlu0 %3097
        %v3099 = vsel %vm1268, %v3073, -inf
        %3100 = vmax.xlane.f32.xlu0 %v3099
        %v3101 = vpop.xlane.xlu0 %3100
        %v3102 = vsel %vm1268, %v3078, -inf
        %3103 = vmax.xlane.f32.xlu0 %v3102
        %v3104 = vpop.xlane.xlu0 %3103
        %v3105 = vsel %vm1268, %v3081, -inf
        %3106 = vmax.xlane.f32.xlu0 %v3105
        %v3107 = vpop.xlane.xlu0 %3106
        %v3108 = vsub.f32 %v3054, %v3086
        %v3109 = vsub.f32 %v3057, %v3089
        %v3110 = vsub.f32 %v3062, %v3092
        %v3111 = vsub.f32 %v3065, %v3095
        %v3112 = vsub.f32 %v3070, %v3098
        %v3113 = vsub.f32 %v3073, %v3101
        %v3114 = vsub.f32 %v3078, %v3104
        %v3115 = vsub.f32 %v3081, %v3107
        %v3116 = vmul.f32 %v3108, 1.442695
        %v3117 = vpow.pop %v3116
        %v3118 = vmul.f32 %v3109, 1.442695
        %v3119 = vpow.pop %v3118
        %v3120 = vmul.f32 %v3110, 1.442695
        %v3121 = vpow.pop %v3120
        %v3122 = vmul.f32 %v3111, 1.442695
        %v3123 = vpow.pop %v3122
        %v3124 = vmul.f32 %v3112, 1.442695
        %v3125 = vpow.pop %v3124
        %v3126 = vmul.f32 %v3113, 1.442695
        %v3127 = vpow.pop %v3126
        %v3128 = vmul.f32 %v3114, 1.442695
        %v3129 = vpow.pop %v3128
        %v3130 = vmul.f32 %v3115, 1.442695
        %v3131 = vpow.pop %v3130
        %v3132 = vsel %vm1268, %v3117, 0.0
        %3133 = vadd.xlane.f32.xlu0 %v3132
        %v3134 = vpop.xlane.xlu0 %3133
        %v3135 = vsel %vm1268, %v3119, 0.0
        %3136 = vadd.xlane.f32.xlu0 %v3135
        %v3137 = vpop.xlane.xlu0 %3136
        %v3138 = vsel %vm1268, %v3121, 0.0
        %3139 = vadd.xlane.f32.xlu0 %v3138
        %v3140 = vpop.xlane.xlu0 %3139
        %v3141 = vsel %vm1268, %v3123, 0.0
        %3142 = vadd.xlane.f32.xlu0 %v3141
        %v3143 = vpop.xlane.xlu0 %3142
        %v3144 = vsel %vm1268, %v3125, 0.0
        %3145 = vadd.xlane.f32.xlu0 %v3144
        %v3146 = vpop.xlane.xlu0 %3145
        %v3147 = vsel %vm1268, %v3127, 0.0
        %3148 = vadd.xlane.f32.xlu0 %v3147
        %v3149 = vpop.xlane.xlu0 %3148
        %v3150 = vsel %vm1268, %v3129, 0.0
        %3151 = vadd.xlane.f32.xlu0 %v3150
        %v3152 = vpop.xlane.xlu0 %3151
        %v3153 = vsel %vm1268, %v3131, 0.0
        %3154 = vadd.xlane.f32.xlu0 %v3153
        %v3155 = vpop.xlane.xlu0 %3154
        %v3156 = vrcp.pop %v3134
        %v3157 = vrcp.pop %v3137
        %v3158 = vrcp.pop %v3140
        %v3159 = vrcp.pop %v3143
        %v3160 = vrcp.pop %v3146
        %v3161 = vrcp.pop %v3149
        %v3162 = vrcp.pop %v3152
        %v3163 = vrcp.pop %v3155
        %v3164 = vmul.f32 %v3117, %v3156
        %v3165 = vmul.f32 %v3119, %v3157
        %v3166 = vmul.f32 %v3121, %v3158
        %v3167 = vmul.f32 %v3123, %v3159
        %v3168 = vmul.f32 %v3125, %v3160
        %v3169 = vmul.f32 %v3127, %v3161
        %v3170 = vmul.f32 %v3129, %v3162
        %v3171 = vmul.f32 %v3131, %v3163
        %v3172 = vpack.c.bf16 %v3165, %v3164
        %v3173 = vpack.c.bf16 %v3167, %v3166
        %v3174 = vpack.c.bf16 %v3169, %v3168
        %v3175 = vpack.c.bf16 %v3171, %v3170
        %3176 = vrot.lane.b32.xlu0 %v1174, 64
        %v3177 = vpop.permute.xlu0 %3176
        %3178 = vrot.lane.b32.xlu0 %v1175, 64
        %v3179 = vpop.permute.xlu0 %3178
        %3180 = vrot.lane.b32.xlu0 %v1176, 64
        %v3181 = vpop.permute.xlu0 %3180
        %3182 = vrot.lane.b32.xlu0 %v1177, 64
        %v3183 = vpop.permute.xlu0 %3182
        %v3189 = vsel %vm1268, %v3172, 0
        %v3192 = vsel %vm1268, %v3173, 0
        %v3195 = vsel %vm1268, %v3174, 0
        %v3198 = vsel %vm1268, %v3175, 0
        %3200 = vmatprep.subr.bf16.mxu0 0
        %3201 = vmatpush1.bf16.msra.mxu0 %v3177
        %3202 = vmatprep.subr.bf16.mxu0 0
        %3203 = vmatpush1.bf16.msra.mxu0 %v3179
        %3204 = vmatprep.subr.bf16.mxu0 0
        %3205 = vmatpush1.bf16.msra.mxu0 %v3181
        %3206 = vmatprep.subr.bf16.mxu0 0
        %3207 = vmatpush1.bf16.msra.mxu0 %v3183
        %3208 = vmatprep.subr.bf16.mxu0 0
        %3209 = vmatpush1.bf16.msra.mxu0 0
        %3210 = vmatprep.subr.bf16.mxu0 0
        %3211 = vmatpush1.bf16.msra.mxu0 0
        %3212 = vmatprep.subr.bf16.mxu0 0
        %3213 = vmatpush1.bf16.msra.mxu0 0
        %3214 = vmatprep.subr.bf16.mxu0 0
        %3215 = vmatpush1.bf16.msra.mxu0 0
        %3216 = vmatprep.subr.bf16.mxu0 0
        %3217 = vmatpush1.bf16.msra.mxu0 0
        %3218 = vmatprep.subr.bf16.mxu0 0
        %3219 = vmatpush1.bf16.msra.mxu0 0
        %3220 = vmatprep.subr.bf16.mxu0 0
        %3221 = vmatpush1.bf16.msra.mxu0 0
        %3222 = vmatprep.subr.bf16.mxu0 0
        %3223 = vmatpush1.bf16.msra.mxu0 0
        %3224 = vmatprep.subr.bf16.mxu0 0
        %3225 = vmatpush1.bf16.msra.mxu0 0
        %3226 = vmatprep.subr.bf16.mxu0 0
        %3227 = vmatpush1.bf16.msra.mxu0 0
        %3228 = vmatprep.subr.bf16.mxu0 0
        %3229 = vmatpush1.bf16.msra.mxu0 0
        %3230 = vmatprep.subr.bf16.mxu0 0
        %3231 = vmatpush1.bf16.msra.mxu0 0
        %3232 = vmatprep.mubr.bf16.mxu0 0
        %3233 = vmatmul.mubr.bf16.gmra.mrb[0].mxu0 %v3189
        %v3234 = vpop.f32.mrb[0].mxu0
        %v3235 = vadd.f32 0.0, %v3234
        %v3236 = vpop.f32.mrb[0].mxu0
        %v3237 = vpop.f32.mrb[0].mxu0
        %v3238 = vadd.f32 0.0, %v3237
        %v3239 = vpop.f32.mrb[0].mxu0
        %3240 = vmatprep.mubr.bf16.mxu0 0
        %3241 = vmatmul.mubr.bf16.gmra.mrb[0].mxu0 %v3192
        %v3242 = vpop.f32.mrb[0].mxu0
        %v3243 = vadd.f32 0.0, %v3242
        %v3244 = vpop.f32.mrb[0].mxu0
        %v3245 = vpop.f32.mrb[0].mxu0
        %v3246 = vadd.f32 0.0, %v3245
        %v3247 = vpop.f32.mrb[0].mxu0
        %3248 = vmatprep.mubr.bf16.mxu0 0
        %3249 = vmatmul.mubr.bf16.gmra.mrb[0].mxu0 %v3195
        %v3250 = vpop.f32.mrb[0].mxu0
        %v3251 = vadd.f32 0.0, %v3250
        %v3252 = vpop.f32.mrb[0].mxu0
        %v3253 = vpop.f32.mrb[0].mxu0
        %v3254 = vadd.f32 0.0, %v3253
        %v3255 = vpop.f32.mrb[0].mxu0
        %3256 = vmatprep.mubr.bf16.mxu0 0
        %3257 = vmatmul.mubr.bf16.gmra.mrb[0].mxu0 %v3198
        %v3258 = vpop.f32.mrb[0].mxu0
        %v3259 = vadd.f32 0.0, %v3258
        %v3260 = vpop.f32.mrb[0].mxu0
        %v3261 = vpop.f32.mrb[0].mxu0
        %v3262 = vadd.f32 0.0, %v3261
        %v3263 = vpop.f32.mrb[0].mxu0
        %3264 = vdwg.mxu0
        %v3265 = vpack.c.bf16 %v3238, %v3235
        %v3266 = vpack.c.bf16 %v3246, %v3243
        %v3267 = vpack.c.bf16 %v3254, %v3251
        %v3268 = vpack.c.bf16 %v3262, %v3259
        %3273 = vrot.lane.b32.xlu0 %v3265, 64
        %v3274 = vpop.permute.xlu0 %3273
        %3275 = vrot.lane.b32.xlu0 %v3266, 64
        %v3276 = vpop.permute.xlu0 %3275
        %3277 = vrot.lane.b32.xlu0 %v3267, 64
        %v3278 = vpop.permute.xlu0 %3277
        %3279 = vrot.lane.b32.xlu0 %v3268, 64
        %v3280 = vpop.permute.xlu0 %3279
        %3285 = vst.msk [vmem:[#allocation2 + $0x20] sm:$0xff] %vm2075, %v3274
        %3286 = vst.msk [vmem:[#allocation2 + $0x28] sm:$0xff] %vm2075, %v3276
        %3287 = vst.msk [vmem:[#allocation2 + $0x30] sm:$0xff] %vm2075, %v3278
        %3288 = vst.msk [vmem:[#allocation2 + $0x38] sm:$0xff] %vm2075, %v3280
        %3289 = vrot.lane.b32.xlu0 %v1158, 32
        %v3290 = vpop.permute.xlu0 %3289
        %3291 = vrot.lane.b32.xlu0 %v1159, 32
        %v3292 = vpop.permute.xlu0 %3291
        %3293 = vrot.lane.b32.xlu0 %v1160, 32
        %v3294 = vpop.permute.xlu0 %3293
        %3295 = vrot.lane.b32.xlu0 %v1161, 32
        %v3296 = vpop.permute.xlu0 %3295
        %3297 = vrot.lane.b32.xlu0 %v1166, 32
        %v3298 = vpop.permute.xlu0 %3297
        %3299 = vrot.lane.b32.xlu0 %v1167, 32
        %v3300 = vpop.permute.xlu0 %3299
        %3301 = vrot.lane.b32.xlu0 %v1168, 32
        %v3302 = vpop.permute.xlu0 %3301
        %3303 = vrot.lane.b32.xlu0 %v1169, 32
        %v3304 = vpop.permute.xlu0 %3303
        %v3306 = vsel %vm1178, %v3290, 0
        %v3309 = vsel %vm1178, %v3292, 0
        %v3312 = vsel %vm1178, %v3294, 0
        %v3315 = vsel %vm1178, %v3296, 0
        %v3318 = vsel %vm1178, %v3298, 0
        %v3321 = vsel %vm1178, %v3300, 0
        %v3324 = vsel %vm1178, %v3302, 0
        %v3327 = vsel %vm1178, %v3304, 0
        %3329 = vmatprep.subr.bf16.mxu0 0
        %3330 = vmatpush1.bf16.xpose.msra.mxu0 %v3318
        %3331 = vmatprep.subr.bf16.mxu0 0
        %3332 = vmatpush1.bf16.xpose.msra.mxu0 %v3321
        %3333 = vmatprep.subr.bf16.mxu0 0
        %3334 = vmatpush1.bf16.xpose.msra.mxu0 %v3324
        %3335 = vmatprep.subr.bf16.mxu0 0
        %3336 = vmatpush1.bf16.xpose.msra.mxu0 %v3327
        %3337 = vmatprep.subr.bf16.mxu0 0
        %3338 = vmatpush1.bf16.xpose.msra.mxu0 0
        %3339 = vmatprep.subr.bf16.mxu0 0
        %3340 = vmatpush1.bf16.xpose.msra.mxu0 0
        %3341 = vmatprep.subr.bf16.mxu0 0
        %3342 = vmatpush1.bf16.xpose.msra.mxu0 0
        %3343 = vmatprep.subr.bf16.mxu0 0
        %3344 = vmatpush1.bf16.xpose.msra.mxu0 0
        %3345 = vmatprep.subr.bf16.mxu0 0
        %3346 = vmatpush1.bf16.xpose.msra.mxu0 0
        %3347 = vmatprep.subr.bf16.mxu0 0
        %3348 = vmatpush1.bf16.xpose.msra.mxu0 0
        %3349 = vmatprep.subr.bf16.mxu0 0
        %3350 = vmatpush1.bf16.xpose.msra.mxu0 0
        %3351 = vmatprep.subr.bf16.mxu0 0
        %3352 = vmatpush1.bf16.xpose.msra.mxu0 0
        %3353 = vmatprep.subr.bf16.mxu0 0
        %3354 = vmatpush1.bf16.xpose.msra.mxu0 0
        %3355 = vmatprep.subr.bf16.mxu0 0
        %3356 = vmatpush1.bf16.xpose.msra.mxu0 0
        %3357 = vmatprep.subr.bf16.mxu0 0
        %3358 = vmatpush1.bf16.xpose.msra.mxu0 0
        %3359 = vmatprep.subr.bf16.mxu0 0
        %3360 = vmatpush1.bf16.xpose.msra.mxu0 0
        %3361 = vmatprep.mubr.bf16.mxu0 0
        %3362 = vmatmul.mubr.bf16.gmra.mrb[0].mxu0 %v3306
        %v3363 = vpop.f32.mrb[0].mxu0
        %v3364 = vadd.f32 0.0, %v3363
        %v3365 = vpop.f32.mrb[0].mxu0
        %v3366 = vpop.f32.mrb[0].mxu0
        %v3367 = vadd.f32 0.0, %v3366
        %v3368 = vpop.f32.mrb[0].mxu0
        %3369 = vmatprep.mubr.bf16.mxu0 0
        %3370 = vmatmul.mubr.bf16.gmra.mrb[0].mxu0 %v3309
        %v3371 = vpop.f32.mrb[0].mxu0
        %v3372 = vadd.f32 0.0, %v3371
        %v3373 = vpop.f32.mrb[0].mxu0
        %v3374 = vpop.f32.mrb[0].mxu0
        %v3375 = vadd.f32 0.0, %v3374
        %v3376 = vpop.f32.mrb[0].mxu0
        %3377 = vmatprep.mubr.bf16.mxu0 0
        %3378 = vmatmul.mubr.bf16.gmra.mrb[0].mxu0 %v3312
        %v3379 = vpop.f32.mrb[0].mxu0
        %v3380 = vadd.f32 0.0, %v3379
        %v3381 = vpop.f32.mrb[0].mxu0
        %v3382 = vpop.f32.mrb[0].mxu0
        %v3383 = vadd.f32 0.0, %v3382
        %v3384 = vpop.f32.mrb[0].mxu0
        %3385 = vmatprep.mubr.bf16.mxu0 0
        %3386 = vmatmul.mubr.bf16.gmra.mrb[0].mxu0 %v3315
        %v3387 = vpop.f32.mrb[0].mxu0
        %v3388 = vadd.f32 0.0, %v3387
        %v3389 = vpop.f32.mrb[0].mxu0
        %v3390 = vpop.f32.mrb[0].mxu0
        %v3391 = vadd.f32 0.0, %v3390
        %v3392 = vpop.f32.mrb[0].mxu0
        %3393 = vdwg.mxu0
        %v3394 = vsel %vm1268, %v3364, -inf
        %3395 = vmax.xlane.f32.xlu0 %v3394
        %v3396 = vpop.xlane.xlu0 %3395
        %v3397 = vsel %vm1268, %v3367, -inf
        %3398 = vmax.xlane.f32.xlu0 %v3397
        %v3399 = vpop.xlane.xlu0 %3398
        %v3400 = vsel %vm1268, %v3372, -inf
        %3401 = vmax.xlane.f32.xlu0 %v3400
        %v3402 = vpop.xlane.xlu0 %3401
        %v3403 = vsel %vm1268, %v3375, -inf
        %3404 = vmax.xlane.f32.xlu0 %v3403
        %v3405 = vpop.xlane.xlu0 %3404
        %v3406 = vsel %vm1268, %v3380, -inf
        %3407 = vmax.xlane.f32.xlu0 %v3406
        %v3408 = vpop.xlane.xlu0 %3407
        %v3409 = vsel %vm1268, %v3383, -inf
        %3410 = vmax.xlane.f32.xlu0 %v3409
        %v3411 = vpop.xlane.xlu0 %3410
        %v3412 = vsel %vm1268, %v3388, -inf
        %3413 = vmax.xlane.f32.xlu0 %v3412
        %v3414 = vpop.xlane.xlu0 %3413
        %v3415 = vsel %vm1268, %v3391, -inf
        %3416 = vmax.xlane.f32.xlu0 %v3415
        %v3417 = vpop.xlane.xlu0 %3416
        %v3418 = vsub.f32 %v3364, %v3396
        %v3419 = vsub.f32 %v3367, %v3399
        %v3420 = vsub.f32 %v3372, %v3402
        %v3421 = vsub.f32 %v3375, %v3405
        %v3422 = vsub.f32 %v3380, %v3408
        %v3423 = vsub.f32 %v3383, %v3411
        %v3424 = vsub.f32 %v3388, %v3414
        %v3425 = vsub.f32 %v3391, %v3417
        %v3426 = vmul.f32 %v3418, 1.442695
        %v3427 = vpow.pop %v3426
        %v3428 = vmul.f32 %v3419, 1.442695
        %v3429 = vpow.pop %v3428
        %v3430 = vmul.f32 %v3420, 1.442695
        %v3431 = vpow.pop %v3430
        %v3432 = vmul.f32 %v3421, 1.442695
        %v3433 = vpow.pop %v3432
        %v3434 = vmul.f32 %v3422, 1.442695
        %v3435 = vpow.pop %v3434
        %v3436 = vmul.f32 %v3423, 1.442695
        %v3437 = vpow.pop %v3436
        %v3438 = vmul.f32 %v3424, 1.442695
        %v3439 = vpow.pop %v3438
        %v3440 = vmul.f32 %v3425, 1.442695
        %v3441 = vpow.pop %v3440
        %v3442 = vsel %vm1268, %v3427, 0.0
        %3443 = vadd.xlane.f32.xlu0 %v3442
        %v3444 = vpop.xlane.xlu0 %3443
        %v3445 = vsel %vm1268, %v3429, 0.0
        %3446 = vadd.xlane.f32.xlu0 %v3445
        %v3447 = vpop.xlane.xlu0 %3446
        %v3448 = vsel %vm1268, %v3431, 0.0
        %3449 = vadd.xlane.f32.xlu0 %v3448
        %v3450 = vpop.xlane.xlu0 %3449
        %v3451 = vsel %vm1268, %v3433, 0.0
        %3452 = vadd.xlane.f32.xlu0 %v3451
        %v3453 = vpop.xlane.xlu0 %3452
        %v3454 = vsel %vm1268, %v3435, 0.0
        %3455 = vadd.xlane.f32.xlu0 %v3454
        %v3456 = vpop.xlane.xlu0 %3455
        %v3457 = vsel %vm1268, %v3437, 0.0
        %3458 = vadd.xlane.f32.xlu0 %v3457
        %v3459 = vpop.xlane.xlu0 %3458
        %v3460 = vsel %vm1268, %v3439, 0.0
        %3461 = vadd.xlane.f32.xlu0 %v3460
        %v3462 = vpop.xlane.xlu0 %3461
        %v3463 = vsel %vm1268, %v3441, 0.0
        %3464 = vadd.xlane.f32.xlu0 %v3463
        %v3465 = vpop.xlane.xlu0 %3464
        %v3466 = vrcp.pop %v3444
        %v3467 = vrcp.pop %v3447
        %v3468 = vrcp.pop %v3450
        %v3469 = vrcp.pop %v3453
        %v3470 = vrcp.pop %v3456
        %v3471 = vrcp.pop %v3459
        %v3472 = vrcp.pop %v3462
        %v3473 = vrcp.pop %v3465
        %v3474 = vmul.f32 %v3427, %v3466
        %v3475 = vmul.f32 %v3429, %v3467
        %v3476 = vmul.f32 %v3431, %v3468
        %v3477 = vmul.f32 %v3433, %v3469
        %v3478 = vmul.f32 %v3435, %v3470
        %v3479 = vmul.f32 %v3437, %v3471
        %v3480 = vmul.f32 %v3439, %v3472
        %v3481 = vmul.f32 %v3441, %v3473
        %v3482 = vpack.c.bf16 %v3475, %v3474
        %v3483 = vpack.c.bf16 %v3477, %v3476
        %v3484 = vpack.c.bf16 %v3479, %v3478
        %v3485 = vpack.c.bf16 %v3481, %v3480
        %3486 = vrot.lane.b32.xlu0 %v1174, 32
        %v3487 = vpop.permute.xlu0 %3486
        %3488 = vrot.lane.b32.xlu0 %v1175, 32
        %v3489 = vpop.permute.xlu0 %3488
        %3490 = vrot.lane.b32.xlu0 %v1176, 32
        %v3491 = vpop.permute.xlu0 %3490
        %3492 = vrot.lane.b32.xlu0 %v1177, 32
        %v3493 = vpop.permute.xlu0 %3492
        %v3499 = vsel %vm1268, %v3482, 0
        %v3502 = vsel %vm1268, %v3483, 0
        %v3505 = vsel %vm1268, %v3484, 0
        %v3508 = vsel %vm1268, %v3485, 0
        %3510 = vmatprep.subr.bf16.mxu0 0
        %3511 = vmatpush1.bf16.msra.mxu0 %v3487
        %3512 = vmatprep.subr.bf16.mxu0 0
        %3513 = vmatpush1.bf16.msra.mxu0 %v3489
        %3514 = vmatprep.subr.bf16.mxu0 0
        %3515 = vmatpush1.bf16.msra.mxu0 %v3491
        %3516 = vmatprep.subr.bf16.mxu0 0
        %3517 = vmatpush1.bf16.msra.mxu0 %v3493
        %3518 = vmatprep.subr.bf16.mxu0 0
        %3519 = vmatpush1.bf16.msra.mxu0 0
        %3520 = vmatprep.subr.bf16.mxu0 0
        %3521 = vmatpush1.bf16.msra.mxu0 0
        %3522 = vmatprep.subr.bf16.mxu0 0
        %3523 = vmatpush1.bf16.msra.mxu0 0
        %3524 = vmatprep.subr.bf16.mxu0 0
        %3525 = vmatpush1.bf16.msra.mxu0 0
        %3526 = vmatprep.subr.bf16.mxu0 0
        %3527 = vmatpush1.bf16.msra.mxu0 0
        %3528 = vmatprep.subr.bf16.mxu0 0
        %3529 = vmatpush1.bf16.msra.mxu0 0
        %3530 = vmatprep.subr.bf16.mxu0 0
        %3531 = vmatpush1.bf16.msra.mxu0 0
        %3532 = vmatprep.subr.bf16.mxu0 0
        %3533 = vmatpush1.bf16.msra.mxu0 0
        %3534 = vmatprep.subr.bf16.mxu0 0
        %3535 = vmatpush1.bf16.msra.mxu0 0
        %3536 = vmatprep.subr.bf16.mxu0 0
        %3537 = vmatpush1.bf16.msra.mxu0 0
        %3538 = vmatprep.subr.bf16.mxu0 0
        %3539 = vmatpush1.bf16.msra.mxu0 0
        %3540 = vmatprep.subr.bf16.mxu0 0
        %3541 = vmatpush1.bf16.msra.mxu0 0
        %3542 = vmatprep.mubr.bf16.mxu0 0
        %3543 = vmatmul.mubr.bf16.gmra.mrb[0].mxu0 %v3499
        %v3544 = vpop.f32.mrb[0].mxu0
        %v3545 = vadd.f32 0.0, %v3544
        %v3546 = vpop.f32.mrb[0].mxu0
        %v3547 = vpop.f32.mrb[0].mxu0
        %v3548 = vadd.f32 0.0, %v3547
        %v3549 = vpop.f32.mrb[0].mxu0
        %3550 = vmatprep.mubr.bf16.mxu0 0
        %3551 = vmatmul.mubr.bf16.gmra.mrb[0].mxu0 %v3502
        %v3552 = vpop.f32.mrb[0].mxu0
        %v3553 = vadd.f32 0.0, %v3552
        %v3554 = vpop.f32.mrb[0].mxu0
        %v3555 = vpop.f32.mrb[0].mxu0
        %v3556 = vadd.f32 0.0, %v3555
        %v3557 = vpop.f32.mrb[0].mxu0
        %3558 = vmatprep.mubr.bf16.mxu0 0
        %3559 = vmatmul.mubr.bf16.gmra.mrb[0].mxu0 %v3505
        %v3560 = vpop.f32.mrb[0].mxu0
        %v3561 = vadd.f32 0.0, %v3560
        %v3562 = vpop.f32.mrb[0].mxu0
        %v3563 = vpop.f32.mrb[0].mxu0
        %v3564 = vadd.f32 0.0, %v3563
        %v3565 = vpop.f32.mrb[0].mxu0
        %3566 = vmatprep.mubr.bf16.mxu0 0
        %3567 = vmatmul.mubr.bf16.gmra.mrb[0].mxu0 %v3508
        %v3568 = vpop.f32.mrb[0].mxu0
        %v3569 = vadd.f32 0.0, %v3568
        %v3570 = vpop.f32.mrb[0].mxu0
        %v3571 = vpop.f32.mrb[0].mxu0
        %v3572 = vadd.f32 0.0, %v3571
        %v3573 = vpop.f32.mrb[0].mxu0
        %3574 = vdwg.mxu0
        %v3575 = vpack.c.bf16 %v3548, %v3545
        %v3576 = vpack.c.bf16 %v3556, %v3553
        %v3577 = vpack.c.bf16 %v3564, %v3561
        %v3578 = vpack.c.bf16 %v3572, %v3569
        %3583 = vrot.lane.b32.xlu0 %v3575, 96
        %v3584 = vpop.permute.xlu0 %3583
        %3585 = vrot.lane.b32.xlu0 %v3576, 96
        %v3586 = vpop.permute.xlu0 %3585
        %3587 = vrot.lane.b32.xlu0 %v3577, 96
        %v3588 = vpop.permute.xlu0 %3587
        %3589 = vrot.lane.b32.xlu0 %v3578, 96
        %v3590 = vpop.permute.xlu0 %3589
        %3595 = vst.msk [vmem:[#allocation2 + $0x20] sm:$0xff] %vm2386, %v3584
        %3596 = vst.msk [vmem:[#allocation2 + $0x28] sm:$0xff] %vm2386, %v3586
        %3597 = vst.msk [vmem:[#allocation2 + $0x30] sm:$0xff] %vm2386, %v3588
        %3598 = vst.msk [vmem:[#allocation2 + $0x38] sm:$0xff] %vm2386, %v3590
        %v3599 = vld [vmem:[#allocation2] sm:$0xff]
        %v3600 = vld [vmem:[#allocation2 + $0x8] sm:$0xff]
        %v3601 = vld [vmem:[#allocation2 + $0x10] sm:$0xff]
        %v3602 = vld [vmem:[#allocation2 + $0x18] sm:$0xff]
        %v3603 = vld [vmem:[#allocation2 + $0x20] sm:$0xff]
        %v3604 = vld [vmem:[#allocation2 + $0x28] sm:$0xff]
        %v3605 = vld [vmem:[#allocation2 + $0x30] sm:$0xff]
        %v3606 = vld [vmem:[#allocation2 + $0x38] sm:$0xff]
        %v3607 = vld [vmem:[#allocation8] sm:$0xf]
        %v3608 = vld [vmem:[#allocation8 + $0x4] sm:$0xf]
        %v3609 = vld [vmem:[#allocation8 + $0x8] sm:$0xf]
        %v3610 = vld [vmem:[#allocation8 + $0xc] sm:$0xf]
        %v3611 = vld [vmem:[#allocation8 + $0x10] sm:$0xf]
        %v3612 = vld [vmem:[#allocation8 + $0x14] sm:$0xf]
        %v3613 = vld [vmem:[#allocation8 + $0x18] sm:$0xf]
        %v3614 = vld [vmem:[#allocation8 + $0x1c] sm:$0xf]
        %v3615 = vld [vmem:[#allocation8 + $0x20] sm:$0xf]
        %v3616 = vld [vmem:[#allocation8 + $0x24] sm:$0xf]
        %v3617 = vld [vmem:[#allocation8 + $0x28] sm:$0xf]
        %v3618 = vld [vmem:[#allocation8 + $0x2c] sm:$0xf]
        %v3619 = vld [vmem:[#allocation8 + $0x30] sm:$0xf]
        %v3620 = vld [vmem:[#allocation8 + $0x34] sm:$0xf]
        %v3621 = vld [vmem:[#allocation8 + $0x38] sm:$0xf]
        %v3622 = vld [vmem:[#allocation8 + $0x3c] sm:$0xf]
        %v3623 = vld [vmem:[%s6] sm:$0x1]
        %v3625 = vlaneseq
        %v3626 = vshrl.u32 %v3625, 7
        %v3627 = vsub.s32 0, %v3626
        %v3628 = vrot.slane %v3623, %v3627
        %v3646 = vunpack.c.l.b16 %v3607
        %v3647 = vunpack.c.l.b16 %v3608
        %v3648 = vunpack.c.l.b16 %v3609
        %v3649 = vunpack.c.l.b16 %v3610
        %v3650 = vunpack.c.l.b16 %v3611
        %v3651 = vunpack.c.l.b16 %v3612
        %v3652 = vunpack.c.l.b16 %v3613
        %v3653 = vunpack.c.l.b16 %v3614
        %v3654 = vunpack.c.l.b16 %v3615
        %v3655 = vunpack.c.l.b16 %v3616
        %v3656 = vunpack.c.l.b16 %v3617
        %v3657 = vunpack.c.l.b16 %v3618
        %v3658 = vunpack.c.l.b16 %v3619
        %v3659 = vunpack.c.l.b16 %v3620
        %v3660 = vunpack.c.l.b16 %v3621
        %v3661 = vunpack.c.l.b16 %v3622
        %v3662 = vpack.c.b16 %v3647, %v3646
        %v3663 = vpack.c.b16 %v3649, %v3648
        %v3664 = vpack.c.b16 %v3651, %v3650
        %v3665 = vpack.c.b16 %v3653, %v3652
        %v3666 = vpack.c.b16 %v3655, %v3654
        %v3667 = vpack.c.b16 %v3657, %v3656
        %v3668 = vpack.c.b16 %v3659, %v3658
        %v3669 = vpack.c.b16 %v3661, %v3660
        %3678 = vmatprep.subr.bf16.mxu0 0
        %3679 = vmatpush1.bf16.msra.mxu0 %v3662
        %3680 = vmatprep.subr.bf16.mxu0 0
        %3681 = vmatpush1.bf16.msra.mxu0 %v3663
        %3682 = vmatprep.subr.bf16.mxu0 0
        %3683 = vmatpush1.bf16.msra.mxu0 %v3664
        %3684 = vmatprep.subr.bf16.mxu0 0
        %3685 = vmatpush1.bf16.msra.mxu0 %v3665
        %3686 = vmatprep.subr.bf16.mxu0 0
        %3687 = vmatpush1.bf16.msra.mxu0 %v3666
        %3688 = vmatprep.subr.bf16.mxu0 0
        %3689 = vmatpush1.bf16.msra.mxu0 %v3667
        %3690 = vmatprep.subr.bf16.mxu0 0
        %3691 = vmatpush1.bf16.msra.mxu0 %v3668
        %3692 = vmatprep.subr.bf16.mxu0 0
        %3693 = vmatpush1.bf16.msra.mxu0 %v3669
        %3694 = vmatprep.subr.bf16.mxu0 0
        %3695 = vmatpush1.bf16.msra.mxu0 0
        %3696 = vmatprep.subr.bf16.mxu0 0
        %3697 = vmatpush1.bf16.msra.mxu0 0
        %3698 = vmatprep.subr.bf16.mxu0 0
        %3699 = vmatpush1.bf16.msra.mxu0 0
        %3700 = vmatprep.subr.bf16.mxu0 0
        %3701 = vmatpush1.bf16.msra.mxu0 0
        %3702 = vmatprep.subr.bf16.mxu0 0
        %3703 = vmatpush1.bf16.msra.mxu0 0
        %3704 = vmatprep.subr.bf16.mxu0 0
        %3705 = vmatpush1.bf16.msra.mxu0 0
        %3706 = vmatprep.subr.bf16.mxu0 0
        %3707 = vmatpush1.bf16.msra.mxu0 0
        %3708 = vmatprep.subr.bf16.mxu0 0
        %3709 = vmatpush1.bf16.msra.mxu0 0
        %3710 = vmatprep.mubr.bf16.mxu0 0
        %3711 = vmatmul.mubr.bf16.gmra.mrb[0].mxu0 %v3599
        %v3712 = vpop.f32.mrb[0].mxu0
        %v3713 = vadd.f32 %v3628, %v3712
        %v3714 = vpop.f32.mrb[0].mxu0
        %v3715 = vpop.f32.mrb[0].mxu0
        %v3716 = vadd.f32 %v3628, %v3715
        %v3717 = vpop.f32.mrb[0].mxu0
        %3718 = vmatprep.mubr.bf16.mxu0 0
        %3719 = vmatmul.mubr.bf16.gmra.mrb[0].mxu0 %v3600
        %v3720 = vpop.f32.mrb[0].mxu0
        %v3721 = vadd.f32 %v3628, %v3720
        %v3722 = vpop.f32.mrb[0].mxu0
        %v3723 = vpop.f32.mrb[0].mxu0
        %v3724 = vadd.f32 %v3628, %v3723
        %v3725 = vpop.f32.mrb[0].mxu0
        %3726 = vmatprep.mubr.bf16.mxu0 0
        %3727 = vmatmul.mubr.bf16.gmra.mrb[0].mxu0 %v3601
        %v3728 = vpop.f32.mrb[0].mxu0
        %v3729 = vadd.f32 %v3628, %v3728
        %v3730 = vpop.f32.mrb[0].mxu0
        %v3731 = vpop.f32.mrb[0].mxu0
        %v3732 = vadd.f32 %v3628, %v3731
        %v3733 = vpop.f32.mrb[0].mxu0
        %3734 = vmatprep.mubr.bf16.mxu0 0
        %3735 = vmatmul.mubr.bf16.gmra.mrb[0].mxu0 %v3602
        %v3736 = vpop.f32.mrb[0].mxu0
        %v3737 = vadd.f32 %v3628, %v3736
        %v3738 = vpop.f32.mrb[0].mxu0
        %v3739 = vpop.f32.mrb[0].mxu0
        %v3740 = vadd.f32 %v3628, %v3739
        %v3741 = vpop.f32.mrb[0].mxu0
        %3742 = vmatprep.mubr.bf16.mxu0 0
        %3743 = vmatmul.mubr.bf16.gmra.mrb[0].mxu0 %v3603
        %v3744 = vpop.f32.mrb[0].mxu0
        %v3745 = vadd.f32 %v3628, %v3744
        %v3746 = vpop.f32.mrb[0].mxu0
        %v3747 = vpop.f32.mrb[0].mxu0
        %v3748 = vadd.f32 %v3628, %v3747
        %v3749 = vpop.f32.mrb[0].mxu0
        %3750 = vmatprep.mubr.bf16.mxu0 0
        %3751 = vmatmul.mubr.bf16.gmra.mrb[0].mxu0 %v3604
        %v3752 = vpop.f32.mrb[0].mxu0
        %v3753 = vadd.f32 %v3628, %v3752
        %v3754 = vpop.f32.mrb[0].mxu0
        %v3755 = vpop.f32.mrb[0].mxu0
        %v3756 = vadd.f32 %v3628, %v3755
        %v3757 = vpop.f32.mrb[0].mxu0
        %3758 = vmatprep.mubr.bf16.mxu0 0
        %3759 = vmatmul.mubr.bf16.gmra.mrb[0].mxu0 %v3605
        %v3760 = vpop.f32.mrb[0].mxu0
        %v3761 = vadd.f32 %v3628, %v3760
        %v3762 = vpop.f32.mrb[0].mxu0
        %v3763 = vpop.f32.mrb[0].mxu0
        %v3764 = vadd.f32 %v3628, %v3763
        %v3765 = vpop.f32.mrb[0].mxu0
        %3766 = vmatprep.mubr.bf16.mxu0 0
        %3767 = vmatmul.mubr.bf16.gmra.mrb[0].mxu0 %v3606
        %v3768 = vpop.f32.mrb[0].mxu0
        %v3769 = vadd.f32 %v3628, %v3768
        %v3770 = vpop.f32.mrb[0].mxu0
        %v3771 = vpop.f32.mrb[0].mxu0
        %v3772 = vadd.f32 %v3628, %v3771
        %v3773 = vpop.f32.mrb[0].mxu0
        %3774 = vdwg.mxu0
        %v3775 = vadd.f32 %v3713, %v520
        %v3776 = vadd.f32 %v3716, %v521
        %v3777 = vadd.f32 %v3721, %v522
        %v3778 = vadd.f32 %v3724, %v523
        %v3779 = vadd.f32 %v3729, %v524
        %v3780 = vadd.f32 %v3732, %v525
        %v3781 = vadd.f32 %v3737, %v526
        %v3782 = vadd.f32 %v3740, %v527
        %v3783 = vadd.f32 %v3745, %v528
        %v3784 = vadd.f32 %v3748, %v529
        %v3785 = vadd.f32 %v3753, %v530
        %v3786 = vadd.f32 %v3756, %v531
        %v3787 = vadd.f32 %v3761, %v532
        %v3788 = vadd.f32 %v3764, %v533
        %v3789 = vadd.f32 %v3769, %v534
        %v3790 = vadd.f32 %v3772, %v535
        %v3791 = vld [vmem:[%s7] sm:$0x1]
        %v3792 = vld [vmem:[%s8] sm:$0x1]
        %3793 = vadd.xlane.f32.xlu0 %v3775
        %v3794 = vpop.xlane.xlu0 %3793
        %3795 = vadd.xlane.f32.xlu0 %v3776
        %v3796 = vpop.xlane.xlu0 %3795
        %3797 = vadd.xlane.f32.xlu0 %v3777
        %v3798 = vpop.xlane.xlu0 %3797
        %3799 = vadd.xlane.f32.xlu0 %v3778
        %v3800 = vpop.xlane.xlu0 %3799
        %3801 = vadd.xlane.f32.xlu0 %v3779
        %v3802 = vpop.xlane.xlu0 %3801
        %3803 = vadd.xlane.f32.xlu0 %v3780
        %v3804 = vpop.xlane.xlu0 %3803
        %3805 = vadd.xlane.f32.xlu0 %v3781
        %v3806 = vpop.xlane.xlu0 %3805
        %3807 = vadd.xlane.f32.xlu0 %v3782
        %v3808 = vpop.xlane.xlu0 %3807
        %3809 = vadd.xlane.f32.xlu0 %v3783
        %v3810 = vpop.xlane.xlu0 %3809
        %3811 = vadd.xlane.f32.xlu0 %v3784
        %v3812 = vpop.xlane.xlu0 %3811
        %3813 = vadd.xlane.f32.xlu0 %v3785
        %v3814 = vpop.xlane.xlu0 %3813
        %3815 = vadd.xlane.f32.xlu0 %v3786
        %v3816 = vpop.xlane.xlu0 %3815
        %3817 = vadd.xlane.f32.xlu0 %v3787
        %v3818 = vpop.xlane.xlu0 %3817
        %3819 = vadd.xlane.f32.xlu0 %v3788
        %v3820 = vpop.xlane.xlu0 %3819
        %3821 = vadd.xlane.f32.xlu0 %v3789
        %v3822 = vpop.xlane.xlu0 %3821
        %3823 = vadd.xlane.f32.xlu0 %v3790
        %v3824 = vpop.xlane.xlu0 %3823
        %v3825 = vmul.f32 %v3794, %v570
        %v3826 = vmul.f32 %v3796, %v570
        %v3827 = vmul.f32 %v3798, %v570
        %v3828 = vmul.f32 %v3800, %v570
        %v3829 = vmul.f32 %v3802, %v570
        %v3830 = vmul.f32 %v3804, %v570
        %v3831 = vmul.f32 %v3806, %v570
        %v3832 = vmul.f32 %v3808, %v570
        %v3833 = vmul.f32 %v3810, %v570
        %v3834 = vmul.f32 %v3812, %v570
        %v3835 = vmul.f32 %v3814, %v570
        %v3836 = vmul.f32 %v3816, %v570
        %v3837 = vmul.f32 %v3818, %v570
        %v3838 = vmul.f32 %v3820, %v570
        %v3839 = vmul.f32 %v3822, %v570
        %v3840 = vmul.f32 %v3824, %v570
        %v3841 = vsub.f32 %v3775, %v3825
        %v3842 = vsub.f32 %v3776, %v3826
        %v3843 = vsub.f32 %v3777, %v3827
        %v3844 = vsub.f32 %v3778, %v3828
        %v3845 = vsub.f32 %v3779, %v3829
        %v3846 = vsub.f32 %v3780, %v3830
        %v3847 = vsub.f32 %v3781, %v3831
        %v3848 = vsub.f32 %v3782, %v3832
        %v3849 = vsub.f32 %v3783, %v3833
        %v3850 = vsub.f32 %v3784, %v3834
        %v3851 = vsub.f32 %v3785, %v3835
        %v3852 = vsub.f32 %v3786, %v3836
        %v3853 = vsub.f32 %v3787, %v3837
        %v3854 = vsub.f32 %v3788, %v3838
        %v3855 = vsub.f32 %v3789, %v3839
        %v3856 = vsub.f32 %v3790, %v3840
        %v3857 = vmul.f32 %v3841, %v3841
        %v3858 = vmul.f32 %v3842, %v3842
        %v3859 = vmul.f32 %v3843, %v3843
        %v3860 = vmul.f32 %v3844, %v3844
        %v3861 = vmul.f32 %v3845, %v3845
        %v3862 = vmul.f32 %v3846, %v3846
        %v3863 = vmul.f32 %v3847, %v3847
        %v3864 = vmul.f32 %v3848, %v3848
        %v3865 = vmul.f32 %v3849, %v3849
        %v3866 = vmul.f32 %v3850, %v3850
        %v3867 = vmul.f32 %v3851, %v3851
        %v3868 = vmul.f32 %v3852, %v3852
        %v3869 = vmul.f32 %v3853, %v3853
        %v3870 = vmul.f32 %v3854, %v3854
        %v3871 = vmul.f32 %v3855, %v3855
        %v3872 = vmul.f32 %v3856, %v3856
        %3873 = vadd.xlane.f32.xlu0 %v3857
        %v3874 = vpop.xlane.xlu0 %3873
        %3875 = vadd.xlane.f32.xlu0 %v3858
        %v3876 = vpop.xlane.xlu0 %3875
        %3877 = vadd.xlane.f32.xlu0 %v3859
        %v3878 = vpop.xlane.xlu0 %3877
        %3879 = vadd.xlane.f32.xlu0 %v3860
        %v3880 = vpop.xlane.xlu0 %3879
        %3881 = vadd.xlane.f32.xlu0 %v3861
        %v3882 = vpop.xlane.xlu0 %3881
        %3883 = vadd.xlane.f32.xlu0 %v3862
        %v3884 = vpop.xlane.xlu0 %3883
        %3885 = vadd.xlane.f32.xlu0 %v3863
        %v3886 = vpop.xlane.xlu0 %3885
        %3887 = vadd.xlane.f32.xlu0 %v3864
        %v3888 = vpop.xlane.xlu0 %3887
        %3889 = vadd.xlane.f32.xlu0 %v3865
        %v3890 = vpop.xlane.xlu0 %3889
        %3891 = vadd.xlane.f32.xlu0 %v3866
        %v3892 = vpop.xlane.xlu0 %3891
        %3893 = vadd.xlane.f32.xlu0 %v3867
        %v3894 = vpop.xlane.xlu0 %3893
        %3895 = vadd.xlane.f32.xlu0 %v3868
        %v3896 = vpop.xlane.xlu0 %3895
        %3897 = vadd.xlane.f32.xlu0 %v3869
        %v3898 = vpop.xlane.xlu0 %3897
        %3899 = vadd.xlane.f32.xlu0 %v3870
        %v3900 = vpop.xlane.xlu0 %3899
        %3901 = vadd.xlane.f32.xlu0 %v3871
        %v3902 = vpop.xlane.xlu0 %3901
        %3903 = vadd.xlane.f32.xlu0 %v3872
        %v3904 = vpop.xlane.xlu0 %3903
        %v3905 = vmul.f32 %v3874, %v570
        %v3906 = vmul.f32 %v3876, %v570
        %v3907 = vmul.f32 %v3878, %v570
        %v3908 = vmul.f32 %v3880, %v570
        %v3909 = vmul.f32 %v3882, %v570
        %v3910 = vmul.f32 %v3884, %v570
        %v3911 = vmul.f32 %v3886, %v570
        %v3912 = vmul.f32 %v3888, %v570
        %v3913 = vmul.f32 %v3890, %v570
        %v3914 = vmul.f32 %v3892, %v570
        %v3915 = vmul.f32 %v3894, %v570
        %v3916 = vmul.f32 %v3896, %v570
        %v3917 = vmul.f32 %v3898, %v570
        %v3918 = vmul.f32 %v3900, %v570
        %v3919 = vmul.f32 %v3902, %v570
        %v3920 = vmul.f32 %v3904, %v570
        %v3921 = vadd.f32 %v3905, 1e-05
        %v3922 = vadd.f32 %v3906, 1e-05
        %v3923 = vadd.f32 %v3907, 1e-05
        %v3924 = vadd.f32 %v3908, 1e-05
        %v3925 = vadd.f32 %v3909, 1e-05
        %v3926 = vadd.f32 %v3910, 1e-05
        %v3927 = vadd.f32 %v3911, 1e-05
        %v3928 = vadd.f32 %v3912, 1e-05
        %v3929 = vadd.f32 %v3913, 1e-05
        %v3930 = vadd.f32 %v3914, 1e-05
        %v3931 = vadd.f32 %v3915, 1e-05
        %v3932 = vadd.f32 %v3916, 1e-05
        %v3933 = vadd.f32 %v3917, 1e-05
        %v3934 = vadd.f32 %v3918, 1e-05
        %v3935 = vadd.f32 %v3919, 1e-05
        %v3936 = vadd.f32 %v3920, 1e-05
        %v3937 = vrsqrt.pop %v3921
        %v3938 = vrsqrt.pop %v3922
        %v3939 = vrsqrt.pop %v3923
        %v3940 = vrsqrt.pop %v3924
        %v3941 = vrsqrt.pop %v3925
        %v3942 = vrsqrt.pop %v3926
        %v3943 = vrsqrt.pop %v3927
        %v3944 = vrsqrt.pop %v3928
        %v3945 = vrsqrt.pop %v3929
        %v3946 = vrsqrt.pop %v3930
        %v3947 = vrsqrt.pop %v3931
        %v3948 = vrsqrt.pop %v3932
        %v3949 = vrsqrt.pop %v3933
        %v3950 = vrsqrt.pop %v3934
        %v3951 = vrsqrt.pop %v3935
        %v3952 = vrsqrt.pop %v3936
        %v3953 = vmul.f32 %v3841, %v3937
        %v3954 = vmul.f32 %v3842, %v3938
        %v3955 = vmul.f32 %v3843, %v3939
        %v3956 = vmul.f32 %v3844, %v3940
        %v3957 = vmul.f32 %v3845, %v3941
        %v3958 = vmul.f32 %v3846, %v3942
        %v3959 = vmul.f32 %v3847, %v3943
        %v3960 = vmul.f32 %v3848, %v3944
        %v3961 = vmul.f32 %v3849, %v3945
        %v3962 = vmul.f32 %v3850, %v3946
        %v3963 = vmul.f32 %v3851, %v3947
        %v3964 = vmul.f32 %v3852, %v3948
        %v3965 = vmul.f32 %v3853, %v3949
        %v3966 = vmul.f32 %v3854, %v3950
        %v3967 = vmul.f32 %v3855, %v3951
        %v3968 = vmul.f32 %v3856, %v3952
        %v3970 = vlaneseq
        %v3971 = vshrl.u32 %v3970, 7
        %v3972 = vsub.s32 0, %v3971
        %v3973 = vrot.slane %v3791, %v3972
        %v3975 = vmul.f32 %v3953, %v3973
        %v3976 = vmul.f32 %v3954, %v3973
        %v3977 = vmul.f32 %v3955, %v3973
        %v3978 = vmul.f32 %v3956, %v3973
        %v3979 = vmul.f32 %v3957, %v3973
        %v3980 = vmul.f32 %v3958, %v3973
        %v3981 = vmul.f32 %v3959, %v3973
        %v3982 = vmul.f32 %v3960, %v3973
        %v3983 = vmul.f32 %v3961, %v3973
        %v3984 = vmul.f32 %v3962, %v3973
        %v3985 = vmul.f32 %v3963, %v3973
        %v3986 = vmul.f32 %v3964, %v3973
        %v3987 = vmul.f32 %v3965, %v3973
        %v3988 = vmul.f32 %v3966, %v3973
        %v3989 = vmul.f32 %v3967, %v3973
        %v3990 = vmul.f32 %v3968, %v3973
        %v3992 = vlaneseq
        %v3993 = vshrl.u32 %v3992, 7
        %v3994 = vsub.s32 0, %v3993
        %v3995 = vrot.slane %v3792, %v3994
        %v3997 = vadd.f32 %v3975, %v3995
        %v3998 = vadd.f32 %v3976, %v3995
        %v3999 = vadd.f32 %v3977, %v3995
        %v4000 = vadd.f32 %v3978, %v3995
        %v4001 = vadd.f32 %v3979, %v3995
        %v4002 = vadd.f32 %v3980, %v3995
        %v4003 = vadd.f32 %v3981, %v3995
        %v4004 = vadd.f32 %v3982, %v3995
        %v4005 = vadd.f32 %v3983, %v3995
        %v4006 = vadd.f32 %v3984, %v3995
        %v4007 = vadd.f32 %v3985, %v3995
        %v4008 = vadd.f32 %v3986, %v3995
        %v4009 = vadd.f32 %v3987, %v3995
        %v4010 = vadd.f32 %v3988, %v3995
        %v4011 = vadd.f32 %v3989, %v3995
        %v4012 = vadd.f32 %v3990, %v3995
        %v4013 = vpack.c.bf16 %v3998, %v3997
        %v4014 = vpack.c.bf16 %v4000, %v3999
        %v4015 = vpack.c.bf16 %v4002, %v4001
        %v4016 = vpack.c.bf16 %v4004, %v4003
        %v4017 = vpack.c.bf16 %v4006, %v4005
        %v4018 = vpack.c.bf16 %v4008, %v4007
        %v4019 = vpack.c.bf16 %v4010, %v4009
        %v4020 = vpack.c.bf16 %v4012, %v4011
        %v4021 = vld [vmem:[#allocation9] sm:$0xf]
        %v4022 = vld [vmem:[#allocation9 + $0x4] sm:$0xf]
        %v4023 = vld [vmem:[#allocation9 + $0x8] sm:$0xf]
        %v4024 = vld [vmem:[#allocation9 + $0xc] sm:$0xf]
        %v4025 = vld [vmem:[#allocation9 + $0x10] sm:$0xf]
        %v4026 = vld [vmem:[#allocation9 + $0x14] sm:$0xf]
        %v4027 = vld [vmem:[#allocation9 + $0x18] sm:$0xf]
        %v4028 = vld [vmem:[#allocation9 + $0x1c] sm:$0xf]
        %v4029 = vld [vmem:[#allocation9 + $0x20] sm:$0xf]
        %v4030 = vld [vmem:[#allocation9 + $0x24] sm:$0xf]
        %v4031 = vld [vmem:[#allocation9 + $0x28] sm:$0xf]
        %v4032 = vld [vmem:[#allocation9 + $0x2c] sm:$0xf]
        %v4033 = vld [vmem:[#allocation9 + $0x30] sm:$0xf]
        %v4034 = vld [vmem:[#allocation9 + $0x34] sm:$0xf]
        %v4035 = vld [vmem:[#allocation9 + $0x38] sm:$0xf]
        %v4036 = vld [vmem:[#allocation9 + $0x3c] sm:$0xf]
        %v4037 = vld [vmem:[%s10] sm:$0x1]
        %v4039 = vlaneseq
        %v4040 = vshrl.u32 %v4039, 7
        %v4041 = vsub.s32 0, %v4040
        %v4042 = vrot.slane %v4037, %v4041
        %v4060 = vunpack.c.l.b16 %v4021
        %v4061 = vunpack.c.l.b16 %v4022
        %v4062 = vunpack.c.l.b16 %v4023
        %v4063 = vunpack.c.l.b16 %v4024
        %v4064 = vunpack.c.l.b16 %v4025
        %v4065 = vunpack.c.l.b16 %v4026
        %v4066 = vunpack.c.l.b16 %v4027
        %v4067 = vunpack.c.l.b16 %v4028
        %v4068 = vunpack.c.l.b16 %v4029
        %v4069 = vunpack.c.l.b16 %v4030
        %v4070 = vunpack.c.l.b16 %v4031
        %v4071 = vunpack.c.l.b16 %v4032
        %v4072 = vunpack.c.l.b16 %v4033
        %v4073 = vunpack.c.l.b16 %v4034
        %v4074 = vunpack.c.l.b16 %v4035
        %v4075 = vunpack.c.l.b16 %v4036
        %v4076 = vpack.c.b16 %v4061, %v4060
        %v4077 = vpack.c.b16 %v4063, %v4062
        %v4078 = vpack.c.b16 %v4065, %v4064
        %v4079 = vpack.c.b16 %v4067, %v4066
        %v4080 = vpack.c.b16 %v4069, %v4068
        %v4081 = vpack.c.b16 %v4071, %v4070
        %v4082 = vpack.c.b16 %v4073, %v4072
        %v4083 = vpack.c.b16 %v4075, %v4074
        %4092 = vmatprep.subr.bf16.mxu0 0
        %4093 = vmatpush1.bf16.msra.mxu0 %v4076
        %4094 = vmatprep.subr.bf16.mxu0 0
        %4095 = vmatpush1.bf16.msra.mxu0 %v4077
        %4096 = vmatprep.subr.bf16.mxu0 0
        %4097 = vmatpush1.bf16.msra.mxu0 %v4078
        %4098 = vmatprep.subr.bf16.mxu0 0
        %4099 = vmatpush1.bf16.msra.mxu0 %v4079
        %4100 = vmatprep.subr.bf16.mxu0 0
        %4101 = vmatpush1.bf16.msra.mxu0 %v4080
        %4102 = vmatprep.subr.bf16.mxu0 0
        %4103 = vmatpush1.bf16.msra.mxu0 %v4081
        %4104 = vmatprep.subr.bf16.mxu0 0
        %4105 = vmatpush1.bf16.msra.mxu0 %v4082
        %4106 = vmatprep.subr.bf16.mxu0 0
        %4107 = vmatpush1.bf16.msra.mxu0 %v4083
        %4108 = vmatprep.subr.bf16.mxu0 0
        %4109 = vmatpush1.bf16.msra.mxu0 0
        %4110 = vmatprep.subr.bf16.mxu0 0
        %4111 = vmatpush1.bf16.msra.mxu0 0
        %4112 = vmatprep.subr.bf16.mxu0 0
        %4113 = vmatpush1.bf16.msra.mxu0 0
        %4114 = vmatprep.subr.bf16.mxu0 0
        %4115 = vmatpush1.bf16.msra.mxu0 0
        %4116 = vmatprep.subr.bf16.mxu0 0
        %4117 = vmatpush1.bf16.msra.mxu0 0
        %4118 = vmatprep.subr.bf16.mxu0 0
        %4119 = vmatpush1.bf16.msra.mxu0 0
        %4120 = vmatprep.subr.bf16.mxu0 0
        %4121 = vmatpush1.bf16.msra.mxu0 0
        %4122 = vmatprep.subr.bf16.mxu0 0
        %4123 = vmatpush1.bf16.msra.mxu0 0
        %4124 = vmatprep.mubr.bf16.mxu0 0
        %4125 = vmatmul.mubr.bf16.gmra.mrb[0].mxu0 %v4013
        %v4126 = vpop.f32.mrb[0].mxu0
        %v4127 = vadd.f32 %v4042, %v4126
        %v4128 = vpop.f32.mrb[0].mxu0
        %v4129 = vpop.f32.mrb[0].mxu0
        %v4130 = vadd.f32 %v4042, %v4129
        %v4131 = vpop.f32.mrb[0].mxu0
        %4132 = vmatprep.mubr.bf16.mxu0 0
        %4133 = vmatmul.mubr.bf16.gmra.mrb[0].mxu0 %v4014
        %v4134 = vpop.f32.mrb[0].mxu0
        %v4135 = vadd.f32 %v4042, %v4134
        %v4136 = vpop.f32.mrb[0].mxu0
        %v4137 = vpop.f32.mrb[0].mxu0
        %v4138 = vadd.f32 %v4042, %v4137
        %v4139 = vpop.f32.mrb[0].mxu0
        %4140 = vmatprep.mubr.bf16.mxu0 0
        %4141 = vmatmul.mubr.bf16.gmra.mrb[0].mxu0 %v4015
        %v4142 = vpop.f32.mrb[0].mxu0
        %v4143 = vadd.f32 %v4042, %v4142
        %v4144 = vpop.f32.mrb[0].mxu0
        %v4145 = vpop.f32.mrb[0].mxu0
        %v4146 = vadd.f32 %v4042, %v4145
        %v4147 = vpop.f32.mrb[0].mxu0
        %4148 = vmatprep.mubr.bf16.mxu0 0
        %4149 = vmatmul.mubr.bf16.gmra.mrb[0].mxu0 %v4016
        %v4150 = vpop.f32.mrb[0].mxu0
        %v4151 = vadd.f32 %v4042, %v4150
        %v4152 = vpop.f32.mrb[0].mxu0
        %v4153 = vpop.f32.mrb[0].mxu0
        %v4154 = vadd.f32 %v4042, %v4153
        %v4155 = vpop.f32.mrb[0].mxu0
        %4156 = vmatprep.mubr.bf16.mxu0 0
        %4157 = vmatmul.mubr.bf16.gmra.mrb[0].mxu0 %v4017
        %v4158 = vpop.f32.mrb[0].mxu0
        %v4159 = vadd.f32 %v4042, %v4158
        %v4160 = vpop.f32.mrb[0].mxu0
        %v4161 = vpop.f32.mrb[0].mxu0
        %v4162 = vadd.f32 %v4042, %v4161
        %v4163 = vpop.f32.mrb[0].mxu0
        %4164 = vmatprep.mubr.bf16.mxu0 0
        %4165 = vmatmul.mubr.bf16.gmra.mrb[0].mxu0 %v4018
        %v4166 = vpop.f32.mrb[0].mxu0
        %v4167 = vadd.f32 %v4042, %v4166
        %v4168 = vpop.f32.mrb[0].mxu0
        %v4169 = vpop.f32.mrb[0].mxu0
        %v4170 = vadd.f32 %v4042, %v4169
        %v4171 = vpop.f32.mrb[0].mxu0
        %4172 = vmatprep.mubr.bf16.mxu0 0
        %4173 = vmatmul.mubr.bf16.gmra.mrb[0].mxu0 %v4019
        %v4174 = vpop.f32.mrb[0].mxu0
        %v4175 = vadd.f32 %v4042, %v4174
        %v4176 = vpop.f32.mrb[0].mxu0
        %v4177 = vpop.f32.mrb[0].mxu0
        %v4178 = vadd.f32 %v4042, %v4177
        %v4179 = vpop.f32.mrb[0].mxu0
        %4180 = vmatprep.mubr.bf16.mxu0 0
        %4181 = vmatmul.mubr.bf16.gmra.mrb[0].mxu0 %v4020
        %v4182 = vpop.f32.mrb[0].mxu0
        %v4183 = vadd.f32 %v4042, %v4182
        %v4184 = vpop.f32.mrb[0].mxu0
        %v4185 = vpop.f32.mrb[0].mxu0
        %v4186 = vadd.f32 %v4042, %v4185
        %v4187 = vpop.f32.mrb[0].mxu0
        %4188 = vdwg.mxu0
        %v4189 = vmul.f32 %v4127, 0.5
        %v4190 = vmul.f32 %v4130, 0.5
        %v4191 = vmul.f32 %v4135, 0.5
        %v4192 = vmul.f32 %v4138, 0.5
        %v4193 = vmul.f32 %v4143, 0.5
        %v4194 = vmul.f32 %v4146, 0.5
        %v4195 = vmul.f32 %v4151, 0.5
        %v4196 = vmul.f32 %v4154, 0.5
        %v4197 = vmul.f32 %v4159, 0.5
        %v4198 = vmul.f32 %v4162, 0.5
        %v4199 = vmul.f32 %v4167, 0.5
        %v4200 = vmul.f32 %v4170, 0.5
        %v4201 = vmul.f32 %v4175, 0.5
        %v4202 = vmul.f32 %v4178, 0.5
        %v4203 = vmul.f32 %v4183, 0.5
        %v4204 = vmul.f32 %v4186, 0.5
        %v4205 = vmul.f32 %v4127, 0.70710677
        %v4206 = vmul.f32 %v4130, 0.70710677
        %v4207 = vmul.f32 %v4135, 0.70710677
        %v4208 = vmul.f32 %v4138, 0.70710677
        %v4209 = vmul.f32 %v4143, 0.70710677
        %v4210 = vmul.f32 %v4146, 0.70710677
        %v4211 = vmul.f32 %v4151, 0.70710677
        %v4212 = vmul.f32 %v4154, 0.70710677
        %v4213 = vmul.f32 %v4159, 0.70710677
        %v4214 = vmul.f32 %v4162, 0.70710677
        %v4215 = vmul.f32 %v4167, 0.70710677
        %v4216 = vmul.f32 %v4170, 0.70710677
        %v4217 = vmul.f32 %v4175, 0.70710677
        %v4218 = vmul.f32 %v4178, 0.70710677
        %v4219 = vmul.f32 %v4183, 0.70710677
        %v4220 = vmul.f32 %v4186, 0.70710677
        %v4221 = vand.u32 2147483647, %v4205
        %v4222 = vand.u32 2147483647, %v4206
        %v4223 = vand.u32 2147483647, %v4207
        %v4224 = vand.u32 2147483647, %v4208
        %v4225 = vand.u32 2147483647, %v4209
        %v4226 = vand.u32 2147483647, %v4210
        %v4227 = vand.u32 2147483647, %v4211
        %v4228 = vand.u32 2147483647, %v4212
        %v4229 = vand.u32 2147483647, %v4213
        %v4230 = vand.u32 2147483647, %v4214
        %v4231 = vand.u32 2147483647, %v4215
        %v4232 = vand.u32 2147483647, %v4216
        %v4233 = vand.u32 2147483647, %v4217
        %v4234 = vand.u32 2147483647, %v4218
        %v4235 = vand.u32 2147483647, %v4219
        %v4236 = vand.u32 2147483647, %v4220
        %v4237 = vmul.f32 %v4221, 0.3275911
        %v4238 = vmul.f32 %v4222, 0.3275911
        %v4239 = vmul.f32 %v4223, 0.3275911
        %v4240 = vmul.f32 %v4224, 0.3275911
        %v4241 = vmul.f32 %v4225, 0.3275911
        %v4242 = vmul.f32 %v4226, 0.3275911
        %v4243 = vmul.f32 %v4227, 0.3275911
        %v4244 = vmul.f32 %v4228, 0.3275911
        %v4245 = vmul.f32 %v4229, 0.3275911
        %v4246 = vmul.f32 %v4230, 0.3275911
        %v4247 = vmul.f32 %v4231, 0.3275911
        %v4248 = vmul.f32 %v4232, 0.3275911
        %v4249 = vmul.f32 %v4233, 0.3275911
        %v4250 = vmul.f32 %v4234, 0.3275911
        %v4251 = vmul.f32 %v4235, 0.3275911
        %v4252 = vmul.f32 %v4236, 0.3275911
        %v4253 = vadd.f32 %v4237, 1.0
        %v4254 = vadd.f32 %v4238, 1.0
        %v4255 = vadd.f32 %v4239, 1.0
        %v4256 = vadd.f32 %v4240, 1.0
        %v4257 = vadd.f32 %v4241, 1.0
        %v4258 = vadd.f32 %v4242, 1.0
        %v4259 = vadd.f32 %v4243, 1.0
        %v4260 = vadd.f32 %v4244, 1.0
        %v4261 = vadd.f32 %v4245, 1.0
        %v4262 = vadd.f32 %v4246, 1.0
        %v4263 = vadd.f32 %v4247, 1.0
        %v4264 = vadd.f32 %v4248, 1.0
        %v4265 = vadd.f32 %v4249, 1.0
        %v4266 = vadd.f32 %v4250, 1.0
        %v4267 = vadd.f32 %v4251, 1.0
        %v4268 = vadd.f32 %v4252, 1.0
        %v4269 = vrcp.pop %v4253
        %v4270 = vmul.f32 1.0, %v4269
        %v4271 = vrcp.pop %v4254
        %v4272 = vmul.f32 1.0, %v4271
        %v4273 = vrcp.pop %v4255
        %v4274 = vmul.f32 1.0, %v4273
        %v4275 = vrcp.pop %v4256
        %v4276 = vmul.f32 1.0, %v4275
        %v4277 = vrcp.pop %v4257
        %v4278 = vmul.f32 1.0, %v4277
        %v4279 = vrcp.pop %v4258
        %v4280 = vmul.f32 1.0, %v4279
        %v4281 = vrcp.pop %v4259
        %v4282 = vmul.f32 1.0, %v4281
        %v4283 = vrcp.pop %v4260
        %v4284 = vmul.f32 1.0, %v4283
        %v4285 = vrcp.pop %v4261
        %v4286 = vmul.f32 1.0, %v4285
        %v4287 = vrcp.pop %v4262
        %v4288 = vmul.f32 1.0, %v4287
        %v4289 = vrcp.pop %v4263
        %v4290 = vmul.f32 1.0, %v4289
        %v4291 = vrcp.pop %v4264
        %v4292 = vmul.f32 1.0, %v4291
        %v4293 = vrcp.pop %v4265
        %v4294 = vmul.f32 1.0, %v4293
        %v4295 = vrcp.pop %v4266
        %v4296 = vmul.f32 1.0, %v4295
        %v4297 = vrcp.pop %v4267
        %v4298 = vmul.f32 1.0, %v4297
        %v4299 = vrcp.pop %v4268
        %v4300 = vmul.f32 1.0, %v4299
        %v4301 = vmul.f32 %v4270, 1.0614054
        %v4302 = vmul.f32 %v4272, 1.0614054
        %v4303 = vmul.f32 %v4274, 1.0614054
        %v4304 = vmul.f32 %v4276, 1.0614054
        %v4305 = vmul.f32 %v4278, 1.0614054
        %v4306 = vmul.f32 %v4280, 1.0614054
        %v4307 = vmul.f32 %v4282, 1.0614054
        %v4308 = vmul.f32 %v4284, 1.0614054
        %v4309 = vmul.f32 %v4286, 1.0614054
        %v4310 = vmul.f32 %v4288, 1.0614054
        %v4311 = vmul.f32 %v4290, 1.0614054
        %v4312 = vmul.f32 %v4292, 1.0614054
        %v4313 = vmul.f32 %v4294, 1.0614054
        %v4314 = vmul.f32 %v4296, 1.0614054
        %v4315 = vmul.f32 %v4298, 1.0614054
        %v4316 = vmul.f32 %v4300, 1.0614054
        %v4317 = vadd.f32 %v4301, -1.4531521
        %v4318 = vadd.f32 %v4302, -1.4531521
        %v4319 = vadd.f32 %v4303, -1.4531521
        %v4320 = vadd.f32 %v4304, -1.4531521
        %v4321 = vadd.f32 %v4305, -1.4531521
        %v4322 = vadd.f32 %v4306, -1.4531521
        %v4323 = vadd.f32 %v4307, -1.4531521
        %v4324 = vadd.f32 %v4308, -1.4531521
        %v4325 = vadd.f32 %v4309, -1.4531521
        %v4326 = vadd.f32 %v4310, -1.4531521
        %v4327 = vadd.f32 %v4311, -1.4531521
        %v4328 = vadd.f32 %v4312, -1.4531521
        %v4329 = vadd.f32 %v4313, -1.4531521
        %v4330 = vadd.f32 %v4314, -1.4531521
        %v4331 = vadd.f32 %v4315, -1.4531521
        %v4332 = vadd.f32 %v4316, -1.4531521
        %v4333 = vmul.f32 %v4317, %v4270
        %v4334 = vmul.f32 %v4318, %v4272
        %v4335 = vmul.f32 %v4319, %v4274
        %v4336 = vmul.f32 %v4320, %v4276
        %v4337 = vmul.f32 %v4321, %v4278
        %v4338 = vmul.f32 %v4322, %v4280
        %v4339 = vmul.f32 %v4323, %v4282
        %v4340 = vmul.f32 %v4324, %v4284
        %v4341 = vmul.f32 %v4325, %v4286
        %v4342 = vmul.f32 %v4326, %v4288
        %v4343 = vmul.f32 %v4327, %v4290
        %v4344 = vmul.f32 %v4328, %v4292
        %v4345 = vmul.f32 %v4329, %v4294
        %v4346 = vmul.f32 %v4330, %v4296
        %v4347 = vmul.f32 %v4331, %v4298
        %v4348 = vmul.f32 %v4332, %v4300
        %v4349 = vadd.f32 %v4333, 1.4214138
        %v4350 = vadd.f32 %v4334, 1.4214138
        %v4351 = vadd.f32 %v4335, 1.4214138
        %v4352 = vadd.f32 %v4336, 1.4214138
        %v4353 = vadd.f32 %v4337, 1.4214138
        %v4354 = vadd.f32 %v4338, 1.4214138
        %v4355 = vadd.f32 %v4339, 1.4214138
        %v4356 = vadd.f32 %v4340, 1.4214138
        %v4357 = vadd.f32 %v4341, 1.4214138
        %v4358 = vadd.f32 %v4342, 1.4214138
        %v4359 = vadd.f32 %v4343, 1.4214138
        %v4360 = vadd.f32 %v4344, 1.4214138
        %v4361 = vadd.f32 %v4345, 1.4214138
        %v4362 = vadd.f32 %v4346, 1.4214138
        %v4363 = vadd.f32 %v4347, 1.4214138
        %v4364 = vadd.f32 %v4348, 1.4214138
        %v4365 = vmul.f32 %v4349, %v4270
        %v4366 = vmul.f32 %v4350, %v4272
        %v4367 = vmul.f32 %v4351, %v4274
        %v4368 = vmul.f32 %v4352, %v4276
        %v4369 = vmul.f32 %v4353, %v4278
        %v4370 = vmul.f32 %v4354, %v4280
        %v4371 = vmul.f32 %v4355, %v4282
        %v4372 = vmul.f32 %v4356, %v4284
        %v4373 = vmul.f32 %v4357, %v4286
        %v4374 = vmul.f32 %v4358, %v4288
        %v4375 = vmul.f32 %v4359, %v4290
        %v4376 = vmul.f32 %v4360, %v4292
        %v4377 = vmul.f32 %v4361, %v4294
        %v4378 = vmul.f32 %v4362, %v4296
        %v4379 = vmul.f32 %v4363, %v4298
        %v4380 = vmul.f32 %v4364, %v4300
        %v4381 = vadd.f32 %v4365, -0.28449672
        %v4382 = vadd.f32 %v4366, -0.28449672
        %v4383 = vadd.f32 %v4367, -0.28449672
        %v4384 = vadd.f32 %v4368, -0.28449672
        %v4385 = vadd.f32 %v4369, -0.28449672
        %v4386 = vadd.f32 %v4370, -0.28449672
        %v4387 = vadd.f32 %v4371, -0.28449672
        %v4388 = vadd.f32 %v4372, -0.28449672
        %v4389 = vadd.f32 %v4373, -0.28449672
        %v4390 = vadd.f32 %v4374, -0.28449672
        %v4391 = vadd.f32 %v4375, -0.28449672
        %v4392 = vadd.f32 %v4376, -0.28449672
        %v4393 = vadd.f32 %v4377, -0.28449672
        %v4394 = vadd.f32 %v4378, -0.28449672
        %v4395 = vadd.f32 %v4379, -0.28449672
        %v4396 = vadd.f32 %v4380, -0.28449672
        %v4397 = vmul.f32 %v4381, %v4270
        %v4398 = vmul.f32 %v4382, %v4272
        %v4399 = vmul.f32 %v4383, %v4274
        %v4400 = vmul.f32 %v4384, %v4276
        %v4401 = vmul.f32 %v4385, %v4278
        %v4402 = vmul.f32 %v4386, %v4280
        %v4403 = vmul.f32 %v4387, %v4282
        %v4404 = vmul.f32 %v4388, %v4284
        %v4405 = vmul.f32 %v4389, %v4286
        %v4406 = vmul.f32 %v4390, %v4288
        %v4407 = vmul.f32 %v4391, %v4290
        %v4408 = vmul.f32 %v4392, %v4292
        %v4409 = vmul.f32 %v4393, %v4294
        %v4410 = vmul.f32 %v4394, %v4296
        %v4411 = vmul.f32 %v4395, %v4298
        %v4412 = vmul.f32 %v4396, %v4300
        %v4413 = vadd.f32 %v4397, 0.2548296
        %v4414 = vadd.f32 %v4398, 0.2548296
        %v4415 = vadd.f32 %v4399, 0.2548296
        %v4416 = vadd.f32 %v4400, 0.2548296
        %v4417 = vadd.f32 %v4401, 0.2548296
        %v4418 = vadd.f32 %v4402, 0.2548296
        %v4419 = vadd.f32 %v4403, 0.2548296
        %v4420 = vadd.f32 %v4404, 0.2548296
        %v4421 = vadd.f32 %v4405, 0.2548296
        %v4422 = vadd.f32 %v4406, 0.2548296
        %v4423 = vadd.f32 %v4407, 0.2548296
        %v4424 = vadd.f32 %v4408, 0.2548296
        %v4425 = vadd.f32 %v4409, 0.2548296
        %v4426 = vadd.f32 %v4410, 0.2548296
        %v4427 = vadd.f32 %v4411, 0.2548296
        %v4428 = vadd.f32 %v4412, 0.2548296
        %v4429 = vmul.f32 %v4413, %v4270
        %v4430 = vmul.f32 %v4414, %v4272
        %v4431 = vmul.f32 %v4415, %v4274
        %v4432 = vmul.f32 %v4416, %v4276
        %v4433 = vmul.f32 %v4417, %v4278
        %v4434 = vmul.f32 %v4418, %v4280
        %v4435 = vmul.f32 %v4419, %v4282
        %v4436 = vmul.f32 %v4420, %v4284
        %v4437 = vmul.f32 %v4421, %v4286
        %v4438 = vmul.f32 %v4422, %v4288
        %v4439 = vmul.f32 %v4423, %v4290
        %v4440 = vmul.f32 %v4424, %v4292
        %v4441 = vmul.f32 %v4425, %v4294
        %v4442 = vmul.f32 %v4426, %v4296
        %v4443 = vmul.f32 %v4427, %v4298
        %v4444 = vmul.f32 %v4428, %v4300
        %v4445 = vsub.f32 0.0, %v4221
        %v4446 = vsub.f32 0.0, %v4222
        %v4447 = vsub.f32 0.0, %v4223
        %v4448 = vsub.f32 0.0, %v4224
        %v4449 = vsub.f32 0.0, %v4225
        %v4450 = vsub.f32 0.0, %v4226
        %v4451 = vsub.f32 0.0, %v4227
        %v4452 = vsub.f32 0.0, %v4228
        %v4453 = vsub.f32 0.0, %v4229
        %v4454 = vsub.f32 0.0, %v4230
        %v4455 = vsub.f32 0.0, %v4231
        %v4456 = vsub.f32 0.0, %v4232
        %v4457 = vsub.f32 0.0, %v4233
        %v4458 = vsub.f32 0.0, %v4234
        %v4459 = vsub.f32 0.0, %v4235
        %v4460 = vsub.f32 0.0, %v4236
        %v4461 = vmul.f32 %v4445, %v4221
        %v4462 = vmul.f32 %v4446, %v4222
        %v4463 = vmul.f32 %v4447, %v4223
        %v4464 = vmul.f32 %v4448, %v4224
        %v4465 = vmul.f32 %v4449, %v4225
        %v4466 = vmul.f32 %v4450, %v4226
        %v4467 = vmul.f32 %v4451, %v4227
        %v4468 = vmul.f32 %v4452, %v4228
        %v4469 = vmul.f32 %v4453, %v4229
        %v4470 = vmul.f32 %v4454, %v4230
        %v4471 = vmul.f32 %v4455, %v4231
        %v4472 = vmul.f32 %v4456, %v4232
        %v4473 = vmul.f32 %v4457, %v4233
        %v4474 = vmul.f32 %v4458, %v4234
        %v4475 = vmul.f32 %v4459, %v4235
        %v4476 = vmul.f32 %v4460, %v4236
        %v4477 = vmul.f32 %v4461, 1.442695
        %v4478 = vpow.pop %v4477
        %v4479 = vmul.f32 %v4462, 1.442695
        %v4480 = vpow.pop %v4479
        %v4481 = vmul.f32 %v4463, 1.442695
        %v4482 = vpow.pop %v4481
        %v4483 = vmul.f32 %v4464, 1.442695
        %v4484 = vpow.pop %v4483
        %v4485 = vmul.f32 %v4465, 1.442695
        %v4486 = vpow.pop %v4485
        %v4487 = vmul.f32 %v4466, 1.442695
        %v4488 = vpow.pop %v4487
        %v4489 = vmul.f32 %v4467, 1.442695
        %v4490 = vpow.pop %v4489
        %v4491 = vmul.f32 %v4468, 1.442695
        %v4492 = vpow.pop %v4491
        %v4493 = vmul.f32 %v4469, 1.442695
        %v4494 = vpow.pop %v4493
        %v4495 = vmul.f32 %v4470, 1.442695
        %v4496 = vpow.pop %v4495
        %v4497 = vmul.f32 %v4471, 1.442695
        %v4498 = vpow.pop %v4497
        %v4499 = vmul.f32 %v4472, 1.442695
        %v4500 = vpow.pop %v4499
        %v4501 = vmul.f32 %v4473, 1.442695
        %v4502 = vpow.pop %v4501
        %v4503 = vmul.f32 %v4474, 1.442695
        %v4504 = vpow.pop %v4503
        %v4505 = vmul.f32 %v4475, 1.442695
        %v4506 = vpow.pop %v4505
        %v4507 = vmul.f32 %v4476, 1.442695
        %v4508 = vpow.pop %v4507
        %v4509 = vmul.f32 %v4429, %v4478
        %v4510 = vmul.f32 %v4430, %v4480
        %v4511 = vmul.f32 %v4431, %v4482
        %v4512 = vmul.f32 %v4432, %v4484
        %v4513 = vmul.f32 %v4433, %v4486
        %v4514 = vmul.f32 %v4434, %v4488
        %v4515 = vmul.f32 %v4435, %v4490
        %v4516 = vmul.f32 %v4436, %v4492
        %v4517 = vmul.f32 %v4437, %v4494
        %v4518 = vmul.f32 %v4438, %v4496
        %v4519 = vmul.f32 %v4439, %v4498
        %v4520 = vmul.f32 %v4440, %v4500
        %v4521 = vmul.f32 %v4441, %v4502
        %v4522 = vmul.f32 %v4442, %v4504
        %v4523 = vmul.f32 %v4443, %v4506
        %v4524 = vmul.f32 %v4444, %v4508
        %v4525 = vsub.f32 1.0, %v4509
        %v4526 = vsub.f32 1.0, %v4510
        %v4527 = vsub.f32 1.0, %v4511
        %v4528 = vsub.f32 1.0, %v4512
        %v4529 = vsub.f32 1.0, %v4513
        %v4530 = vsub.f32 1.0, %v4514
        %v4531 = vsub.f32 1.0, %v4515
        %v4532 = vsub.f32 1.0, %v4516
        %v4533 = vsub.f32 1.0, %v4517
        %v4534 = vsub.f32 1.0, %v4518
        %v4535 = vsub.f32 1.0, %v4519
        %v4536 = vsub.f32 1.0, %v4520
        %v4537 = vsub.f32 1.0, %v4521
        %v4538 = vsub.f32 1.0, %v4522
        %v4539 = vsub.f32 1.0, %v4523
        %v4540 = vsub.f32 1.0, %v4524
        %vm4541 = vcmp.ge.f32.partialorder %v4205, 0.0
        %vm4542 = vcmp.ge.f32.partialorder %v4206, 0.0
        %vm4543 = vcmp.ge.f32.partialorder %v4207, 0.0
        %vm4544 = vcmp.ge.f32.partialorder %v4208, 0.0
        %vm4545 = vcmp.ge.f32.partialorder %v4209, 0.0
        %vm4546 = vcmp.ge.f32.partialorder %v4210, 0.0
        %vm4547 = vcmp.ge.f32.partialorder %v4211, 0.0
        %vm4548 = vcmp.ge.f32.partialorder %v4212, 0.0
        %vm4549 = vcmp.ge.f32.partialorder %v4213, 0.0
        %vm4550 = vcmp.ge.f32.partialorder %v4214, 0.0
        %vm4551 = vcmp.ge.f32.partialorder %v4215, 0.0
        %vm4552 = vcmp.ge.f32.partialorder %v4216, 0.0
        %vm4553 = vcmp.ge.f32.partialorder %v4217, 0.0
        %vm4554 = vcmp.ge.f32.partialorder %v4218, 0.0
        %vm4555 = vcmp.ge.f32.partialorder %v4219, 0.0
        %vm4556 = vcmp.ge.f32.partialorder %v4220, 0.0
        %v4557 = vsub.f32 0.0, %v4525
        %v4558 = vsub.f32 0.0, %v4526
        %v4559 = vsub.f32 0.0, %v4527
        %v4560 = vsub.f32 0.0, %v4528
        %v4561 = vsub.f32 0.0, %v4529
        %v4562 = vsub.f32 0.0, %v4530
        %v4563 = vsub.f32 0.0, %v4531
        %v4564 = vsub.f32 0.0, %v4532
        %v4565 = vsub.f32 0.0, %v4533
        %v4566 = vsub.f32 0.0, %v4534
        %v4567 = vsub.f32 0.0, %v4535
        %v4568 = vsub.f32 0.0, %v4536
        %v4569 = vsub.f32 0.0, %v4537
        %v4570 = vsub.f32 0.0, %v4538
        %v4571 = vsub.f32 0.0, %v4539
        %v4572 = vsub.f32 0.0, %v4540
        %v4573 = vsel %vm4541, %v4525, %v4557
        %v4574 = vsel %vm4542, %v4526, %v4558
        %v4575 = vsel %vm4543, %v4527, %v4559
        %v4576 = vsel %vm4544, %v4528, %v4560
        %v4577 = vsel %vm4545, %v4529, %v4561
        %v4578 = vsel %vm4546, %v4530, %v4562
        %v4579 = vsel %vm4547, %v4531, %v4563
        %v4580 = vsel %vm4548, %v4532, %v4564
        %v4581 = vsel %vm4549, %v4533, %v4565
        %v4582 = vsel %vm4550, %v4534, %v4566
        %v4583 = vsel %vm4551, %v4535, %v4567
        %v4584 = vsel %vm4552, %v4536, %v4568
        %v4585 = vsel %vm4553, %v4537, %v4569
        %v4586 = vsel %vm4554, %v4538, %v4570
        %v4587 = vsel %vm4555, %v4539, %v4571
        %v4588 = vsel %vm4556, %v4540, %v4572
        %v4589 = vadd.f32 %v4573, 1.0
        %v4590 = vadd.f32 %v4574, 1.0
        %v4591 = vadd.f32 %v4575, 1.0
        %v4592 = vadd.f32 %v4576, 1.0
        %v4593 = vadd.f32 %v4577, 1.0
        %v4594 = vadd.f32 %v4578, 1.0
        %v4595 = vadd.f32 %v4579, 1.0
        %v4596 = vadd.f32 %v4580, 1.0
        %v4597 = vadd.f32 %v4581, 1.0
        %v4598 = vadd.f32 %v4582, 1.0
        %v4599 = vadd.f32 %v4583, 1.0
        %v4600 = vadd.f32 %v4584, 1.0
        %v4601 = vadd.f32 %v4585, 1.0
        %v4602 = vadd.f32 %v4586, 1.0
        %v4603 = vadd.f32 %v4587, 1.0
        %v4604 = vadd.f32 %v4588, 1.0
        %v4605 = vmul.f32 %v4189, %v4589
        %v4606 = vmul.f32 %v4190, %v4590
        %v4607 = vmul.f32 %v4191, %v4591
        %v4608 = vmul.f32 %v4192, %v4592
        %v4609 = vmul.f32 %v4193, %v4593
        %v4610 = vmul.f32 %v4194, %v4594
        %v4611 = vmul.f32 %v4195, %v4595
        %v4612 = vmul.f32 %v4196, %v4596
        %v4613 = vmul.f32 %v4197, %v4597
        %v4614 = vmul.f32 %v4198, %v4598
        %v4615 = vmul.f32 %v4199, %v4599
        %v4616 = vmul.f32 %v4200, %v4600
        %v4617 = vmul.f32 %v4201, %v4601
        %v4618 = vmul.f32 %v4202, %v4602
        %v4619 = vmul.f32 %v4203, %v4603
        %v4620 = vmul.f32 %v4204, %v4604
        %v4621 = vpack.c.bf16 %v4606, %v4605
        %v4622 = vpack.c.bf16 %v4608, %v4607
        %v4623 = vpack.c.bf16 %v4610, %v4609
        %v4624 = vpack.c.bf16 %v4612, %v4611
        %v4625 = vpack.c.bf16 %v4614, %v4613
        %v4626 = vpack.c.bf16 %v4616, %v4615
        %v4627 = vpack.c.bf16 %v4618, %v4617
        %v4628 = vpack.c.bf16 %v4620, %v4619
        %v4629 = vld [vmem:[#allocation11] sm:$0xf]
        %v4630 = vld [vmem:[#allocation11 + $0x4] sm:$0xf]
        %v4631 = vld [vmem:[#allocation11 + $0x8] sm:$0xf]
        %v4632 = vld [vmem:[#allocation11 + $0xc] sm:$0xf]
        %v4633 = vld [vmem:[#allocation11 + $0x10] sm:$0xf]
        %v4634 = vld [vmem:[#allocation11 + $0x14] sm:$0xf]
        %v4635 = vld [vmem:[#allocation11 + $0x18] sm:$0xf]
        %v4636 = vld [vmem:[#allocation11 + $0x1c] sm:$0xf]
        %v4637 = vld [vmem:[#allocation11 + $0x20] sm:$0xf]
        %v4638 = vld [vmem:[#allocation11 + $0x24] sm:$0xf]
        %v4639 = vld [vmem:[#allocation11 + $0x28] sm:$0xf]
        %v4640 = vld [vmem:[#allocation11 + $0x2c] sm:$0xf]
        %v4641 = vld [vmem:[#allocation11 + $0x30] sm:$0xf]
        %v4642 = vld [vmem:[#allocation11 + $0x34] sm:$0xf]
        %v4643 = vld [vmem:[#allocation11 + $0x38] sm:$0xf]
        %v4644 = vld [vmem:[#allocation11 + $0x3c] sm:$0xf]
        %v4645 = vld [vmem:[%s12] sm:$0x1]
        %v4647 = vlaneseq
        %v4648 = vshrl.u32 %v4647, 7
        %v4649 = vsub.s32 0, %v4648
        %v4650 = vrot.slane %v4645, %v4649
        %v4668 = vunpack.c.l.b16 %v4629
        %v4669 = vunpack.c.l.b16 %v4630
        %v4670 = vunpack.c.l.b16 %v4631
        %v4671 = vunpack.c.l.b16 %v4632
        %v4672 = vunpack.c.l.b16 %v4633
        %v4673 = vunpack.c.l.b16 %v4634
        %v4674 = vunpack.c.l.b16 %v4635
        %v4675 = vunpack.c.l.b16 %v4636
        %v4676 = vunpack.c.l.b16 %v4637
        %v4677 = vunpack.c.l.b16 %v4638
        %v4678 = vunpack.c.l.b16 %v4639
        %v4679 = vunpack.c.l.b16 %v4640
        %v4680 = vunpack.c.l.b16 %v4641
        %v4681 = vunpack.c.l.b16 %v4642
        %v4682 = vunpack.c.l.b16 %v4643
        %v4683 = vunpack.c.l.b16 %v4644
        %v4684 = vpack.c.b16 %v4669, %v4668
        %v4685 = vpack.c.b16 %v4671, %v4670
        %v4686 = vpack.c.b16 %v4673, %v4672
        %v4687 = vpack.c.b16 %v4675, %v4674
        %v4688 = vpack.c.b16 %v4677, %v4676
        %v4689 = vpack.c.b16 %v4679, %v4678
        %v4690 = vpack.c.b16 %v4681, %v4680
        %v4691 = vpack.c.b16 %v4683, %v4682
        %4700 = vmatprep.subr.bf16.mxu0 0
        %4701 = vmatpush1.bf16.msra.mxu0 %v4684
        %4702 = vmatprep.subr.bf16.mxu0 0
        %4703 = vmatpush1.bf16.msra.mxu0 %v4685
        %4704 = vmatprep.subr.bf16.mxu0 0
        %4705 = vmatpush1.bf16.msra.mxu0 %v4686
        %4706 = vmatprep.subr.bf16.mxu0 0
        %4707 = vmatpush1.bf16.msra.mxu0 %v4687
        %4708 = vmatprep.subr.bf16.mxu0 0
        %4709 = vmatpush1.bf16.msra.mxu0 %v4688
        %4710 = vmatprep.subr.bf16.mxu0 0
        %4711 = vmatpush1.bf16.msra.mxu0 %v4689
        %4712 = vmatprep.subr.bf16.mxu0 0
        %4713 = vmatpush1.bf16.msra.mxu0 %v4690
        %4714 = vmatprep.subr.bf16.mxu0 0
        %4715 = vmatpush1.bf16.msra.mxu0 %v4691
        %4716 = vmatprep.subr.bf16.mxu0 0
        %4717 = vmatpush1.bf16.msra.mxu0 0
        %4718 = vmatprep.subr.bf16.mxu0 0
        %4719 = vmatpush1.bf16.msra.mxu0 0
        %4720 = vmatprep.subr.bf16.mxu0 0
        %4721 = vmatpush1.bf16.msra.mxu0 0
        %4722 = vmatprep.subr.bf16.mxu0 0
        %4723 = vmatpush1.bf16.msra.mxu0 0
        %4724 = vmatprep.subr.bf16.mxu0 0
        %4725 = vmatpush1.bf16.msra.mxu0 0
        %4726 = vmatprep.subr.bf16.mxu0 0
        %4727 = vmatpush1.bf16.msra.mxu0 0
        %4728 = vmatprep.subr.bf16.mxu0 0
        %4729 = vmatpush1.bf16.msra.mxu0 0
        %4730 = vmatprep.subr.bf16.mxu0 0
        %4731 = vmatpush1.bf16.msra.mxu0 0
        %4732 = vmatprep.mubr.bf16.mxu0 0
        %4733 = vmatmul.mubr.bf16.gmra.mrb[0].mxu0 %v4621
        %v4734 = vpop.f32.mrb[0].mxu0
        %v4735 = vadd.f32 %v4650, %v4734
        %v4736 = vpop.f32.mrb[0].mxu0
        %v4737 = vpop.f32.mrb[0].mxu0
        %v4738 = vadd.f32 %v4650, %v4737
        %v4739 = vpop.f32.mrb[0].mxu0
        %4740 = vmatprep.mubr.bf16.mxu0 0
        %4741 = vmatmul.mubr.bf16.gmra.mrb[0].mxu0 %v4622
        %v4742 = vpop.f32.mrb[0].mxu0
        %v4743 = vadd.f32 %v4650, %v4742
        %v4744 = vpop.f32.mrb[0].mxu0
        %v4745 = vpop.f32.mrb[0].mxu0
        %v4746 = vadd.f32 %v4650, %v4745
        %v4747 = vpop.f32.mrb[0].mxu0
        %4748 = vmatprep.mubr.bf16.mxu0 0
        %4749 = vmatmul.mubr.bf16.gmra.mrb[0].mxu0 %v4623
        %v4750 = vpop.f32.mrb[0].mxu0
        %v4751 = vadd.f32 %v4650, %v4750
        %v4752 = vpop.f32.mrb[0].mxu0
        %v4753 = vpop.f32.mrb[0].mxu0
        %v4754 = vadd.f32 %v4650, %v4753
        %v4755 = vpop.f32.mrb[0].mxu0
        %4756 = vmatprep.mubr.bf16.mxu0 0
        %4757 = vmatmul.mubr.bf16.gmra.mrb[0].mxu0 %v4624
        %v4758 = vpop.f32.mrb[0].mxu0
        %v4759 = vadd.f32 %v4650, %v4758
        %v4760 = vpop.f32.mrb[0].mxu0
        %v4761 = vpop.f32.mrb[0].mxu0
        %v4762 = vadd.f32 %v4650, %v4761
        %v4763 = vpop.f32.mrb[0].mxu0
        %4764 = vmatprep.mubr.bf16.mxu0 0
        %4765 = vmatmul.mubr.bf16.gmra.mrb[0].mxu0 %v4625
        %v4766 = vpop.f32.mrb[0].mxu0
        %v4767 = vadd.f32 %v4650, %v4766
        %v4768 = vpop.f32.mrb[0].mxu0
        %v4769 = vpop.f32.mrb[0].mxu0
        %v4770 = vadd.f32 %v4650, %v4769
        %v4771 = vpop.f32.mrb[0].mxu0
        %4772 = vmatprep.mubr.bf16.mxu0 0
        %4773 = vmatmul.mubr.bf16.gmra.mrb[0].mxu0 %v4626
        %v4774 = vpop.f32.mrb[0].mxu0
        %v4775 = vadd.f32 %v4650, %v4774
        %v4776 = vpop.f32.mrb[0].mxu0
        %v4777 = vpop.f32.mrb[0].mxu0
        %v4778 = vadd.f32 %v4650, %v4777
        %v4779 = vpop.f32.mrb[0].mxu0
        %4780 = vmatprep.mubr.bf16.mxu0 0
        %4781 = vmatmul.mubr.bf16.gmra.mrb[0].mxu0 %v4627
        %v4782 = vpop.f32.mrb[0].mxu0
        %v4783 = vadd.f32 %v4650, %v4782
        %v4784 = vpop.f32.mrb[0].mxu0
        %v4785 = vpop.f32.mrb[0].mxu0
        %v4786 = vadd.f32 %v4650, %v4785
        %v4787 = vpop.f32.mrb[0].mxu0
        %4788 = vmatprep.mubr.bf16.mxu0 0
        %4789 = vmatmul.mubr.bf16.gmra.mrb[0].mxu0 %v4628
        %v4790 = vpop.f32.mrb[0].mxu0
        %v4791 = vadd.f32 %v4650, %v4790
        %v4792 = vpop.f32.mrb[0].mxu0
        %v4793 = vpop.f32.mrb[0].mxu0
        %v4794 = vadd.f32 %v4650, %v4793
        %v4795 = vpop.f32.mrb[0].mxu0
        %4796 = vdwg.mxu0
        %v4797 = vadd.f32 %v4735, %v3775
        %v4798 = vadd.f32 %v4738, %v3776
        %v4799 = vadd.f32 %v4743, %v3777
        %v4800 = vadd.f32 %v4746, %v3778
        %v4801 = vadd.f32 %v4751, %v3779
        %v4802 = vadd.f32 %v4754, %v3780
        %v4803 = vadd.f32 %v4759, %v3781
        %v4804 = vadd.f32 %v4762, %v3782
        %v4805 = vadd.f32 %v4767, %v3783
        %v4806 = vadd.f32 %v4770, %v3784
        %v4807 = vadd.f32 %v4775, %v3785
        %v4808 = vadd.f32 %v4778, %v3786
        %v4809 = vadd.f32 %v4783, %v3787
        %v4810 = vadd.f32 %v4786, %v3788
        %v4811 = vadd.f32 %v4791, %v3789
        %v4812 = vadd.f32 %v4794, %v3790
        %4813 = vst [vmem:[%s516] sm:$0xff] %v4797
        %4814 = vst [vmem:[%s516 + $0x8] sm:$0xff] %v4798
        %4815 = vst [vmem:[%s516 + $0x10] sm:$0xff] %v4799
        %4816 = vst [vmem:[%s516 + $0x18] sm:$0xff] %v4800
        %4817 = vst [vmem:[%s516 + $0x20] sm:$0xff] %v4801
        %4818 = vst [vmem:[%s516 + $0x28] sm:$0xff] %v4802
        %4819 = vst [vmem:[%s516 + $0x30] sm:$0xff] %v4803
        %4820 = vst [vmem:[%s516 + $0x38] sm:$0xff] %v4804
        %4821 = vst [vmem:[%s516 + $0x40] sm:$0xff] %v4805
        %4822 = vst [vmem:[%s516 + $0x48] sm:$0xff] %v4806
        %4823 = vst [vmem:[%s516 + $0x50] sm:$0xff] %v4807
        %4824 = vst [vmem:[%s516 + $0x58] sm:$0xff] %v4808
        %4825 = vst [vmem:[%s516 + $0x60] sm:$0xff] %v4809
        %4826 = vst [vmem:[%s516 + $0x68] sm:$0xff] %v4810
        %4827 = vst [vmem:[%s516 + $0x70] sm:$0xff] %v4811
        %4828 = vst [vmem:[%s516 + $0x78] sm:$0xff] %v4812
        %s4829 = sand.u32 %s318, 1
        %s4830 = scalar_lea.sflag [#allocation5], %s4829
        %s4831 = sand.u32 %s318, 1
        %s4832 = smul.addr %s4831, 128
        %s4833 = scalar_lea.vmem [#allocation12], %s4832
        // Predicated region
        $region93: #{tpu_custom_call.1} parent=71 // pred_check
          %p4834 = pneg %p328
        $region94: #{tpu_custom_call.1} parent=71 // pred_check_branch
          %4836 = sbr.rel (%p4834) target = $region96
        $region95: #{tpu_custom_call.1} parent=71 // pred_region
          %s4837 = smul.u32 16, %s32
          %s4839 = ssub.s32 2048, 2048
          %4840 = vsyncadd %s4830, %s4839
          %s4841 = smul.addr %s4837, 128
          %s4842 = scalar_lea.hbm %s13, %s4841
          %s4843 = sshll.u32 %s4833, 4
          %s4844 = int_to_ptr.vmem [resolvable:$true] %s4843
          %4849 = dma.vmem_to_hbm [thread:$0]  %s4844, 2048, %s4842, %s4830, 128, 128, 8
        $region96: #{tpu_custom_call.1} parent=71 // pred_fallthru
          _
      $region72: #{tpu_custom_call.1} parent=5 // pred_fallthru
        _
      %p4850 = scmp.le.s32.totalorder 2, %s27
      // Predicated region
      $region97: #{tpu_custom_call.1} parent=5 // pred_check
        %p4851 = pneg %p4850
      $region98: #{tpu_custom_call.1} parent=5 // pred_check_branch
        %4853 = sbr.rel (%p4851) target = $region100
      $region99: #{tpu_custom_call.1} parent=5 // pred_region
        %s4854 = ssub.s32 %s27, 2
        // Predicated region
        $region101: #{tpu_custom_call.1} parent=99 // pred_check
          %p4855 = pneg %p334
        $region102: #{tpu_custom_call.1} parent=99 // pred_check_branch
          %4857 = sbr.rel (%p4855) target = $region104
        $region103: #{tpu_custom_call.1} parent=99 // pred_region
          %s4858 = sand.u32 %s319, 1
          %s4859 = scalar_lea.sflag [#allocation5], %s4858
          %s4860 = sand.u32 %s319, 1
          %s4861 = smul.addr %s4860, 128
          %s4862 = scalar_lea.vmem [#allocation12], %s4861
          %4863 = dma.done %s4859, 2048
        $region104: #{tpu_custom_call.1} parent=99 // pred_fallthru
          _
      $region100: #{tpu_custom_call.1} parent=5 // pred_fallthru
        _
    $region6: #{tpu_custom_call.1} parent=1 // loop_footer
      %s31 = sadd.s32 1, %s27
    $region7: #{tpu_custom_call.1} parent=1 // loop_footer_branch
      %26 = sbr.rel target = $region3
    $region8: #{tpu_custom_call.1} parent=1 // loop_exit
      _
    %4864 = vsyncpa [#allocation4], 1
    %s4865 = scalar_lea.sflag [#allocation4], 1
    %4866 = vsyncpa %s4865, 1
    %4867 = vsyncpa [#allocation7], 1
    %4868 = vsyncpa [#allocation10], 1
    %4869 = vsyncpa [#allocation5], 1
    %s4870 = scalar_lea.sflag [#allocation5], 1
    %4871 = vsyncpa %s4870, 1

</llo_original>
